<compile_context>
chip_gen: v7x
topology: tpu7x:2x2x1
jax: 0.10.0
libtpu: 0.0.40
codegen_flags: <defaults>
</compile_context>

<pallas_src>
import functools

import jax
import jax.numpy as jnp
import numpy as np
from jax import lax
from jax.experimental import pallas as pl
from jax.experimental.pallas import tpu as pltpu

# Small, module-consistent shapes (nn.LSTM(input_size, hidden_size, num_layers=2, bidirectional)).
HIDDEN = 32
LAYERS = 2
INPUT = 32
BATCH = 2
SEQ = 8


# ----------------------------------------------------------------------------
# Fused Pallas kernel: 2 x bidirectional LSTM layers + attention pooling
# ----------------------------------------------------------------------------
def _fused_kernel(x_ref, wih0_ref, whh0_ref, b0_ref, wih1_ref, whh1_ref, b1_ref,
                  aw_ref, ab_ref, res_ref, *, bsz, seq_len):
    """Whole forward pass in one kernel (everything stays in vregs after the first loads).

    x_ref:    (T*B, D)     time-major input rows (row = t*B + b), relayout done in the wrapper
    wihL_ref: (D_in, 8H)   [W_ih_fwd | W_ih_bwd], gate columns repacked to [i, f, o, g]
    whhL_ref: (2H, 4H)     [W_hh_fwd ; W_hh_bwd] stacked along the contraction axis, same order
    bL_ref:   (1, 8H)      [b_fwd | b_bwd]  (each = b_ih + b_hh)
    aw_ref:   (1, 2H)      attn_fc weight
    ab_ref:   (1, 1)       attn_fc bias
    res_ref:  (B, 4H)      output: [last_out | attn_out]   (4H == 128 -> one unmasked store)
    """
    hid = whh0_ref.shape[1] // 4
    feat = 2 * hid

    # Block-diagonal mask so ONE (2B, 2H) @ (2H, 4H) matmul drives both directions per step.
    ri = lax.broadcasted_iota(jnp.int32, (2 * bsz, 2 * hid), 0)
    ci = lax.broadcasted_iota(jnp.int32, (2 * bsz, 2 * hid), 1)
    blk_mask = jnp.where(((ri < bsz) & (ci < hid)) | ((ri >= bsz) & (ci >= hid)),
                         jnp.float32(1.0), jnp.float32(0.0))

    def run_layer(x2d, wih_ref, whh_ref, b_ref):
        # Hoisted input projection (both directions at once) + bias: one MXU op per layer.
        xp = jnp.dot(x2d, wih_ref[...], preferred_element_type=jnp.float32) + b_ref[...]
        whh = whh_ref[...]                                       # loaded once per layer
        h_blk = jnp.zeros((2 * bsz, 2 * hid), jnp.float32)       # [[h_fwd, 0], [0, h_bwd]]
        c = jnp.zeros((2 * bsz, hid), jnp.float32)               # rows 0:B fwd cell, B:2B bwd cell
        h_fwd = [None] * seq_len
        h_bwd = [None] * seq_len
        for t in range(seq_len):                                 # fully unrolled: static indices
            pf = xp[t * bsz:(t + 1) * bsz, 0:4 * hid]                              # fwd, time t
            pb = xp[(seq_len - 1 - t) * bsz:(seq_len - t) * bsz, 4 * hid:8 * hid]  # bwd, time T-1-t
            gates = jnp.concatenate([pf, pb], axis=0) + jnp.dot(
                h_blk, whh, preferred_element_type=jnp.float32)  # (2B, 4H), gate order i,f,o,g
            sig = jax.nn.sigmoid(gates[:, 0:3 * hid])            # one contiguous sigmoid slab
            g_g = jnp.tanh(gates[:, 3 * hid:4 * hid])            # tanh only on the g slab
            i_g = sig[:, 0:hid]
            f_g = sig[:, hid:2 * hid]
            o_g = sig[:, 2 * hid:3 * hid]
            c = f_g * c + i_g * g_g
            h = o_g * jnp.tanh(c)                                # rows 0:B fwd@t, B:2B bwd@(T-1-t)
            h_blk = jnp.concatenate([h, h], axis=1) * blk_mask
            h_fwd[t] = h[0:bsz, :]
            h_bwd[seq_len - 1 - t] = h[bsz:2 * bsz, :]
        # Bidirectional layer output kept in vregs: out[t] = [fwd@t | bwd@t]  (B, 2H).
        return [jnp.concatenate([h_fwd[t], h_bwd[t]], axis=-1) for t in range(seq_len)]

    # ---- layer 0 ----
    outs0 = run_layer(x_ref[...], wih0_ref, whh0_ref, b0_ref)
    # TODO(synk): nn.LSTM inter-layer dropout (p=0.1) is train-mode only; eval forward => no-op.

    # ---- layer 1 (input is the in-register time-major concat of layer-0 outputs) ----
    x1 = jnp.concatenate(outs0, axis=0)                          # (T*B, 2H), row = t*B + b
    outs1 = run_layer(x1, wih1_ref, whh1_ref, b1_ref)

    # ---- attention pooling: attn_fc -> softmax over time -> weighted sum; concat with last ----
    aw = aw_ref[...]                                             # (1, 2H)
    ab = ab_ref[...]                                             # (1, 1)
    scores = [jnp.sum(outs1[t] * aw, axis=-1, keepdims=True) + ab for t in range(seq_len)]
    sc = jnp.concatenate(scores, axis=-1)                        # (B, T), lane-dense
    m = jnp.max(sc, axis=-1, keepdims=True)
    e = jnp.exp(sc - m)
    wts = e / jnp.sum(e, axis=-1, keepdims=True)                 # (B, T)
    attn_out = jnp.zeros((bsz, feat), jnp.float32)
    for t in range(seq_len):
        attn_out = attn_out + wts[:, t:t + 1] * outs1[t]         # (B, 2H) lane-dense VPU ops
    last_out = outs1[seq_len - 1]                                # (B, 2H)
    res_ref[...] = jnp.concatenate([last_out, attn_out], axis=-1)   # single (B, 128) store


# ----------------------------------------------------------------------------
# Wrapper: one pallas_call, everything resident in VMEM, no grid, no scratch
# ----------------------------------------------------------------------------
def history_attention_rnn(seq, packed):
    """seq: (B, T, input_size) -> (B, 4*HIDDEN)."""
    bsz, seq_len, d_in = seq.shape
    hid = packed["whh0"].shape[1] // 4
    # One-off tiny relayout outside the kernel (avoids routing raw inputs through the MXU).
    x_tm = jnp.transpose(seq, (1, 0, 2)).reshape(seq_len * bsz, d_in)   # row = t*B + b

    args = (x_tm, packed["wih0"], packed["whh0"], packed["b0"],
            packed["wih1"], packed["whh1"], packed["b1"],
            packed["attn_w"], packed["attn_b"])

    rows = seq_len * bsz
    flops = (2 * rows * d_in * 8 * hid                            # layer-0 input projection
             + 2 * rows * 2 * hid * 8 * hid                       # layer-1 input projection
             + 2 * LAYERS * seq_len * (2 * bsz) * (2 * hid) * (4 * hid)   # recurrence dots
             + 8 * rows * 2 * hid)                                # attention
    transcendentals = LAYERS * seq_len * (2 * bsz) * 5 * hid + bsz * seq_len
    bytes_accessed = sum(int(np.prod(a.shape)) * 4 for a in args) + bsz * 4 * hid * 4

    kernel = functools.partial(_fused_kernel, bsz=bsz, seq_len=seq_len)
    return pl.pallas_call(
        kernel,
        out_shape=jax.ShapeDtypeStruct((bsz, 4 * hid), jnp.float32),
        in_specs=[pl.BlockSpec(memory_space=pltpu.MemorySpace.VMEM)] * len(args),
        out_specs=pl.BlockSpec(memory_space=pltpu.MemorySpace.VMEM),
        cost_estimate=pl.CostEstimate(flops=flops, transcendentals=transcendentals,
                                      bytes_accessed=bytes_accessed),
    )(*args)


# ----------------------------------------------------------------------------
# Deterministic parameter init (PyTorch-style uniform(-1/sqrt(H), 1/sqrt(H))) + packing
# ----------------------------------------------------------------------------
def init_params(key):
    k = 1.0 / np.sqrt(HIDDEN)
    params = {"lstm": []}
    for layer in range(LAYERS):
        d_in = INPUT if layer == 0 else 2 * HIDDEN
        layer_p = {}
        for direction in ("fwd", "bwd"):
            key, k1, k2, k3, k4 = jax.random.split(key, 5)
            wih = jax.random.uniform(k1, (d_in, 4 * HIDDEN), jnp.float32, -k, k)
            whh = jax.random.uniform(k2, (HIDDEN, 4 * HIDDEN), jnp.float32, -k, k)
            b_ih = jax.random.uniform(k3, (4 * HIDDEN,), jnp.float32, -k, k)
            b_hh = jax.random.uniform(k4, (4 * HIDDEN,), jnp.float32, -k, k)
            layer_p[direction] = (wih, whh, b_ih + b_hh)
        params["lstm"].append(layer_p)
    key, kw, kb = jax.random.split(key, 3)
    lim = 1.0 / np.sqrt(2 * HIDDEN)
    params["attn_w"] = jax.random.uniform(kw, (1, 2 * HIDDEN), jnp.float32, -lim, lim)
    params["attn_b"] = jax.random.uniform(kb, (1, 1), jnp.float32, -lim, lim)
    return params


def _reorder_gates(w):
    """PyTorch gate column order [i, f, g, o] -> kernel order [i, f, o, g] (last axis = 4H)."""
    h = HIDDEN
    return jnp.concatenate([w[..., 0:2 * h], w[..., 3 * h:4 * h], w[..., 2 * h:3 * h]], axis=-1)


def pack_params(raw):
    """Pack fwd/bwd weights so the kernel does one matmul per layer-projection / per step."""
    packed = {}
    for layer in range(LAYERS):
        wih_f, whh_f, b_f = raw["lstm"][layer]["fwd"]
        wih_b, whh_b, b_b = raw["lstm"][layer]["bwd"]
        wih_f, whh_f, b_f = _reorder_gates(wih_f), _reorder_gates(whh_f), _reorder_gates(b_f)
        wih_b, whh_b, b_b = _reorder_gates(wih_b), _reorder_gates(whh_b), _reorder_gates(b_b)
        packed[f"wih{layer}"] = jnp.concatenate([wih_f, wih_b], axis=1)          # (D_in, 8H)
        packed[f"whh{layer}"] = jnp.concatenate([whh_f, whh_b], axis=0)          # (2H, 4H)
        packed[f"b{layer}"] = jnp.concatenate([b_f, b_b]).reshape(1, 8 * HIDDEN)  # (1, 8H)
    packed["attn_w"] = raw["attn_w"]
    packed["attn_b"] = raw["attn_b"]
    return packed


# ----------------------------------------------------------------------------
# Pure numpy reference (mirrors the PyTorch forward in eval mode)
# ----------------------------------------------------------------------------
def _ref_forward(seq, params):
    def sigmoid(z):
        return 1.0 / (1.0 + np.exp(-z))

    x = np.asarray(seq, np.float32)                   # (B, T, D)
    for layer in range(LAYERS):
        outs_dir = []
        for direction, rev in (("fwd", False), ("bwd", True)):
            wih, whh, b = [np.asarray(a, np.float32) for a in params["lstm"][layer][direction]]
            bsz, t, _ = x.shape
            hdim = whh.shape[0]
            h = np.zeros((bsz, hdim), np.float32)
            c = np.zeros((bsz, hdim), np.float32)
            out = np.zeros((bsz, t, hdim), np.float32)
            order = range(t - 1, -1, -1) if rev else range(t)
            for ti in order:
                g = x[:, ti, :] @ wih + h @ whh + b
                i_g = sigmoid(g[:, :hdim])
                f_g = sigmoid(g[:, hdim:2 * hdim])
                g_g = np.tanh(g[:, 2 * hdim:3 * hdim])
                o_g = sigmoid(g[:, 3 * hdim:])
                c = f_g * c + i_g * g_g
                h = o_g * np.tanh(c)
                out[:, ti, :] = h
            outs_dir.append(out)
        x = np.concatenate(outs_dir, axis=-1)
    outputs = x                                       # (B, T, 2H)
    w = np.asarray(params["attn_w"], np.float32).reshape(-1)
    bb = float(np.asarray(params["attn_b"]).reshape(()))
    scores = outputs @ w + bb                         # (B, T)
    scores = scores - scores.max(axis=1, keepdims=True)
    e = np.exp(scores)
    wts = e / e.sum(axis=1, keepdims=True)
    attn_out = (outputs * wts[:, :, None]).sum(axis=1)
    last_out = outputs[:, -1, :]
    return np.concatenate([last_out, attn_out], axis=1)


if __name__ == "__main__":
    key = jax.random.PRNGKey(0)
    k_seq, k_par = jax.random.split(key)
    seq = jax.random.normal(k_seq, (BATCH, SEQ, INPUT), jnp.float32)
    raw_params = init_params(k_par)
    packed = pack_params(raw_params)

    fwd = jax.jit(functools.partial(history_attention_rnn, packed=packed))
    out = fwd(seq)
    out = jax.block_until_ready(out)

    assert out.shape == (BATCH, 4 * HIDDEN), out.shape

    ref = _ref_forward(np.asarray(seq), raw_params)
    # Loose tolerance: TPU MXU default f32 matmul precision differs from host float32.
    if not np.allclose(np.asarray(out), ref, atol=3e-2, rtol=3e-2):
        raise AssertionError("Pallas output diverges from reference")

    print("KERNEL_OK")
</pallas_src>

<mosaic_0001>
module attributes {stable_mosaic.version = 11 : i64} {
  func.func @_fused_kernel(%arg0: memref<16x32xf32, #tpu.memory_space<vmem>>, %arg1: memref<32x256xf32, #tpu.memory_space<vmem>>, %arg2: memref<64x128xf32, #tpu.memory_space<vmem>>, %arg3: memref<1x256xf32, #tpu.memory_space<vmem>>, %arg4: memref<64x256xf32, #tpu.memory_space<vmem>>, %arg5: memref<64x128xf32, #tpu.memory_space<vmem>>, %arg6: memref<1x256xf32, #tpu.memory_space<vmem>>, %arg7: memref<1x64xf32, #tpu.memory_space<vmem>>, %arg8: memref<1x1xf32, #tpu.memory_space<vmem>>, %arg9: memref<2x128xf32, #tpu.memory_space<vmem>>) attributes {dimension_semantics = [], scalar_prefetch = 0 : i64, scratch_operands = 0 : i64, tpu.core_type = #tpu.core_type<tc>} {
    %0 = tpu.iota {dimensions = array<i32: 0>} : vector<4x64xi32>
    %1 = tpu.iota {dimensions = array<i32: 1>} : vector<4x64xi32>
    %c2_i32 = arith.constant 2 : i32
    %2 = vector.broadcast %c2_i32 : i32 to vector<4x64xi32>
    %3 = arith.cmpi slt, %0, %2 : vector<4x64xi32>
    %c32_i32 = arith.constant 32 : i32
    %4 = vector.broadcast %c32_i32 : i32 to vector<4x64xi32>
    %5 = arith.cmpi slt, %1, %4 : vector<4x64xi32>
    %6 = arith.andi %3, %5 : vector<4x64xi1>
    %c2_i32_0 = arith.constant 2 : i32
    %7 = vector.broadcast %c2_i32_0 : i32 to vector<4x64xi32>
    %8 = arith.cmpi sge, %0, %7 : vector<4x64xi32>
    %c32_i32_1 = arith.constant 32 : i32
    %9 = vector.broadcast %c32_i32_1 : i32 to vector<4x64xi32>
    %10 = arith.cmpi sge, %1, %9 : vector<4x64xi32>
    %11 = arith.andi %8, %10 : vector<4x64xi1>
    %12 = arith.ori %6, %11 : vector<4x64xi1>
    %cst = arith.constant 1.000000e+00 : f32
    %cst_2 = arith.constant 0.000000e+00 : f32
    %13 = vector.broadcast %cst : f32 to vector<4x64xf32>
    %14 = vector.broadcast %cst_2 : f32 to vector<4x64xf32>
    %15 = arith.select %12, %13, %14 : vector<4x64xi1>, vector<4x64xf32>
    %c0 = arith.constant 0 : index
    %c0_3 = arith.constant 0 : index
    %16 = vector.load %arg0[%c0, %c0_3] : memref<16x32xf32, #tpu.memory_space<vmem>>, vector<16x32xf32>
    %c0_4 = arith.constant 0 : index
    %c0_5 = arith.constant 0 : index
    %17 = vector.load %arg1[%c0_4, %c0_5] : memref<32x256xf32, #tpu.memory_space<vmem>>, vector<32x256xf32>
    %cst_6 = arith.constant dense<0.000000e+00> : vector<16x256xf32>
    %18 = tpu.matmul %16, %17, %cst_6 {dimension_numbers = #tpu.dot_dimension_numbers<[1], [0], [0], [1], [0, 0, 1, 1], [], []>} : vector<16x32xf32>, vector<32x256xf32>, vector<16x256xf32> -> vector<16x256xf32>
    %c0_7 = arith.constant 0 : index
    %c0_8 = arith.constant 0 : index
    %19 = vector.load %arg3[%c0_7, %c0_8] : memref<1x256xf32, #tpu.memory_space<vmem>>, vector<1x256xf32>
    %20 = vector.broadcast %19 : vector<1x256xf32> to vector<16x256xf32>
    %21 = arith.addf %18, %20 : vector<16x256xf32>
    %c0_9 = arith.constant 0 : index
    %c0_10 = arith.constant 0 : index
    %22 = vector.load %arg2[%c0_9, %c0_10] : memref<64x128xf32, #tpu.memory_space<vmem>>, vector<64x128xf32>
    %cst_11 = arith.constant 0.000000e+00 : f32
    %23 = vector.broadcast %cst_11 : f32 to vector<4x64xf32>
    %cst_12 = arith.constant 0.000000e+00 : f32
    %24 = vector.broadcast %cst_12 : f32 to vector<4x32xf32>
    %25 = vector.extract_strided_slice %21 {offsets = [0, 0], sizes = [2, 128], strides = [1, 1]} : vector<16x256xf32> to vector<2x128xf32>
    %26 = vector.extract_strided_slice %21 {offsets = [14, 128], sizes = [2, 128], strides = [1, 1]} : vector<16x256xf32> to vector<2x128xf32>
    %27 = tpu.concatenate %25, %26 in 0 : vector<2x128xf32>, vector<2x128xf32> -> vector<4x128xf32>
    %cst_13 = arith.constant dense<0.000000e+00> : vector<4x128xf32>
    %28 = tpu.matmul %23, %22, %cst_13 {dimension_numbers = #tpu.dot_dimension_numbers<[1], [0], [0], [1], [0, 0, 1, 1], [], []>} : vector<4x64xf32>, vector<64x128xf32>, vector<4x128xf32> -> vector<4x128xf32>
    %29 = arith.addf %27, %28 : vector<4x128xf32>
    %30 = vector.extract_strided_slice %29 {offsets = [0, 0], sizes = [4, 96], strides = [1, 1]} : vector<4x128xf32> to vector<4x96xf32>
    %31 = arith.negf %30 : vector<4x96xf32>
    %32 = math.exp %31 : vector<4x96xf32>
    %cst_14 = arith.constant 1.000000e+00 : f32
    %33 = vector.broadcast %cst_14 : f32 to vector<4x96xf32>
    %34 = arith.addf %33, %32 : vector<4x96xf32>
    %35 = arith.divf %33, %34 : vector<4x96xf32>
    %36 = vector.extract_strided_slice %29 {offsets = [0, 96], sizes = [4, 32], strides = [1, 1]} : vector<4x128xf32> to vector<4x32xf32>
    %37 = math.tanh %36 : vector<4x32xf32>
    %38 = vector.extract_strided_slice %35 {offsets = [0, 0], sizes = [4, 32], strides = [1, 1]} : vector<4x96xf32> to vector<4x32xf32>
    %39 = vector.extract_strided_slice %35 {offsets = [0, 32], sizes = [4, 32], strides = [1, 1]} : vector<4x96xf32> to vector<4x32xf32>
    %40 = vector.extract_strided_slice %35 {offsets = [0, 64], sizes = [4, 32], strides = [1, 1]} : vector<4x96xf32> to vector<4x32xf32>
    %41 = arith.mulf %39, %24 : vector<4x32xf32>
    %42 = arith.mulf %38, %37 : vector<4x32xf32>
    %43 = arith.addf %41, %42 : vector<4x32xf32>
    %44 = math.tanh %43 : vector<4x32xf32>
    %45 = arith.mulf %40, %44 : vector<4x32xf32>
    %46 = tpu.concatenate %45, %45 in 1 : vector<4x32xf32>, vector<4x32xf32> -> vector<4x64xf32>
    %47 = arith.mulf %46, %15 : vector<4x64xf32>
    %48 = vector.extract_strided_slice %45 {offsets = [0, 0], sizes = [2, 32], strides = [1, 1]} : vector<4x32xf32> to vector<2x32xf32>
    %49 = vector.extract_strided_slice %45 {offsets = [2, 0], sizes = [2, 32], strides = [1, 1]} : vector<4x32xf32> to vector<2x32xf32>
    %50 = vector.extract_strided_slice %21 {offsets = [2, 0], sizes = [2, 128], strides = [1, 1]} : vector<16x256xf32> to vector<2x128xf32>
    %51 = vector.extract_strided_slice %21 {offsets = [12, 128], sizes = [2, 128], strides = [1, 1]} : vector<16x256xf32> to vector<2x128xf32>
    %52 = tpu.concatenate %50, %51 in 0 : vector<2x128xf32>, vector<2x128xf32> -> vector<4x128xf32>
    %cst_15 = arith.constant dense<0.000000e+00> : vector<4x128xf32>
    %53 = tpu.matmul %47, %22, %cst_15 {dimension_numbers = #tpu.dot_dimension_numbers<[1], [0], [0], [1], [0, 0, 1, 1], [], []>} : vector<4x64xf32>, vector<64x128xf32>, vector<4x128xf32> -> vector<4x128xf32>
    %54 = arith.addf %52, %53 : vector<4x128xf32>
    %55 = vector.extract_strided_slice %54 {offsets = [0, 0], sizes = [4, 96], strides = [1, 1]} : vector<4x128xf32> to vector<4x96xf32>
    %56 = arith.negf %55 : vector<4x96xf32>
    %57 = math.exp %56 : vector<4x96xf32>
    %cst_16 = arith.constant 1.000000e+00 : f32
    %58 = vector.broadcast %cst_16 : f32 to vector<4x96xf32>
    %59 = arith.addf %58, %57 : vector<4x96xf32>
    %60 = arith.divf %58, %59 : vector<4x96xf32>
    %61 = vector.extract_strided_slice %54 {offsets = [0, 96], sizes = [4, 32], strides = [1, 1]} : vector<4x128xf32> to vector<4x32xf32>
    %62 = math.tanh %61 : vector<4x32xf32>
    %63 = vector.extract_strided_slice %60 {offsets = [0, 0], sizes = [4, 32], strides = [1, 1]} : vector<4x96xf32> to vector<4x32xf32>
    %64 = vector.extract_strided_slice %60 {offsets = [0, 32], sizes = [4, 32], strides = [1, 1]} : vector<4x96xf32> to vector<4x32xf32>
    %65 = vector.extract_strided_slice %60 {offsets = [0, 64], sizes = [4, 32], strides = [1, 1]} : vector<4x96xf32> to vector<4x32xf32>
    %66 = arith.mulf %64, %43 : vector<4x32xf32>
    %67 = arith.mulf %63, %62 : vector<4x32xf32>
    %68 = arith.addf %66, %67 : vector<4x32xf32>
    %69 = math.tanh %68 : vector<4x32xf32>
    %70 = arith.mulf %65, %69 : vector<4x32xf32>
    %71 = tpu.concatenate %70, %70 in 1 : vector<4x32xf32>, vector<4x32xf32> -> vector<4x64xf32>
    %72 = arith.mulf %71, %15 : vector<4x64xf32>
    %73 = vector.extract_strided_slice %70 {offsets = [0, 0], sizes = [2, 32], strides = [1, 1]} : vector<4x32xf32> to vector<2x32xf32>
    %74 = vector.extract_strided_slice %70 {offsets = [2, 0], sizes = [2, 32], strides = [1, 1]} : vector<4x32xf32> to vector<2x32xf32>
    %75 = vector.extract_strided_slice %21 {offsets = [4, 0], sizes = [2, 128], strides = [1, 1]} : vector<16x256xf32> to vector<2x128xf32>
    %76 = vector.extract_strided_slice %21 {offsets = [10, 128], sizes = [2, 128], strides = [1, 1]} : vector<16x256xf32> to vector<2x128xf32>
    %77 = tpu.concatenate %75, %76 in 0 : vector<2x128xf32>, vector<2x128xf32> -> vector<4x128xf32>
    %cst_17 = arith.constant dense<0.000000e+00> : vector<4x128xf32>
    %78 = tpu.matmul %72, %22, %cst_17 {dimension_numbers = #tpu.dot_dimension_numbers<[1], [0], [0], [1], [0, 0, 1, 1], [], []>} : vector<4x64xf32>, vector<64x128xf32>, vector<4x128xf32> -> vector<4x128xf32>
    %79 = arith.addf %77, %78 : vector<4x128xf32>
    %80 = vector.extract_strided_slice %79 {offsets = [0, 0], sizes = [4, 96], strides = [1, 1]} : vector<4x128xf32> to vector<4x96xf32>
    %81 = arith.negf %80 : vector<4x96xf32>
    %82 = math.exp %81 : vector<4x96xf32>
    %cst_18 = arith.constant 1.000000e+00 : f32
    %83 = vector.broadcast %cst_18 : f32 to vector<4x96xf32>
    %84 = arith.addf %83, %82 : vector<4x96xf32>
    %85 = arith.divf %83, %84 : vector<4x96xf32>
    %86 = vector.extract_strided_slice %79 {offsets = [0, 96], sizes = [4, 32], strides = [1, 1]} : vector<4x128xf32> to vector<4x32xf32>
    %87 = math.tanh %86 : vector<4x32xf32>
    %88 = vector.extract_strided_slice %85 {offsets = [0, 0], sizes = [4, 32], strides = [1, 1]} : vector<4x96xf32> to vector<4x32xf32>
    %89 = vector.extract_strided_slice %85 {offsets = [0, 32], sizes = [4, 32], strides = [1, 1]} : vector<4x96xf32> to vector<4x32xf32>
    %90 = vector.extract_strided_slice %85 {offsets = [0, 64], sizes = [4, 32], strides = [1, 1]} : vector<4x96xf32> to vector<4x32xf32>
    %91 = arith.mulf %89, %68 : vector<4x32xf32>
    %92 = arith.mulf %88, %87 : vector<4x32xf32>
    %93 = arith.addf %91, %92 : vector<4x32xf32>
    %94 = math.tanh %93 : vector<4x32xf32>
    %95 = arith.mulf %90, %94 : vector<4x32xf32>
    %96 = tpu.concatenate %95, %95 in 1 : vector<4x32xf32>, vector<4x32xf32> -> vector<4x64xf32>
    %97 = arith.mulf %96, %15 : vector<4x64xf32>
    %98 = vector.extract_strided_slice %95 {offsets = [0, 0], sizes = [2, 32], strides = [1, 1]} : vector<4x32xf32> to vector<2x32xf32>
    %99 = vector.extract_strided_slice %95 {offsets = [2, 0], sizes = [2, 32], strides = [1, 1]} : vector<4x32xf32> to vector<2x32xf32>
    %100 = vector.extract_strided_slice %21 {offsets = [6, 0], sizes = [2, 128], strides = [1, 1]} : vector<16x256xf32> to vector<2x128xf32>
    %101 = vector.extract_strided_slice %21 {offsets = [8, 128], sizes = [2, 128], strides = [1, 1]} : vector<16x256xf32> to vector<2x128xf32>
    %102 = tpu.concatenate %100, %101 in 0 : vector<2x128xf32>, vector<2x128xf32> -> vector<4x128xf32>
    %cst_19 = arith.constant dense<0.000000e+00> : vector<4x128xf32>
    %103 = tpu.matmul %97, %22, %cst_19 {dimension_numbers = #tpu.dot_dimension_numbers<[1], [0], [0], [1], [0, 0, 1, 1], [], []>} : vector<4x64xf32>, vector<64x128xf32>, vector<4x128xf32> -> vector<4x128xf32>
    %104 = arith.addf %102, %103 : vector<4x128xf32>
    %105 = vector.extract_strided_slice %104 {offsets = [0, 0], sizes = [4, 96], strides = [1, 1]} : vector<4x128xf32> to vector<4x96xf32>
    %106 = arith.negf %105 : vector<4x96xf32>
    %107 = math.exp %106 : vector<4x96xf32>
    %cst_20 = arith.constant 1.000000e+00 : f32
    %108 = vector.broadcast %cst_20 : f32 to vector<4x96xf32>
    %109 = arith.addf %108, %107 : vector<4x96xf32>
    %110 = arith.divf %108, %109 : vector<4x96xf32>
    %111 = vector.extract_strided_slice %104 {offsets = [0, 96], sizes = [4, 32], strides = [1, 1]} : vector<4x128xf32> to vector<4x32xf32>
    %112 = math.tanh %111 : vector<4x32xf32>
    %113 = vector.extract_strided_slice %110 {offsets = [0, 0], sizes = [4, 32], strides = [1, 1]} : vector<4x96xf32> to vector<4x32xf32>
    %114 = vector.extract_strided_slice %110 {offsets = [0, 32], sizes = [4, 32], strides = [1, 1]} : vector<4x96xf32> to vector<4x32xf32>
    %115 = vector.extract_strided_slice %110 {offsets = [0, 64], sizes = [4, 32], strides = [1, 1]} : vector<4x96xf32> to vector<4x32xf32>
    %116 = arith.mulf %114, %93 : vector<4x32xf32>
    %117 = arith.mulf %113, %112 : vector<4x32xf32>
    %118 = arith.addf %116, %117 : vector<4x32xf32>
    %119 = math.tanh %118 : vector<4x32xf32>
    %120 = arith.mulf %115, %119 : vector<4x32xf32>
    %121 = tpu.concatenate %120, %120 in 1 : vector<4x32xf32>, vector<4x32xf32> -> vector<4x64xf32>
    %122 = arith.mulf %121, %15 : vector<4x64xf32>
    %123 = vector.extract_strided_slice %120 {offsets = [0, 0], sizes = [2, 32], strides = [1, 1]} : vector<4x32xf32> to vector<2x32xf32>
    %124 = vector.extract_strided_slice %120 {offsets = [2, 0], sizes = [2, 32], strides = [1, 1]} : vector<4x32xf32> to vector<2x32xf32>
    %125 = vector.extract_strided_slice %21 {offsets = [8, 0], sizes = [2, 128], strides = [1, 1]} : vector<16x256xf32> to vector<2x128xf32>
    %126 = vector.extract_strided_slice %21 {offsets = [6, 128], sizes = [2, 128], strides = [1, 1]} : vector<16x256xf32> to vector<2x128xf32>
    %127 = tpu.concatenate %125, %126 in 0 : vector<2x128xf32>, vector<2x128xf32> -> vector<4x128xf32>
    %cst_21 = arith.constant dense<0.000000e+00> : vector<4x128xf32>
    %128 = tpu.matmul %122, %22, %cst_21 {dimension_numbers = #tpu.dot_dimension_numbers<[1], [0], [0], [1], [0, 0, 1, 1], [], []>} : vector<4x64xf32>, vector<64x128xf32>, vector<4x128xf32> -> vector<4x128xf32>
    %129 = arith.addf %127, %128 : vector<4x128xf32>
    %130 = vector.extract_strided_slice %129 {offsets = [0, 0], sizes = [4, 96], strides = [1, 1]} : vector<4x128xf32> to vector<4x96xf32>
    %131 = arith.negf %130 : vector<4x96xf32>
    %132 = math.exp %131 : vector<4x96xf32>
    %cst_22 = arith.constant 1.000000e+00 : f32
    %133 = vector.broadcast %cst_22 : f32 to vector<4x96xf32>
    %134 = arith.addf %133, %132 : vector<4x96xf32>
    %135 = arith.divf %133, %134 : vector<4x96xf32>
    %136 = vector.extract_strided_slice %129 {offsets = [0, 96], sizes = [4, 32], strides = [1, 1]} : vector<4x128xf32> to vector<4x32xf32>
    %137 = math.tanh %136 : vector<4x32xf32>
    %138 = vector.extract_strided_slice %135 {offsets = [0, 0], sizes = [4, 32], strides = [1, 1]} : vector<4x96xf32> to vector<4x32xf32>
    %139 = vector.extract_strided_slice %135 {offsets = [0, 32], sizes = [4, 32], strides = [1, 1]} : vector<4x96xf32> to vector<4x32xf32>
    %140 = vector.extract_strided_slice %135 {offsets = [0, 64], sizes = [4, 32], strides = [1, 1]} : vector<4x96xf32> to vector<4x32xf32>
    %141 = arith.mulf %139, %118 : vector<4x32xf32>
    %142 = arith.mulf %138, %137 : vector<4x32xf32>
    %143 = arith.addf %141, %142 : vector<4x32xf32>
    %144 = math.tanh %143 : vector<4x32xf32>
    %145 = arith.mulf %140, %144 : vector<4x32xf32>
    %146 = tpu.concatenate %145, %145 in 1 : vector<4x32xf32>, vector<4x32xf32> -> vector<4x64xf32>
    %147 = arith.mulf %146, %15 : vector<4x64xf32>
    %148 = vector.extract_strided_slice %145 {offsets = [0, 0], sizes = [2, 32], strides = [1, 1]} : vector<4x32xf32> to vector<2x32xf32>
    %149 = vector.extract_strided_slice %145 {offsets = [2, 0], sizes = [2, 32], strides = [1, 1]} : vector<4x32xf32> to vector<2x32xf32>
    %150 = vector.extract_strided_slice %21 {offsets = [10, 0], sizes = [2, 128], strides = [1, 1]} : vector<16x256xf32> to vector<2x128xf32>
    %151 = vector.extract_strided_slice %21 {offsets = [4, 128], sizes = [2, 128], strides = [1, 1]} : vector<16x256xf32> to vector<2x128xf32>
    %152 = tpu.concatenate %150, %151 in 0 : vector<2x128xf32>, vector<2x128xf32> -> vector<4x128xf32>
    %cst_23 = arith.constant dense<0.000000e+00> : vector<4x128xf32>
    %153 = tpu.matmul %147, %22, %cst_23 {dimension_numbers = #tpu.dot_dimension_numbers<[1], [0], [0], [1], [0, 0, 1, 1], [], []>} : vector<4x64xf32>, vector<64x128xf32>, vector<4x128xf32> -> vector<4x128xf32>
    %154 = arith.addf %152, %153 : vector<4x128xf32>
    %155 = vector.extract_strided_slice %154 {offsets = [0, 0], sizes = [4, 96], strides = [1, 1]} : vector<4x128xf32> to vector<4x96xf32>
    %156 = arith.negf %155 : vector<4x96xf32>
    %157 = math.exp %156 : vector<4x96xf32>
    %cst_24 = arith.constant 1.000000e+00 : f32
    %158 = vector.broadcast %cst_24 : f32 to vector<4x96xf32>
    %159 = arith.addf %158, %157 : vector<4x96xf32>
    %160 = arith.divf %158, %159 : vector<4x96xf32>
    %161 = vector.extract_strided_slice %154 {offsets = [0, 96], sizes = [4, 32], strides = [1, 1]} : vector<4x128xf32> to vector<4x32xf32>
    %162 = math.tanh %161 : vector<4x32xf32>
    %163 = vector.extract_strided_slice %160 {offsets = [0, 0], sizes = [4, 32], strides = [1, 1]} : vector<4x96xf32> to vector<4x32xf32>
    %164 = vector.extract_strided_slice %160 {offsets = [0, 32], sizes = [4, 32], strides = [1, 1]} : vector<4x96xf32> to vector<4x32xf32>
    %165 = vector.extract_strided_slice %160 {offsets = [0, 64], sizes = [4, 32], strides = [1, 1]} : vector<4x96xf32> to vector<4x32xf32>
    %166 = arith.mulf %164, %143 : vector<4x32xf32>
    %167 = arith.mulf %163, %162 : vector<4x32xf32>
    %168 = arith.addf %166, %167 : vector<4x32xf32>
    %169 = math.tanh %168 : vector<4x32xf32>
    %170 = arith.mulf %165, %169 : vector<4x32xf32>
    %171 = tpu.concatenate %170, %170 in 1 : vector<4x32xf32>, vector<4x32xf32> -> vector<4x64xf32>
    %172 = arith.mulf %171, %15 : vector<4x64xf32>
    %173 = vector.extract_strided_slice %170 {offsets = [0, 0], sizes = [2, 32], strides = [1, 1]} : vector<4x32xf32> to vector<2x32xf32>
    %174 = vector.extract_strided_slice %170 {offsets = [2, 0], sizes = [2, 32], strides = [1, 1]} : vector<4x32xf32> to vector<2x32xf32>
    %175 = vector.extract_strided_slice %21 {offsets = [12, 0], sizes = [2, 128], strides = [1, 1]} : vector<16x256xf32> to vector<2x128xf32>
    %176 = vector.extract_strided_slice %21 {offsets = [2, 128], sizes = [2, 128], strides = [1, 1]} : vector<16x256xf32> to vector<2x128xf32>
    %177 = tpu.concatenate %175, %176 in 0 : vector<2x128xf32>, vector<2x128xf32> -> vector<4x128xf32>
    %cst_25 = arith.constant dense<0.000000e+00> : vector<4x128xf32>
    %178 = tpu.matmul %172, %22, %cst_25 {dimension_numbers = #tpu.dot_dimension_numbers<[1], [0], [0], [1], [0, 0, 1, 1], [], []>} : vector<4x64xf32>, vector<64x128xf32>, vector<4x128xf32> -> vector<4x128xf32>
    %179 = arith.addf %177, %178 : vector<4x128xf32>
    %180 = vector.extract_strided_slice %179 {offsets = [0, 0], sizes = [4, 96], strides = [1, 1]} : vector<4x128xf32> to vector<4x96xf32>
    %181 = arith.negf %180 : vector<4x96xf32>
    %182 = math.exp %181 : vector<4x96xf32>
    %cst_26 = arith.constant 1.000000e+00 : f32
    %183 = vector.broadcast %cst_26 : f32 to vector<4x96xf32>
    %184 = arith.addf %183, %182 : vector<4x96xf32>
    %185 = arith.divf %183, %184 : vector<4x96xf32>
    %186 = vector.extract_strided_slice %179 {offsets = [0, 96], sizes = [4, 32], strides = [1, 1]} : vector<4x128xf32> to vector<4x32xf32>
    %187 = math.tanh %186 : vector<4x32xf32>
    %188 = vector.extract_strided_slice %185 {offsets = [0, 0], sizes = [4, 32], strides = [1, 1]} : vector<4x96xf32> to vector<4x32xf32>
    %189 = vector.extract_strided_slice %185 {offsets = [0, 32], sizes = [4, 32], strides = [1, 1]} : vector<4x96xf32> to vector<4x32xf32>
    %190 = vector.extract_strided_slice %185 {offsets = [0, 64], sizes = [4, 32], strides = [1, 1]} : vector<4x96xf32> to vector<4x32xf32>
    %191 = arith.mulf %189, %168 : vector<4x32xf32>
    %192 = arith.mulf %188, %187 : vector<4x32xf32>
    %193 = arith.addf %191, %192 : vector<4x32xf32>
    %194 = math.tanh %193 : vector<4x32xf32>
    %195 = arith.mulf %190, %194 : vector<4x32xf32>
    %196 = tpu.concatenate %195, %195 in 1 : vector<4x32xf32>, vector<4x32xf32> -> vector<4x64xf32>
    %197 = arith.mulf %196, %15 : vector<4x64xf32>
    %198 = vector.extract_strided_slice %195 {offsets = [0, 0], sizes = [2, 32], strides = [1, 1]} : vector<4x32xf32> to vector<2x32xf32>
    %199 = vector.extract_strided_slice %195 {offsets = [2, 0], sizes = [2, 32], strides = [1, 1]} : vector<4x32xf32> to vector<2x32xf32>
    %200 = vector.extract_strided_slice %21 {offsets = [14, 0], sizes = [2, 128], strides = [1, 1]} : vector<16x256xf32> to vector<2x128xf32>
    %201 = vector.extract_strided_slice %21 {offsets = [0, 128], sizes = [2, 128], strides = [1, 1]} : vector<16x256xf32> to vector<2x128xf32>
    %202 = tpu.concatenate %200, %201 in 0 : vector<2x128xf32>, vector<2x128xf32> -> vector<4x128xf32>
    %cst_27 = arith.constant dense<0.000000e+00> : vector<4x128xf32>
    %203 = tpu.matmul %197, %22, %cst_27 {dimension_numbers = #tpu.dot_dimension_numbers<[1], [0], [0], [1], [0, 0, 1, 1], [], []>} : vector<4x64xf32>, vector<64x128xf32>, vector<4x128xf32> -> vector<4x128xf32>
    %204 = arith.addf %202, %203 : vector<4x128xf32>
    %205 = vector.extract_strided_slice %204 {offsets = [0, 0], sizes = [4, 96], strides = [1, 1]} : vector<4x128xf32> to vector<4x96xf32>
    %206 = arith.negf %205 : vector<4x96xf32>
    %207 = math.exp %206 : vector<4x96xf32>
    %cst_28 = arith.constant 1.000000e+00 : f32
    %208 = vector.broadcast %cst_28 : f32 to vector<4x96xf32>
    %209 = arith.addf %208, %207 : vector<4x96xf32>
    %210 = arith.divf %208, %209 : vector<4x96xf32>
    %211 = vector.extract_strided_slice %204 {offsets = [0, 96], sizes = [4, 32], strides = [1, 1]} : vector<4x128xf32> to vector<4x32xf32>
    %212 = math.tanh %211 : vector<4x32xf32>
    %213 = vector.extract_strided_slice %210 {offsets = [0, 0], sizes = [4, 32], strides = [1, 1]} : vector<4x96xf32> to vector<4x32xf32>
    %214 = vector.extract_strided_slice %210 {offsets = [0, 32], sizes = [4, 32], strides = [1, 1]} : vector<4x96xf32> to vector<4x32xf32>
    %215 = vector.extract_strided_slice %210 {offsets = [0, 64], sizes = [4, 32], strides = [1, 1]} : vector<4x96xf32> to vector<4x32xf32>
    %216 = arith.mulf %214, %193 : vector<4x32xf32>
    %217 = arith.mulf %213, %212 : vector<4x32xf32>
    %218 = arith.addf %216, %217 : vector<4x32xf32>
    %219 = math.tanh %218 : vector<4x32xf32>
    %220 = arith.mulf %215, %219 : vector<4x32xf32>
    %221 = vector.extract_strided_slice %220 {offsets = [0, 0], sizes = [2, 32], strides = [1, 1]} : vector<4x32xf32> to vector<2x32xf32>
    %222 = vector.extract_strided_slice %220 {offsets = [2, 0], sizes = [2, 32], strides = [1, 1]} : vector<4x32xf32> to vector<2x32xf32>
    %223 = tpu.concatenate %48, %222 in 1 : vector<2x32xf32>, vector<2x32xf32> -> vector<2x64xf32>
    %224 = tpu.concatenate %73, %199 in 1 : vector<2x32xf32>, vector<2x32xf32> -> vector<2x64xf32>
    %225 = tpu.concatenate %98, %174 in 1 : vector<2x32xf32>, vector<2x32xf32> -> vector<2x64xf32>
    %226 = tpu.concatenate %123, %149 in 1 : vector<2x32xf32>, vector<2x32xf32> -> vector<2x64xf32>
    %227 = tpu.concatenate %148, %124 in 1 : vector<2x32xf32>, vector<2x32xf32> -> vector<2x64xf32>
    %228 = tpu.concatenate %173, %99 in 1 : vector<2x32xf32>, vector<2x32xf32> -> vector<2x64xf32>
    %229 = tpu.concatenate %198, %74 in 1 : vector<2x32xf32>, vector<2x32xf32> -> vector<2x64xf32>
    %230 = tpu.concatenate %221, %49 in 1 : vector<2x32xf32>, vector<2x32xf32> -> vector<2x64xf32>
    %231 = tpu.concatenate %223, %224, %225, %226, %227, %228, %229, %230 in 0 : vector<2x64xf32>, vector<2x64xf32>, vector<2x64xf32>, vector<2x64xf32>, vector<2x64xf32>, vector<2x64xf32>, vector<2x64xf32>, vector<2x64xf32> -> vector<16x64xf32>
    %c0_29 = arith.constant 0 : index
    %c0_30 = arith.constant 0 : index
    %232 = vector.load %arg4[%c0_29, %c0_30] : memref<64x256xf32, #tpu.memory_space<vmem>>, vector<64x256xf32>
    %cst_31 = arith.constant dense<0.000000e+00> : vector<16x256xf32>
    %233 = tpu.matmul %231, %232, %cst_31 {dimension_numbers = #tpu.dot_dimension_numbers<[1], [0], [0], [1], [0, 0, 1, 1], [], []>} : vector<16x64xf32>, vector<64x256xf32>, vector<16x256xf32> -> vector<16x256xf32>
    %c0_32 = arith.constant 0 : index
    %c0_33 = arith.constant 0 : index
    %234 = vector.load %arg6[%c0_32, %c0_33] : memref<1x256xf32, #tpu.memory_space<vmem>>, vector<1x256xf32>
    %235 = vector.broadcast %234 : vector<1x256xf32> to vector<16x256xf32>
    %236 = arith.addf %233, %235 : vector<16x256xf32>
    %c0_34 = arith.constant 0 : index
    %c0_35 = arith.constant 0 : index
    %237 = vector.load %arg5[%c0_34, %c0_35] : memref<64x128xf32, #tpu.memory_space<vmem>>, vector<64x128xf32>
    %cst_36 = arith.constant 0.000000e+00 : f32
    %238 = vector.broadcast %cst_36 : f32 to vector<4x64xf32>
    %cst_37 = arith.constant 0.000000e+00 : f32
    %239 = vector.broadcast %cst_37 : f32 to vector<4x32xf32>
    %240 = vector.extract_strided_slice %236 {offsets = [0, 0], sizes = [2, 128], strides = [1, 1]} : vector<16x256xf32> to vector<2x128xf32>
    %241 = vector.extract_strided_slice %236 {offsets = [14, 128], sizes = [2, 128], strides = [1, 1]} : vector<16x256xf32> to vector<2x128xf32>
    %242 = tpu.concatenate %240, %241 in 0 : vector<2x128xf32>, vector<2x128xf32> -> vector<4x128xf32>
    %cst_38 = arith.constant dense<0.000000e+00> : vector<4x128xf32>
    %243 = tpu.matmul %238, %237, %cst_38 {dimension_numbers = #tpu.dot_dimension_numbers<[1], [0], [0], [1], [0, 0, 1, 1], [], []>} : vector<4x64xf32>, vector<64x128xf32>, vector<4x128xf32> -> vector<4x128xf32>
    %244 = arith.addf %242, %243 : vector<4x128xf32>
    %245 = vector.extract_strided_slice %244 {offsets = [0, 0], sizes = [4, 96], strides = [1, 1]} : vector<4x128xf32> to vector<4x96xf32>
    %246 = arith.negf %245 : vector<4x96xf32>
    %247 = math.exp %246 : vector<4x96xf32>
    %cst_39 = arith.constant 1.000000e+00 : f32
    %248 = vector.broadcast %cst_39 : f32 to vector<4x96xf32>
    %249 = arith.addf %248, %247 : vector<4x96xf32>
    %250 = arith.divf %248, %249 : vector<4x96xf32>
    %251 = vector.extract_strided_slice %244 {offsets = [0, 96], sizes = [4, 32], strides = [1, 1]} : vector<4x128xf32> to vector<4x32xf32>
    %252 = math.tanh %251 : vector<4x32xf32>
    %253 = vector.extract_strided_slice %250 {offsets = [0, 0], sizes = [4, 32], strides = [1, 1]} : vector<4x96xf32> to vector<4x32xf32>
    %254 = vector.extract_strided_slice %250 {offsets = [0, 32], sizes = [4, 32], strides = [1, 1]} : vector<4x96xf32> to vector<4x32xf32>
    %255 = vector.extract_strided_slice %250 {offsets = [0, 64], sizes = [4, 32], strides = [1, 1]} : vector<4x96xf32> to vector<4x32xf32>
    %256 = arith.mulf %254, %239 : vector<4x32xf32>
    %257 = arith.mulf %253, %252 : vector<4x32xf32>
    %258 = arith.addf %256, %257 : vector<4x32xf32>
    %259 = math.tanh %258 : vector<4x32xf32>
    %260 = arith.mulf %255, %259 : vector<4x32xf32>
    %261 = tpu.concatenate %260, %260 in 1 : vector<4x32xf32>, vector<4x32xf32> -> vector<4x64xf32>
    %262 = arith.mulf %261, %15 : vector<4x64xf32>
    %263 = vector.extract_strided_slice %260 {offsets = [0, 0], sizes = [2, 32], strides = [1, 1]} : vector<4x32xf32> to vector<2x32xf32>
    %264 = vector.extract_strided_slice %260 {offsets = [2, 0], sizes = [2, 32], strides = [1, 1]} : vector<4x32xf32> to vector<2x32xf32>
    %265 = vector.extract_strided_slice %236 {offsets = [2, 0], sizes = [2, 128], strides = [1, 1]} : vector<16x256xf32> to vector<2x128xf32>
    %266 = vector.extract_strided_slice %236 {offsets = [12, 128], sizes = [2, 128], strides = [1, 1]} : vector<16x256xf32> to vector<2x128xf32>
    %267 = tpu.concatenate %265, %266 in 0 : vector<2x128xf32>, vector<2x128xf32> -> vector<4x128xf32>
    %cst_40 = arith.constant dense<0.000000e+00> : vector<4x128xf32>
    %268 = tpu.matmul %262, %237, %cst_40 {dimension_numbers = #tpu.dot_dimension_numbers<[1], [0], [0], [1], [0, 0, 1, 1], [], []>} : vector<4x64xf32>, vector<64x128xf32>, vector<4x128xf32> -> vector<4x128xf32>
    %269 = arith.addf %267, %268 : vector<4x128xf32>
    %270 = vector.extract_strided_slice %269 {offsets = [0, 0], sizes = [4, 96], strides = [1, 1]} : vector<4x128xf32> to vector<4x96xf32>
    %271 = arith.negf %270 : vector<4x96xf32>
    %272 = math.exp %271 : vector<4x96xf32>
    %cst_41 = arith.constant 1.000000e+00 : f32
    %273 = vector.broadcast %cst_41 : f32 to vector<4x96xf32>
    %274 = arith.addf %273, %272 : vector<4x96xf32>
    %275 = arith.divf %273, %274 : vector<4x96xf32>
    %276 = vector.extract_strided_slice %269 {offsets = [0, 96], sizes = [4, 32], strides = [1, 1]} : vector<4x128xf32> to vector<4x32xf32>
    %277 = math.tanh %276 : vector<4x32xf32>
    %278 = vector.extract_strided_slice %275 {offsets = [0, 0], sizes = [4, 32], strides = [1, 1]} : vector<4x96xf32> to vector<4x32xf32>
    %279 = vector.extract_strided_slice %275 {offsets = [0, 32], sizes = [4, 32], strides = [1, 1]} : vector<4x96xf32> to vector<4x32xf32>
    %280 = vector.extract_strided_slice %275 {offsets = [0, 64], sizes = [4, 32], strides = [1, 1]} : vector<4x96xf32> to vector<4x32xf32>
    %281 = arith.mulf %279, %258 : vector<4x32xf32>
    %282 = arith.mulf %278, %277 : vector<4x32xf32>
    %283 = arith.addf %281, %282 : vector<4x32xf32>
    %284 = math.tanh %283 : vector<4x32xf32>
    %285 = arith.mulf %280, %284 : vector<4x32xf32>
    %286 = tpu.concatenate %285, %285 in 1 : vector<4x32xf32>, vector<4x32xf32> -> vector<4x64xf32>
    %287 = arith.mulf %286, %15 : vector<4x64xf32>
    %288 = vector.extract_strided_slice %285 {offsets = [0, 0], sizes = [2, 32], strides = [1, 1]} : vector<4x32xf32> to vector<2x32xf32>
    %289 = vector.extract_strided_slice %285 {offsets = [2, 0], sizes = [2, 32], strides = [1, 1]} : vector<4x32xf32> to vector<2x32xf32>
    %290 = vector.extract_strided_slice %236 {offsets = [4, 0], sizes = [2, 128], strides = [1, 1]} : vector<16x256xf32> to vector<2x128xf32>
    %291 = vector.extract_strided_slice %236 {offsets = [10, 128], sizes = [2, 128], strides = [1, 1]} : vector<16x256xf32> to vector<2x128xf32>
    %292 = tpu.concatenate %290, %291 in 0 : vector<2x128xf32>, vector<2x128xf32> -> vector<4x128xf32>
    %cst_42 = arith.constant dense<0.000000e+00> : vector<4x128xf32>
    %293 = tpu.matmul %287, %237, %cst_42 {dimension_numbers = #tpu.dot_dimension_numbers<[1], [0], [0], [1], [0, 0, 1, 1], [], []>} : vector<4x64xf32>, vector<64x128xf32>, vector<4x128xf32> -> vector<4x128xf32>
    %294 = arith.addf %292, %293 : vector<4x128xf32>
    %295 = vector.extract_strided_slice %294 {offsets = [0, 0], sizes = [4, 96], strides = [1, 1]} : vector<4x128xf32> to vector<4x96xf32>
    %296 = arith.negf %295 : vector<4x96xf32>
    %297 = math.exp %296 : vector<4x96xf32>
    %cst_43 = arith.constant 1.000000e+00 : f32
    %298 = vector.broadcast %cst_43 : f32 to vector<4x96xf32>
    %299 = arith.addf %298, %297 : vector<4x96xf32>
    %300 = arith.divf %298, %299 : vector<4x96xf32>
    %301 = vector.extract_strided_slice %294 {offsets = [0, 96], sizes = [4, 32], strides = [1, 1]} : vector<4x128xf32> to vector<4x32xf32>
    %302 = math.tanh %301 : vector<4x32xf32>
    %303 = vector.extract_strided_slice %300 {offsets = [0, 0], sizes = [4, 32], strides = [1, 1]} : vector<4x96xf32> to vector<4x32xf32>
    %304 = vector.extract_strided_slice %300 {offsets = [0, 32], sizes = [4, 32], strides = [1, 1]} : vector<4x96xf32> to vector<4x32xf32>
    %305 = vector.extract_strided_slice %300 {offsets = [0, 64], sizes = [4, 32], strides = [1, 1]} : vector<4x96xf32> to vector<4x32xf32>
    %306 = arith.mulf %304, %283 : vector<4x32xf32>
    %307 = arith.mulf %303, %302 : vector<4x32xf32>
    %308 = arith.addf %306, %307 : vector<4x32xf32>
    %309 = math.tanh %308 : vector<4x32xf32>
    %310 = arith.mulf %305, %309 : vector<4x32xf32>
    %311 = tpu.concatenate %310, %310 in 1 : vector<4x32xf32>, vector<4x32xf32> -> vector<4x64xf32>
    %312 = arith.mulf %311, %15 : vector<4x64xf32>
    %313 = vector.extract_strided_slice %310 {offsets = [0, 0], sizes = [2, 32], strides = [1, 1]} : vector<4x32xf32> to vector<2x32xf32>
    %314 = vector.extract_strided_slice %310 {offsets = [2, 0], sizes = [2, 32], strides = [1, 1]} : vector<4x32xf32> to vector<2x32xf32>
    %315 = vector.extract_strided_slice %236 {offsets = [6, 0], sizes = [2, 128], strides = [1, 1]} : vector<16x256xf32> to vector<2x128xf32>
    %316 = vector.extract_strided_slice %236 {offsets = [8, 128], sizes = [2, 128], strides = [1, 1]} : vector<16x256xf32> to vector<2x128xf32>
    %317 = tpu.concatenate %315, %316 in 0 : vector<2x128xf32>, vector<2x128xf32> -> vector<4x128xf32>
    %cst_44 = arith.constant dense<0.000000e+00> : vector<4x128xf32>
    %318 = tpu.matmul %312, %237, %cst_44 {dimension_numbers = #tpu.dot_dimension_numbers<[1], [0], [0], [1], [0, 0, 1, 1], [], []>} : vector<4x64xf32>, vector<64x128xf32>, vector<4x128xf32> -> vector<4x128xf32>
    %319 = arith.addf %317, %318 : vector<4x128xf32>
    %320 = vector.extract_strided_slice %319 {offsets = [0, 0], sizes = [4, 96], strides = [1, 1]} : vector<4x128xf32> to vector<4x96xf32>
    %321 = arith.negf %320 : vector<4x96xf32>
    %322 = math.exp %321 : vector<4x96xf32>
    %cst_45 = arith.constant 1.000000e+00 : f32
    %323 = vector.broadcast %cst_45 : f32 to vector<4x96xf32>
    %324 = arith.addf %323, %322 : vector<4x96xf32>
    %325 = arith.divf %323, %324 : vector<4x96xf32>
    %326 = vector.extract_strided_slice %319 {offsets = [0, 96], sizes = [4, 32], strides = [1, 1]} : vector<4x128xf32> to vector<4x32xf32>
    %327 = math.tanh %326 : vector<4x32xf32>
    %328 = vector.extract_strided_slice %325 {offsets = [0, 0], sizes = [4, 32], strides = [1, 1]} : vector<4x96xf32> to vector<4x32xf32>
    %329 = vector.extract_strided_slice %325 {offsets = [0, 32], sizes = [4, 32], strides = [1, 1]} : vector<4x96xf32> to vector<4x32xf32>
    %330 = vector.extract_strided_slice %325 {offsets = [0, 64], sizes = [4, 32], strides = [1, 1]} : vector<4x96xf32> to vector<4x32xf32>
    %331 = arith.mulf %329, %308 : vector<4x32xf32>
    %332 = arith.mulf %328, %327 : vector<4x32xf32>
    %333 = arith.addf %331, %332 : vector<4x32xf32>
    %334 = math.tanh %333 : vector<4x32xf32>
    %335 = arith.mulf %330, %334 : vector<4x32xf32>
    %336 = tpu.concatenate %335, %335 in 1 : vector<4x32xf32>, vector<4x32xf32> -> vector<4x64xf32>
    %337 = arith.mulf %336, %15 : vector<4x64xf32>
    %338 = vector.extract_strided_slice %335 {offsets = [0, 0], sizes = [2, 32], strides = [1, 1]} : vector<4x32xf32> to vector<2x32xf32>
    %339 = vector.extract_strided_slice %335 {offsets = [2, 0], sizes = [2, 32], strides = [1, 1]} : vector<4x32xf32> to vector<2x32xf32>
    %340 = vector.extract_strided_slice %236 {offsets = [8, 0], sizes = [2, 128], strides = [1, 1]} : vector<16x256xf32> to vector<2x128xf32>
    %341 = vector.extract_strided_slice %236 {offsets = [6, 128], sizes = [2, 128], strides = [1, 1]} : vector<16x256xf32> to vector<2x128xf32>
    %342 = tpu.concatenate %340, %341 in 0 : vector<2x128xf32>, vector<2x128xf32> -> vector<4x128xf32>
    %cst_46 = arith.constant dense<0.000000e+00> : vector<4x128xf32>
    %343 = tpu.matmul %337, %237, %cst_46 {dimension_numbers = #tpu.dot_dimension_numbers<[1], [0], [0], [1], [0, 0, 1, 1], [], []>} : vector<4x64xf32>, vector<64x128xf32>, vector<4x128xf32> -> vector<4x128xf32>
    %344 = arith.addf %342, %343 : vector<4x128xf32>
    %345 = vector.extract_strided_slice %344 {offsets = [0, 0], sizes = [4, 96], strides = [1, 1]} : vector<4x128xf32> to vector<4x96xf32>
    %346 = arith.negf %345 : vector<4x96xf32>
    %347 = math.exp %346 : vector<4x96xf32>
    %cst_47 = arith.constant 1.000000e+00 : f32
    %348 = vector.broadcast %cst_47 : f32 to vector<4x96xf32>
    %349 = arith.addf %348, %347 : vector<4x96xf32>
    %350 = arith.divf %348, %349 : vector<4x96xf32>
    %351 = vector.extract_strided_slice %344 {offsets = [0, 96], sizes = [4, 32], strides = [1, 1]} : vector<4x128xf32> to vector<4x32xf32>
    %352 = math.tanh %351 : vector<4x32xf32>
    %353 = vector.extract_strided_slice %350 {offsets = [0, 0], sizes = [4, 32], strides = [1, 1]} : vector<4x96xf32> to vector<4x32xf32>
    %354 = vector.extract_strided_slice %350 {offsets = [0, 32], sizes = [4, 32], strides = [1, 1]} : vector<4x96xf32> to vector<4x32xf32>
    %355 = vector.extract_strided_slice %350 {offsets = [0, 64], sizes = [4, 32], strides = [1, 1]} : vector<4x96xf32> to vector<4x32xf32>
    %356 = arith.mulf %354, %333 : vector<4x32xf32>
    %357 = arith.mulf %353, %352 : vector<4x32xf32>
    %358 = arith.addf %356, %357 : vector<4x32xf32>
    %359 = math.tanh %358 : vector<4x32xf32>
    %360 = arith.mulf %355, %359 : vector<4x32xf32>
    %361 = tpu.concatenate %360, %360 in 1 : vector<4x32xf32>, vector<4x32xf32> -> vector<4x64xf32>
    %362 = arith.mulf %361, %15 : vector<4x64xf32>
    %363 = vector.extract_strided_slice %360 {offsets = [0, 0], sizes = [2, 32], strides = [1, 1]} : vector<4x32xf32> to vector<2x32xf32>
    %364 = vector.extract_strided_slice %360 {offsets = [2, 0], sizes = [2, 32], strides = [1, 1]} : vector<4x32xf32> to vector<2x32xf32>
    %365 = vector.extract_strided_slice %236 {offsets = [10, 0], sizes = [2, 128], strides = [1, 1]} : vector<16x256xf32> to vector<2x128xf32>
    %366 = vector.extract_strided_slice %236 {offsets = [4, 128], sizes = [2, 128], strides = [1, 1]} : vector<16x256xf32> to vector<2x128xf32>
    %367 = tpu.concatenate %365, %366 in 0 : vector<2x128xf32>, vector<2x128xf32> -> vector<4x128xf32>
    %cst_48 = arith.constant dense<0.000000e+00> : vector<4x128xf32>
    %368 = tpu.matmul %362, %237, %cst_48 {dimension_numbers = #tpu.dot_dimension_numbers<[1], [0], [0], [1], [0, 0, 1, 1], [], []>} : vector<4x64xf32>, vector<64x128xf32>, vector<4x128xf32> -> vector<4x128xf32>
    %369 = arith.addf %367, %368 : vector<4x128xf32>
    %370 = vector.extract_strided_slice %369 {offsets = [0, 0], sizes = [4, 96], strides = [1, 1]} : vector<4x128xf32> to vector<4x96xf32>
    %371 = arith.negf %370 : vector<4x96xf32>
    %372 = math.exp %371 : vector<4x96xf32>
    %cst_49 = arith.constant 1.000000e+00 : f32
    %373 = vector.broadcast %cst_49 : f32 to vector<4x96xf32>
    %374 = arith.addf %373, %372 : vector<4x96xf32>
    %375 = arith.divf %373, %374 : vector<4x96xf32>
    %376 = vector.extract_strided_slice %369 {offsets = [0, 96], sizes = [4, 32], strides = [1, 1]} : vector<4x128xf32> to vector<4x32xf32>
    %377 = math.tanh %376 : vector<4x32xf32>
    %378 = vector.extract_strided_slice %375 {offsets = [0, 0], sizes = [4, 32], strides = [1, 1]} : vector<4x96xf32> to vector<4x32xf32>
    %379 = vector.extract_strided_slice %375 {offsets = [0, 32], sizes = [4, 32], strides = [1, 1]} : vector<4x96xf32> to vector<4x32xf32>
    %380 = vector.extract_strided_slice %375 {offsets = [0, 64], sizes = [4, 32], strides = [1, 1]} : vector<4x96xf32> to vector<4x32xf32>
    %381 = arith.mulf %379, %358 : vector<4x32xf32>
    %382 = arith.mulf %378, %377 : vector<4x32xf32>
    %383 = arith.addf %381, %382 : vector<4x32xf32>
    %384 = math.tanh %383 : vector<4x32xf32>
    %385 = arith.mulf %380, %384 : vector<4x32xf32>
    %386 = tpu.concatenate %385, %385 in 1 : vector<4x32xf32>, vector<4x32xf32> -> vector<4x64xf32>
    %387 = arith.mulf %386, %15 : vector<4x64xf32>
    %388 = vector.extract_strided_slice %385 {offsets = [0, 0], sizes = [2, 32], strides = [1, 1]} : vector<4x32xf32> to vector<2x32xf32>
    %389 = vector.extract_strided_slice %385 {offsets = [2, 0], sizes = [2, 32], strides = [1, 1]} : vector<4x32xf32> to vector<2x32xf32>
    %390 = vector.extract_strided_slice %236 {offsets = [12, 0], sizes = [2, 128], strides = [1, 1]} : vector<16x256xf32> to vector<2x128xf32>
    %391 = vector.extract_strided_slice %236 {offsets = [2, 128], sizes = [2, 128], strides = [1, 1]} : vector<16x256xf32> to vector<2x128xf32>
    %392 = tpu.concatenate %390, %391 in 0 : vector<2x128xf32>, vector<2x128xf32> -> vector<4x128xf32>
    %cst_50 = arith.constant dense<0.000000e+00> : vector<4x128xf32>
    %393 = tpu.matmul %387, %237, %cst_50 {dimension_numbers = #tpu.dot_dimension_numbers<[1], [0], [0], [1], [0, 0, 1, 1], [], []>} : vector<4x64xf32>, vector<64x128xf32>, vector<4x128xf32> -> vector<4x128xf32>
    %394 = arith.addf %392, %393 : vector<4x128xf32>
    %395 = vector.extract_strided_slice %394 {offsets = [0, 0], sizes = [4, 96], strides = [1, 1]} : vector<4x128xf32> to vector<4x96xf32>
    %396 = arith.negf %395 : vector<4x96xf32>
    %397 = math.exp %396 : vector<4x96xf32>
    %cst_51 = arith.constant 1.000000e+00 : f32
    %398 = vector.broadcast %cst_51 : f32 to vector<4x96xf32>
    %399 = arith.addf %398, %397 : vector<4x96xf32>
    %400 = arith.divf %398, %399 : vector<4x96xf32>
    %401 = vector.extract_strided_slice %394 {offsets = [0, 96], sizes = [4, 32], strides = [1, 1]} : vector<4x128xf32> to vector<4x32xf32>
    %402 = math.tanh %401 : vector<4x32xf32>
    %403 = vector.extract_strided_slice %400 {offsets = [0, 0], sizes = [4, 32], strides = [1, 1]} : vector<4x96xf32> to vector<4x32xf32>
    %404 = vector.extract_strided_slice %400 {offsets = [0, 32], sizes = [4, 32], strides = [1, 1]} : vector<4x96xf32> to vector<4x32xf32>
    %405 = vector.extract_strided_slice %400 {offsets = [0, 64], sizes = [4, 32], strides = [1, 1]} : vector<4x96xf32> to vector<4x32xf32>
    %406 = arith.mulf %404, %383 : vector<4x32xf32>
    %407 = arith.mulf %403, %402 : vector<4x32xf32>
    %408 = arith.addf %406, %407 : vector<4x32xf32>
    %409 = math.tanh %408 : vector<4x32xf32>
    %410 = arith.mulf %405, %409 : vector<4x32xf32>
    %411 = tpu.concatenate %410, %410 in 1 : vector<4x32xf32>, vector<4x32xf32> -> vector<4x64xf32>
    %412 = arith.mulf %411, %15 : vector<4x64xf32>
    %413 = vector.extract_strided_slice %410 {offsets = [0, 0], sizes = [2, 32], strides = [1, 1]} : vector<4x32xf32> to vector<2x32xf32>
    %414 = vector.extract_strided_slice %410 {offsets = [2, 0], sizes = [2, 32], strides = [1, 1]} : vector<4x32xf32> to vector<2x32xf32>
    %415 = vector.extract_strided_slice %236 {offsets = [14, 0], sizes = [2, 128], strides = [1, 1]} : vector<16x256xf32> to vector<2x128xf32>
    %416 = vector.extract_strided_slice %236 {offsets = [0, 128], sizes = [2, 128], strides = [1, 1]} : vector<16x256xf32> to vector<2x128xf32>
    %417 = tpu.concatenate %415, %416 in 0 : vector<2x128xf32>, vector<2x128xf32> -> vector<4x128xf32>
    %cst_52 = arith.constant dense<0.000000e+00> : vector<4x128xf32>
    %418 = tpu.matmul %412, %237, %cst_52 {dimension_numbers = #tpu.dot_dimension_numbers<[1], [0], [0], [1], [0, 0, 1, 1], [], []>} : vector<4x64xf32>, vector<64x128xf32>, vector<4x128xf32> -> vector<4x128xf32>
    %419 = arith.addf %417, %418 : vector<4x128xf32>
    %420 = vector.extract_strided_slice %419 {offsets = [0, 0], sizes = [4, 96], strides = [1, 1]} : vector<4x128xf32> to vector<4x96xf32>
    %421 = arith.negf %420 : vector<4x96xf32>
    %422 = math.exp %421 : vector<4x96xf32>
    %cst_53 = arith.constant 1.000000e+00 : f32
    %423 = vector.broadcast %cst_53 : f32 to vector<4x96xf32>
    %424 = arith.addf %423, %422 : vector<4x96xf32>
    %425 = arith.divf %423, %424 : vector<4x96xf32>
    %426 = vector.extract_strided_slice %419 {offsets = [0, 96], sizes = [4, 32], strides = [1, 1]} : vector<4x128xf32> to vector<4x32xf32>
    %427 = math.tanh %426 : vector<4x32xf32>
    %428 = vector.extract_strided_slice %425 {offsets = [0, 0], sizes = [4, 32], strides = [1, 1]} : vector<4x96xf32> to vector<4x32xf32>
    %429 = vector.extract_strided_slice %425 {offsets = [0, 32], sizes = [4, 32], strides = [1, 1]} : vector<4x96xf32> to vector<4x32xf32>
    %430 = vector.extract_strided_slice %425 {offsets = [0, 64], sizes = [4, 32], strides = [1, 1]} : vector<4x96xf32> to vector<4x32xf32>
    %431 = arith.mulf %429, %408 : vector<4x32xf32>
    %432 = arith.mulf %428, %427 : vector<4x32xf32>
    %433 = arith.addf %431, %432 : vector<4x32xf32>
    %434 = math.tanh %433 : vector<4x32xf32>
    %435 = arith.mulf %430, %434 : vector<4x32xf32>
    %436 = vector.extract_strided_slice %435 {offsets = [0, 0], sizes = [2, 32], strides = [1, 1]} : vector<4x32xf32> to vector<2x32xf32>
    %437 = vector.extract_strided_slice %435 {offsets = [2, 0], sizes = [2, 32], strides = [1, 1]} : vector<4x32xf32> to vector<2x32xf32>
    %438 = tpu.concatenate %263, %437 in 1 : vector<2x32xf32>, vector<2x32xf32> -> vector<2x64xf32>
    %439 = tpu.concatenate %288, %414 in 1 : vector<2x32xf32>, vector<2x32xf32> -> vector<2x64xf32>
    %440 = tpu.concatenate %313, %389 in 1 : vector<2x32xf32>, vector<2x32xf32> -> vector<2x64xf32>
    %441 = tpu.concatenate %338, %364 in 1 : vector<2x32xf32>, vector<2x32xf32> -> vector<2x64xf32>
    %442 = tpu.concatenate %363, %339 in 1 : vector<2x32xf32>, vector<2x32xf32> -> vector<2x64xf32>
    %443 = tpu.concatenate %388, %314 in 1 : vector<2x32xf32>, vector<2x32xf32> -> vector<2x64xf32>
    %444 = tpu.concatenate %413, %289 in 1 : vector<2x32xf32>, vector<2x32xf32> -> vector<2x64xf32>
    %445 = tpu.concatenate %436, %264 in 1 : vector<2x32xf32>, vector<2x32xf32> -> vector<2x64xf32>
    %c0_54 = arith.constant 0 : index
    %c0_55 = arith.constant 0 : index
    %446 = vector.load %arg7[%c0_54, %c0_55] : memref<1x64xf32, #tpu.memory_space<vmem>>, vector<1x64xf32>
    %c0_56 = arith.constant 0 : index
    %c0_57 = arith.constant 0 : index
    %447 = vector.load %arg8[%c0_56, %c0_57] : memref<1x1xf32, #tpu.memory_space<vmem>>, vector<1x1xf32>
    %448 = vector.broadcast %446 : vector<1x64xf32> to vector<2x64xf32>
    %449 = arith.mulf %438, %448 : vector<2x64xf32>
    %cst_58 = arith.constant dense<0.000000e+00> : vector<2xf32>
    %450 = vector.multi_reduction <add>, %449, %cst_58 [1] : vector<2x64xf32> to vector<2xf32>
    %451 = vector.shape_cast %450 : vector<2xf32> to vector<2x1xf32>
    %452 = vector.broadcast %447 : vector<1x1xf32> to vector<2x1xf32>
    %453 = arith.addf %451, %452 : vector<2x1xf32>
    %454 = vector.broadcast %446 : vector<1x64xf32> to vector<2x64xf32>
    %455 = arith.mulf %439, %454 : vector<2x64xf32>
    %cst_59 = arith.constant dense<0.000000e+00> : vector<2xf32>
    %456 = vector.multi_reduction <add>, %455, %cst_59 [1] : vector<2x64xf32> to vector<2xf32>
    %457 = vector.shape_cast %456 : vector<2xf32> to vector<2x1xf32>
    %458 = vector.broadcast %447 : vector<1x1xf32> to vector<2x1xf32>
    %459 = arith.addf %457, %458 : vector<2x1xf32>
    %460 = vector.broadcast %446 : vector<1x64xf32> to vector<2x64xf32>
    %461 = arith.mulf %440, %460 : vector<2x64xf32>
    %cst_60 = arith.constant dense<0.000000e+00> : vector<2xf32>
    %462 = vector.multi_reduction <add>, %461, %cst_60 [1] : vector<2x64xf32> to vector<2xf32>
    %463 = vector.shape_cast %462 : vector<2xf32> to vector<2x1xf32>
    %464 = vector.broadcast %447 : vector<1x1xf32> to vector<2x1xf32>
    %465 = arith.addf %463, %464 : vector<2x1xf32>
    %466 = vector.broadcast %446 : vector<1x64xf32> to vector<2x64xf32>
    %467 = arith.mulf %441, %466 : vector<2x64xf32>
    %cst_61 = arith.constant dense<0.000000e+00> : vector<2xf32>
    %468 = vector.multi_reduction <add>, %467, %cst_61 [1] : vector<2x64xf32> to vector<2xf32>
    %469 = vector.shape_cast %468 : vector<2xf32> to vector<2x1xf32>
    %470 = vector.broadcast %447 : vector<1x1xf32> to vector<2x1xf32>
    %471 = arith.addf %469, %470 : vector<2x1xf32>
    %472 = vector.broadcast %446 : vector<1x64xf32> to vector<2x64xf32>
    %473 = arith.mulf %442, %472 : vector<2x64xf32>
    %cst_62 = arith.constant dense<0.000000e+00> : vector<2xf32>
    %474 = vector.multi_reduction <add>, %473, %cst_62 [1] : vector<2x64xf32> to vector<2xf32>
    %475 = vector.shape_cast %474 : vector<2xf32> to vector<2x1xf32>
    %476 = vector.broadcast %447 : vector<1x1xf32> to vector<2x1xf32>
    %477 = arith.addf %475, %476 : vector<2x1xf32>
    %478 = vector.broadcast %446 : vector<1x64xf32> to vector<2x64xf32>
    %479 = arith.mulf %443, %478 : vector<2x64xf32>
    %cst_63 = arith.constant dense<0.000000e+00> : vector<2xf32>
    %480 = vector.multi_reduction <add>, %479, %cst_63 [1] : vector<2x64xf32> to vector<2xf32>
    %481 = vector.shape_cast %480 : vector<2xf32> to vector<2x1xf32>
    %482 = vector.broadcast %447 : vector<1x1xf32> to vector<2x1xf32>
    %483 = arith.addf %481, %482 : vector<2x1xf32>
    %484 = vector.broadcast %446 : vector<1x64xf32> to vector<2x64xf32>
    %485 = arith.mulf %444, %484 : vector<2x64xf32>
    %cst_64 = arith.constant dense<0.000000e+00> : vector<2xf32>
    %486 = vector.multi_reduction <add>, %485, %cst_64 [1] : vector<2x64xf32> to vector<2xf32>
    %487 = vector.shape_cast %486 : vector<2xf32> to vector<2x1xf32>
    %488 = vector.broadcast %447 : vector<1x1xf32> to vector<2x1xf32>
    %489 = arith.addf %487, %488 : vector<2x1xf32>
    %490 = vector.broadcast %446 : vector<1x64xf32> to vector<2x64xf32>
    %491 = arith.mulf %445, %490 : vector<2x64xf32>
    %cst_65 = arith.constant dense<0.000000e+00> : vector<2xf32>
    %492 = vector.multi_reduction <add>, %491, %cst_65 [1] : vector<2x64xf32> to vector<2xf32>
    %493 = vector.shape_cast %492 : vector<2xf32> to vector<2x1xf32>
    %494 = vector.broadcast %447 : vector<1x1xf32> to vector<2x1xf32>
    %495 = arith.addf %493, %494 : vector<2x1xf32>
    %496 = tpu.concatenate %453, %459, %465, %471, %477, %483, %489, %495 in 1 : vector<2x1xf32>, vector<2x1xf32>, vector<2x1xf32>, vector<2x1xf32>, vector<2x1xf32>, vector<2x1xf32>, vector<2x1xf32>, vector<2x1xf32> -> vector<2x8xf32>
    %cst_66 = arith.constant dense<0xFF800000> : vector<2xf32>
    %497 = vector.multi_reduction <maximumf>, %496, %cst_66 [1] : vector<2x8xf32> to vector<2xf32>
    %498 = vector.shape_cast %497 : vector<2xf32> to vector<2x1xf32>
    %499 = vector.broadcast %498 : vector<2x1xf32> to vector<2x8xf32>
    %500 = arith.subf %496, %499 : vector<2x8xf32>
    %501 = math.exp %500 : vector<2x8xf32>
    %cst_67 = arith.constant dense<0.000000e+00> : vector<2xf32>
    %502 = vector.multi_reduction <add>, %501, %cst_67 [1] : vector<2x8xf32> to vector<2xf32>
    %503 = vector.shape_cast %502 : vector<2xf32> to vector<2x1xf32>
    %504 = vector.broadcast %503 : vector<2x1xf32> to vector<2x8xf32>
    %505 = arith.divf %501, %504 : vector<2x8xf32>
    %cst_68 = arith.constant 0.000000e+00 : f32
    %506 = vector.broadcast %cst_68 : f32 to vector<2x64xf32>
    %507 = vector.extract_strided_slice %505 {offsets = [0, 0], sizes = [2, 1], strides = [1, 1]} : vector<2x8xf32> to vector<2x1xf32>
    %508 = vector.broadcast %507 : vector<2x1xf32> to vector<2x64xf32>
    %509 = arith.mulf %508, %438 : vector<2x64xf32>
    %510 = arith.addf %506, %509 : vector<2x64xf32>
    %511 = vector.extract_strided_slice %505 {offsets = [0, 1], sizes = [2, 1], strides = [1, 1]} : vector<2x8xf32> to vector<2x1xf32>
    %512 = vector.broadcast %511 : vector<2x1xf32> to vector<2x64xf32>
    %513 = arith.mulf %512, %439 : vector<2x64xf32>
    %514 = arith.addf %510, %513 : vector<2x64xf32>
    %515 = vector.extract_strided_slice %505 {offsets = [0, 2], sizes = [2, 1], strides = [1, 1]} : vector<2x8xf32> to vector<2x1xf32>
    %516 = vector.broadcast %515 : vector<2x1xf32> to vector<2x64xf32>
    %517 = arith.mulf %516, %440 : vector<2x64xf32>
    %518 = arith.addf %514, %517 : vector<2x64xf32>
    %519 = vector.extract_strided_slice %505 {offsets = [0, 3], sizes = [2, 1], strides = [1, 1]} : vector<2x8xf32> to vector<2x1xf32>
    %520 = vector.broadcast %519 : vector<2x1xf32> to vector<2x64xf32>
    %521 = arith.mulf %520, %441 : vector<2x64xf32>
    %522 = arith.addf %518, %521 : vector<2x64xf32>
    %523 = vector.extract_strided_slice %505 {offsets = [0, 4], sizes = [2, 1], strides = [1, 1]} : vector<2x8xf32> to vector<2x1xf32>
    %524 = vector.broadcast %523 : vector<2x1xf32> to vector<2x64xf32>
    %525 = arith.mulf %524, %442 : vector<2x64xf32>
    %526 = arith.addf %522, %525 : vector<2x64xf32>
    %527 = vector.extract_strided_slice %505 {offsets = [0, 5], sizes = [2, 1], strides = [1, 1]} : vector<2x8xf32> to vector<2x1xf32>
    %528 = vector.broadcast %527 : vector<2x1xf32> to vector<2x64xf32>
    %529 = arith.mulf %528, %443 : vector<2x64xf32>
    %530 = arith.addf %526, %529 : vector<2x64xf32>
    %531 = vector.extract_strided_slice %505 {offsets = [0, 6], sizes = [2, 1], strides = [1, 1]} : vector<2x8xf32> to vector<2x1xf32>
    %532 = vector.broadcast %531 : vector<2x1xf32> to vector<2x64xf32>
    %533 = arith.mulf %532, %444 : vector<2x64xf32>
    %534 = arith.addf %530, %533 : vector<2x64xf32>
    %535 = vector.extract_strided_slice %505 {offsets = [0, 7], sizes = [2, 1], strides = [1, 1]} : vector<2x8xf32> to vector<2x1xf32>
    %536 = vector.broadcast %535 : vector<2x1xf32> to vector<2x64xf32>
    %537 = arith.mulf %536, %445 : vector<2x64xf32>
    %538 = arith.addf %534, %537 : vector<2x64xf32>
    %539 = tpu.concatenate %445, %538 in 1 : vector<2x64xf32>, vector<2x64xf32> -> vector<2x128xf32>
    %c0_69 = arith.constant 0 : index
    %c0_70 = arith.constant 0 : index
    %540 = vector.load %arg9[%c0_69, %c0_70] : memref<2x128xf32, #tpu.memory_space<vmem>>, vector<2x128xf32>
    tpu.vector_store %arg9[%c0_69, %c0_70], %539 {strides = array<i32>} : memref<2x128xf32, #tpu.memory_space<vmem>>, vector<2x128xf32>,
    return
  }
}

</mosaic_0001>

<llo_original>
// kernel: history_attention_rnn.1
$region0: #{history_attention_rnn.1}
  #allocation0 [shape = 'u32[]', space=smem, size = 0x4, offset = 0x4, fixed_abs, tag = 'smem constant byte address 0x4 - core index']
  #allocation1 [shape = 'u32[144,128]{1,0:T(1,128)}', space=vmem, size = 0x12000, scoped, tag = 'internal scratch']
  #allocation2 [shape = 'f32[1,1]{1,0:T(1,128)S(1)}', space=vmem, size = 0x200, scoped, tag = 'scoped memory for history_attention_rnn.1']
  %s0 = inlined_call_operand.vmem [shape: f32[16,32], index: 0, kind: input, shape index: {}]
  %s1 = inlined_call_operand.hbm [shape: f32[32,256], index: 1, kind: input, shape index: {}]
  %s2 = inlined_call_operand.hbm [shape: f32[64,128], index: 2, kind: input, shape index: {}]
  %s3 = inlined_call_operand.vmem [shape: f32[1,256], index: 3, kind: input, shape index: {}]
  %s4 = inlined_call_operand.hbm [shape: f32[64,256], index: 4, kind: input, shape index: {}]
  %s5 = inlined_call_operand.hbm [shape: f32[64,128], index: 5, kind: input, shape index: {}]
  %s6 = inlined_call_operand.vmem [shape: f32[1,256], index: 6, kind: input, shape index: {}]
  %s7 = inlined_call_operand.vmem [shape: f32[1,64], index: 7, kind: input, shape index: {}]
  %s8 = inlined_call_operand.<no memory space> [shape: f32[1,1], index: 8, kind: input, shape index: {}]
  %s9 = inlined_call_operand.hbm [shape: f32[2,128], index: 9, kind: output, shape index: {}]
  %s10 = sld [smem:[#allocation0]]
  $region62: #{history_attention_rnn.1} parent=0
    _
  %s12 = ssub.s32 1, %s10
  %s13 = scalar_select 0, %s12, %s10
  %v14 = vstv %s8
  %15 = vst [vmem:[#allocation2] sm:$0x1] %v14
  $region1: #{history_attention_rnn.1} parent=0
    #allocation3 [shape = 'u8[32768]{0}', space=vmem, size = 0x8000, scoped, tag = 'input window, operand 1, single buffered']
    #allocation4 [shape = 's32[1]{0}', space=sflag, size = 0x4, scoped, tag = 'scoped memory for history_attention_rnn.1']
    #allocation5 [shape = 's32[1]{0}', space=sflag, size = 0x4, scoped, tag = 'scoped memory for history_attention_rnn.1']
    #allocation6 [shape = 'u8[32768]{0}', space=vmem, size = 0x8000, scoped, tag = 'input window, operand 2, single buffered']
    #allocation7 [shape = 's32[1]{0}', space=sflag, size = 0x4, scoped, tag = 'scoped memory for history_attention_rnn.1']
    #allocation8 [shape = 'u8[65536]{0}', space=vmem, size = 0x10000, scoped, tag = 'input window, operand 4, single buffered']
    #allocation9 [shape = 'u8[32768]{0}', space=vmem, size = 0x8000, scoped, tag = 'input window, operand 5, single buffered']
    #allocation10 [shape = 's32[1]{0}', space=sflag, size = 0x4, scoped, tag = 'scoped memory for history_attention_rnn.1']
    #allocation11 [shape = 'u8[1024]{0}', space=vmem, size = 0x400, scoped, tag = 'output window, operand 0, single buffered']
    %16 = vsyncpa [#allocation4], 0
    %17 = vsyncpa [#allocation7], 0
    %18 = vsyncpa [#allocation10], 0
    %19 = vsyncpa [#allocation5], 0
    // Predicated region
    $region2: #{history_attention_rnn.1} parent=1 // pred_check
      _
    $region3: #{history_attention_rnn.1} parent=1 // pred_check_branch
      %21 = sbr.rel (0) target = $region5
    $region4: #{history_attention_rnn.1} parent=1 // pred_region
      _
    $region5: #{history_attention_rnn.1} parent=1 // pred_fallthru
      _
    // Predicated region
    $region6: #{history_attention_rnn.1} parent=1 // pred_check
      _
    $region7: #{history_attention_rnn.1} parent=1 // pred_check_branch
      %23 = sbr.rel (0) target = $region9
    $region8: #{history_attention_rnn.1} parent=1 // pred_region
      %s25 = ssub.s32 1024, 1024
      %26 = vsyncadd [#allocation4], %s25
      %s27 = sshll.u32 [#allocation3], 4
      %s28 = int_to_ptr.vmem [resolvable:$true] %s27
      %33 = dma.hbm_to_vmem [thread:$0]  %s1, 1024, %s28, [#allocation4], 256, 256, 16
    $region9: #{history_attention_rnn.1} parent=1 // pred_fallthru
      _
    // Predicated region
    $region10: #{history_attention_rnn.1} parent=1 // pred_check
      _
    $region11: #{history_attention_rnn.1} parent=1 // pred_check_branch
      %35 = sbr.rel (0) target = $region13
    $region12: #{history_attention_rnn.1} parent=1 // pred_region
      %s37 = ssub.s32 1024, 1024
      %38 = vsyncadd [#allocation7], %s37
      %s39 = sshll.u32 [#allocation6], 4
      %s40 = int_to_ptr.vmem [resolvable:$true] %s39
      %45 = dma.hbm_to_vmem [thread:$0]  %s2, 1024, %s40, [#allocation7], 128, 128, 8
    $region13: #{history_attention_rnn.1} parent=1 // pred_fallthru
      _
    // Predicated region
    $region14: #{history_attention_rnn.1} parent=1 // pred_check
      _
    $region15: #{history_attention_rnn.1} parent=1 // pred_check_branch
      %47 = sbr.rel (0) target = $region17
    $region16: #{history_attention_rnn.1} parent=1 // pred_region
      _
    $region17: #{history_attention_rnn.1} parent=1 // pred_fallthru
      _
    // Predicated region
    $region18: #{history_attention_rnn.1} parent=1 // pred_check
      _
    $region19: #{history_attention_rnn.1} parent=1 // pred_check_branch
      %49 = sbr.rel (0) target = $region21
    $region20: #{history_attention_rnn.1} parent=1 // pred_region
      %s51 = ssub.s32 2048, 2048
      %52 = vsyncadd [#allocation7], %s51
      %s53 = sshll.u32 [#allocation8], 4
      %s54 = int_to_ptr.vmem [resolvable:$true] %s53
      %59 = dma.hbm_to_vmem [thread:$0]  %s4, 2048, %s54, [#allocation7], 256, 256, 16
    $region21: #{history_attention_rnn.1} parent=1 // pred_fallthru
      _
    // Predicated region
    $region22: #{history_attention_rnn.1} parent=1 // pred_check
      _
    $region23: #{history_attention_rnn.1} parent=1 // pred_check_branch
      %61 = sbr.rel (0) target = $region25
    $region24: #{history_attention_rnn.1} parent=1 // pred_region
      %s63 = ssub.s32 1024, 1024
      %64 = vsyncadd [#allocation10], %s63
      %s65 = sshll.u32 [#allocation9], 4
      %s66 = int_to_ptr.vmem [resolvable:$true] %s65
      %71 = dma.hbm_to_vmem [thread:$0]  %s5, 1024, %s66, [#allocation10], 128, 128, 8
    $region25: #{history_attention_rnn.1} parent=1 // pred_fallthru
      _
    // Predicated region
    $region26: #{history_attention_rnn.1} parent=1 // pred_check
      _
    $region27: #{history_attention_rnn.1} parent=1 // pred_check_branch
      %73 = sbr.rel (0) target = $region29
    $region28: #{history_attention_rnn.1} parent=1 // pred_region
      _
    $region29: #{history_attention_rnn.1} parent=1 // pred_fallthru
      _
    // Predicated region
    $region30: #{history_attention_rnn.1} parent=1 // pred_check
      _
    $region31: #{history_attention_rnn.1} parent=1 // pred_check_branch
      %75 = sbr.rel (0) target = $region33
    $region32: #{history_attention_rnn.1} parent=1 // pred_region
      _
    $region33: #{history_attention_rnn.1} parent=1 // pred_fallthru
      _
    // Predicated region
    $region34: #{history_attention_rnn.1} parent=1 // pred_check
      _
    $region35: #{history_attention_rnn.1} parent=1 // pred_check_branch
      %77 = sbr.rel (0) target = $region37
    $region36: #{history_attention_rnn.1} parent=1 // pred_region
      _
    $region37: #{history_attention_rnn.1} parent=1 // pred_fallthru
      _
    // Predicated region
    $region38: #{history_attention_rnn.1} parent=1 // pred_check
      _
    $region39: #{history_attention_rnn.1} parent=1 // pred_check_branch
      %79 = sbr.rel (0) target = $region41
    $region40: #{history_attention_rnn.1} parent=1 // pred_region
      %80 = dma.done [#allocation4], 1024
    $region41: #{history_attention_rnn.1} parent=1 // pred_fallthru
      _
    // Predicated region
    $region42: #{history_attention_rnn.1} parent=1 // pred_check
      _
    $region43: #{history_attention_rnn.1} parent=1 // pred_check_branch
      %82 = sbr.rel (0) target = $region45
    $region44: #{history_attention_rnn.1} parent=1 // pred_region
      %83 = dma.done [#allocation7], 1024
    $region45: #{history_attention_rnn.1} parent=1 // pred_fallthru
      _
    // Predicated region
    $region46: #{history_attention_rnn.1} parent=1 // pred_check
      _
    $region47: #{history_attention_rnn.1} parent=1 // pred_check_branch
      %85 = sbr.rel (0) target = $region49
    $region48: #{history_attention_rnn.1} parent=1 // pred_region
      %86 = dma.done [#allocation7], 2048
    $region49: #{history_attention_rnn.1} parent=1 // pred_fallthru
      _
    // Predicated region
    $region50: #{history_attention_rnn.1} parent=1 // pred_check
      _
    $region51: #{history_attention_rnn.1} parent=1 // pred_check_branch
      %88 = sbr.rel (0) target = $region53
    $region52: #{history_attention_rnn.1} parent=1 // pred_region
      %89 = dma.done [#allocation10], 1024
    $region53: #{history_attention_rnn.1} parent=1 // pred_fallthru
      _
    %v90 = vlaneseq
    %v91 = vshrl.u32 %v90, 7
    %v92 = vlaneseq
    %v93 = vand.u32 %v92, 127
    %vm94 = vcmp.lt.s32.totalorder %v91, 2
    %vm95 = vcmp.lt.s32.totalorder %v93, 32
    %vm96 = vmand %vm94, %vm95
    %vm97 = vcmp.ge.s32.totalorder %v91, 2
    %vm98 = vcmp.ge.s32.totalorder %v93, 32
    %vm99 = vmand %vm97, %vm98
    %vm100 = vmor %vm96, %vm99
    %v101 = vsel %vm100, 1.0, 0.0
    %v102 = vld [vmem:[%s0] sm:$0xff]
    %v103 = vld [vmem:[%s0 + $0x8] sm:$0xff]
    %v104 = vld [vmem:[#allocation3] sm:$0xff]
    %v105 = vld [vmem:[#allocation3 + $0x8] sm:$0xff]
    %v106 = vld [vmem:[#allocation3 + $0x10] sm:$0xff]
    %v107 = vld [vmem:[#allocation3 + $0x18] sm:$0xff]
    %v108 = vld [vmem:[#allocation3 + $0x20] sm:$0xff]
    %v109 = vld [vmem:[#allocation3 + $0x28] sm:$0xff]
    %v110 = vld [vmem:[#allocation3 + $0x30] sm:$0xff]
    %v111 = vld [vmem:[#allocation3 + $0x38] sm:$0xff]
    %v112 = vld [vmem:[%s3] sm:$0x3]
    %v114 = vlaneseq
    %v115 = vshrl.u32 %v114, 7
    %v116 = vsub.s32 0, %v115
    %v117 = vrot.slane %v112, %v116
    %v118 = vlaneseq
    %v119 = vshrl.u32 %v118, 7
    %v120 = vsub.s32 1, %v119
    %v121 = vrot.slane %v112, %v120
    %vm124 = vcmask 261120
    %v126 = vsel %vm124, %v102, 0
    %v129 = vsel %vm124, %v103, 0
    %131 = vmatprep.subr.mxu0 %v105
    %132 = vmatpush1.msra.mxu0 %v104
    %133 = vmatprep.subr.mxu0 %v107
    %134 = vmatpush1.msra.mxu0 %v106
    %135 = vmatprep.subr.mxu0 %v109
    %136 = vmatpush1.msra.mxu0 %v108
    %137 = vmatprep.subr.mxu0 %v111
    %138 = vmatpush1.msra.mxu0 %v110
    %139 = vmatprep.subr.mxu0 0.0
    %140 = vmatpush1.msra.mxu0 0.0
    %141 = vmatprep.subr.mxu0 0.0
    %142 = vmatpush1.msra.mxu0 0.0
    %143 = vmatprep.subr.mxu0 0.0
    %144 = vmatpush1.msra.mxu0 0.0
    %145 = vmatprep.subr.mxu0 0.0
    %146 = vmatpush1.msra.mxu0 0.0
    %147 = vmatprep.subr.mxu0 0.0
    %148 = vmatpush1.msra.mxu0 0.0
    %149 = vmatprep.subr.mxu0 0.0
    %150 = vmatpush1.msra.mxu0 0.0
    %151 = vmatprep.subr.mxu0 0.0
    %152 = vmatpush1.msra.mxu0 0.0
    %153 = vmatprep.subr.mxu0 0.0
    %154 = vmatpush1.msra.mxu0 0.0
    %155 = vmatprep.subr.mxu0 0.0
    %156 = vmatpush1.msra.mxu0 0.0
    %157 = vmatprep.subr.mxu0 0.0
    %158 = vmatpush1.msra.mxu0 0.0
    %159 = vmatprep.subr.mxu0 0.0
    %160 = vmatpush1.msra.mxu0 0.0
    %161 = vmatprep.subr.mxu0 0.0
    %162 = vmatpush1.msra.mxu0 0.0
    %163 = vmatprep.subr.mxu0 0.0
    %164 = vmatpush1.msra.mxu0 0.0
    %165 = vmatprep.subr.mxu0 0.0
    %166 = vmatpush1.msra.mxu0 0.0
    %167 = vmatprep.subr.mxu0 0.0
    %168 = vmatpush1.msra.mxu0 0.0
    %169 = vmatprep.subr.mxu0 0.0
    %170 = vmatpush1.msra.mxu0 0.0
    %171 = vmatprep.subr.mxu0 0.0
    %172 = vmatpush1.msra.mxu0 0.0
    %173 = vmatprep.subr.mxu0 0.0
    %174 = vmatpush1.msra.mxu0 0.0
    %175 = vmatprep.subr.mxu0 0.0
    %176 = vmatpush1.msra.mxu0 0.0
    %177 = vmatprep.subr.mxu0 0.0
    %178 = vmatpush1.msra.mxu0 0.0
    %179 = vmatprep.subr.mxu0 0.0
    %180 = vmatpush1.msra.mxu0 0.0
    %181 = vmatprep.subr.mxu0 0.0
    %182 = vmatpush1.msra.mxu0 0.0
    %183 = vmatprep.subr.mxu0 0.0
    %184 = vmatpush1.msra.mxu0 0.0
    %185 = vmatprep.subr.mxu0 0.0
    %186 = vmatpush1.msra.mxu0 0.0
    %187 = vmatprep.subr.mxu0 0.0
    %188 = vmatpush1.msra.mxu0 0.0
    %189 = vmatprep.subr.mxu0 0.0
    %190 = vmatpush1.msra.mxu0 0.0
    %191 = vmatprep.subr.mxu0 0.0
    %192 = vmatpush1.msra.mxu0 0.0
    %193 = vmatprep.subr.mxu0 0.0
    %194 = vmatpush1.msra.mxu0 0.0
    %195 = vmatprep.mubr.f32.mxu0 0.0
    %196 = vmatmul.mubr.f32.gmra.mrb[0].mxu0 %v126
    %v197 = vpop.f32.mrb[0].mxu0
    %v198 = vadd.f32 %v117, %v197
    %v199 = vpop.f32.mrb[0].mxu0
    %v200 = vadd.f32 %v121, %v199
    %201 = vmatprep.mubr.f32.mxu0 0.0
    %202 = vmatmul.mubr.f32.gmra.mrb[0].mxu0 %v129
    %v203 = vpop.f32.mrb[0].mxu0
    %v204 = vadd.f32 %v117, %v203
    %v205 = vpop.f32.mrb[0].mxu0
    %v206 = vadd.f32 %v121, %v205
    %207 = vdwg.mxu0
    %v208 = vld [vmem:[#allocation6] sm:$0xff]
    %v209 = vld [vmem:[#allocation6 + $0x8] sm:$0xff]
    %v210 = vld [vmem:[#allocation6 + $0x10] sm:$0xff]
    %v211 = vld [vmem:[#allocation6 + $0x18] sm:$0xff]
    %v212 = vld [vmem:[#allocation6 + $0x20] sm:$0xff]
    %v213 = vld [vmem:[#allocation6 + $0x28] sm:$0xff]
    %v214 = vld [vmem:[#allocation6 + $0x30] sm:$0xff]
    %v215 = vld [vmem:[#allocation6 + $0x38] sm:$0xff]
    %v217 = vrot.slane %v206, 4
    %vm219 = vcmask 1041408
    %v220 = vsel %vm219, %v198, %v217
    %vm221 = vcmask 523264
    %v223 = vsel %vm221, 0.0, 0
    %225 = vmatprep.subr.mxu0 0.0
    %226 = vmatpush1.msra.mxu0 %v208
    %227 = vmatprep.subr.mxu0 0.0
    %228 = vmatpush1.msra.mxu0 %v209
    %229 = vmatprep.subr.mxu0 0.0
    %230 = vmatpush1.msra.mxu0 %v210
    %231 = vmatprep.subr.mxu0 0.0
    %232 = vmatpush1.msra.mxu0 %v211
    %233 = vmatprep.subr.mxu0 0.0
    %234 = vmatpush1.msra.mxu0 %v212
    %235 = vmatprep.subr.mxu0 0.0
    %236 = vmatpush1.msra.mxu0 %v213
    %237 = vmatprep.subr.mxu0 0.0
    %238 = vmatpush1.msra.mxu0 %v214
    %239 = vmatprep.subr.mxu0 0.0
    %240 = vmatpush1.msra.mxu0 %v215
    %241 = vmatprep.subr.mxu0 0.0
    %242 = vmatpush1.msra.mxu0 0.0
    %243 = vmatprep.subr.mxu0 0.0
    %244 = vmatpush1.msra.mxu0 0.0
    %245 = vmatprep.subr.mxu0 0.0
    %246 = vmatpush1.msra.mxu0 0.0
    %247 = vmatprep.subr.mxu0 0.0
    %248 = vmatpush1.msra.mxu0 0.0
    %249 = vmatprep.subr.mxu0 0.0
    %250 = vmatpush1.msra.mxu0 0.0
    %251 = vmatprep.subr.mxu0 0.0
    %252 = vmatpush1.msra.mxu0 0.0
    %253 = vmatprep.subr.mxu0 0.0
    %254 = vmatpush1.msra.mxu0 0.0
    %255 = vmatprep.subr.mxu0 0.0
    %256 = vmatpush1.msra.mxu0 0.0
    %257 = vmatprep.subr.mxu0 0.0
    %258 = vmatpush1.msra.mxu0 0.0
    %259 = vmatprep.subr.mxu0 0.0
    %260 = vmatpush1.msra.mxu0 0.0
    %261 = vmatprep.subr.mxu0 0.0
    %262 = vmatpush1.msra.mxu0 0.0
    %263 = vmatprep.subr.mxu0 0.0
    %264 = vmatpush1.msra.mxu0 0.0
    %265 = vmatprep.subr.mxu0 0.0
    %266 = vmatpush1.msra.mxu0 0.0
    %267 = vmatprep.subr.mxu0 0.0
    %268 = vmatpush1.msra.mxu0 0.0
    %269 = vmatprep.subr.mxu0 0.0
    %270 = vmatpush1.msra.mxu0 0.0
    %271 = vmatprep.subr.mxu0 0.0
    %272 = vmatpush1.msra.mxu0 0.0
    %273 = vmatprep.subr.mxu0 0.0
    %274 = vmatpush1.msra.mxu0 0.0
    %275 = vmatprep.subr.mxu0 0.0
    %276 = vmatpush1.msra.mxu0 0.0
    %277 = vmatprep.subr.mxu0 0.0
    %278 = vmatpush1.msra.mxu0 0.0
    %279 = vmatprep.subr.mxu0 0.0
    %280 = vmatpush1.msra.mxu0 0.0
    %281 = vmatprep.subr.mxu0 0.0
    %282 = vmatpush1.msra.mxu0 0.0
    %283 = vmatprep.subr.mxu0 0.0
    %284 = vmatpush1.msra.mxu0 0.0
    %285 = vmatprep.subr.mxu0 0.0
    %286 = vmatpush1.msra.mxu0 0.0
    %287 = vmatprep.subr.mxu0 0.0
    %288 = vmatpush1.msra.mxu0 0.0
    %289 = vmatprep.mubr.f32.mxu0 0.0
    %290 = vmatmul.mubr.f32.gmra.mrb[0].mxu0 %v223
    %v291 = vpop.f32.mrb[0].mxu0
    %v292 = vadd.f32 0.0, %v291
    %v293 = vpop.f32.mrb[0].mxu0
    %294 = vdwg.mxu0
    %v295 = vadd.f32 %v220, %v292
    %v296 = vxor.u32 %v295, 2147483648
    %v297 = vmul.f32 %v296, 1.442695
    %v298 = vpow.pop %v297
    %v299 = vadd.f32 %v298, 1.0
    %v300 = vrcp.pop %v299
    %v301 = vmul.f32 1.0, %v300
    %v302 = vtanh.pop %v295
    %v303 = vmul.f32 %v301, 0.0
    %305 = vrot.lane.b32.xlu0 %v302, 32
    %v306 = vpop.permute.xlu0 %305
    %v308 = vmul.f32 %v301, %v306
    %310 = vrot.lane.b32.xlu0 %v308, 32
    %v311 = vpop.permute.xlu0 %310
    %v313 = vadd.f32 %v303, %v311
    %v314 = vtanh.pop %v313
    %316 = vrot.lane.b32.xlu0 %v314, 32
    %v317 = vpop.permute.xlu0 %316
    %v319 = vmul.f32 %v301, %v317
    %321 = vrot.lane.b32.xlu0 %v319, 64
    %v322 = vpop.permute.xlu0 %321
    %324 = vrot.lane.b32.xlu0 %v319, 96
    %v325 = vpop.permute.xlu0 %324
    %v327 = vsel %vm124, %v322, %v325
    %v328 = vmul.f32 %v327, %v101
    %v330 = vrot.slane %v198, 2
    %v332 = vrot.slane %v206, 2
    %v334 = vsel %vm219, %v330, %v332
    %v336 = vsel %vm221, %v328, 0
    %338 = vmatprep.subr.mxu0 0.0
    %339 = vmatpush1.msra.mxu0 %v208
    %340 = vmatprep.subr.mxu0 0.0
    %341 = vmatpush1.msra.mxu0 %v209
    %342 = vmatprep.subr.mxu0 0.0
    %343 = vmatpush1.msra.mxu0 %v210
    %344 = vmatprep.subr.mxu0 0.0
    %345 = vmatpush1.msra.mxu0 %v211
    %346 = vmatprep.subr.mxu0 0.0
    %347 = vmatpush1.msra.mxu0 %v212
    %348 = vmatprep.subr.mxu0 0.0
    %349 = vmatpush1.msra.mxu0 %v213
    %350 = vmatprep.subr.mxu0 0.0
    %351 = vmatpush1.msra.mxu0 %v214
    %352 = vmatprep.subr.mxu0 0.0
    %353 = vmatpush1.msra.mxu0 %v215
    %354 = vmatprep.subr.mxu0 0.0
    %355 = vmatpush1.msra.mxu0 0.0
    %356 = vmatprep.subr.mxu0 0.0
    %357 = vmatpush1.msra.mxu0 0.0
    %358 = vmatprep.subr.mxu0 0.0
    %359 = vmatpush1.msra.mxu0 0.0
    %360 = vmatprep.subr.mxu0 0.0
    %361 = vmatpush1.msra.mxu0 0.0
    %362 = vmatprep.subr.mxu0 0.0
    %363 = vmatpush1.msra.mxu0 0.0
    %364 = vmatprep.subr.mxu0 0.0
    %365 = vmatpush1.msra.mxu0 0.0
    %366 = vmatprep.subr.mxu0 0.0
    %367 = vmatpush1.msra.mxu0 0.0
    %368 = vmatprep.subr.mxu0 0.0
    %369 = vmatpush1.msra.mxu0 0.0
    %370 = vmatprep.subr.mxu0 0.0
    %371 = vmatpush1.msra.mxu0 0.0
    %372 = vmatprep.subr.mxu0 0.0
    %373 = vmatpush1.msra.mxu0 0.0
    %374 = vmatprep.subr.mxu0 0.0
    %375 = vmatpush1.msra.mxu0 0.0
    %376 = vmatprep.subr.mxu0 0.0
    %377 = vmatpush1.msra.mxu0 0.0
    %378 = vmatprep.subr.mxu0 0.0
    %379 = vmatpush1.msra.mxu0 0.0
    %380 = vmatprep.subr.mxu0 0.0
    %381 = vmatpush1.msra.mxu0 0.0
    %382 = vmatprep.subr.mxu0 0.0
    %383 = vmatpush1.msra.mxu0 0.0
    %384 = vmatprep.subr.mxu0 0.0
    %385 = vmatpush1.msra.mxu0 0.0
    %386 = vmatprep.subr.mxu0 0.0
    %387 = vmatpush1.msra.mxu0 0.0
    %388 = vmatprep.subr.mxu0 0.0
    %389 = vmatpush1.msra.mxu0 0.0
    %390 = vmatprep.subr.mxu0 0.0
    %391 = vmatpush1.msra.mxu0 0.0
    %392 = vmatprep.subr.mxu0 0.0
    %393 = vmatpush1.msra.mxu0 0.0
    %394 = vmatprep.subr.mxu0 0.0
    %395 = vmatpush1.msra.mxu0 0.0
    %396 = vmatprep.subr.mxu0 0.0
    %397 = vmatpush1.msra.mxu0 0.0
    %398 = vmatprep.subr.mxu0 0.0
    %399 = vmatpush1.msra.mxu0 0.0
    %400 = vmatprep.subr.mxu0 0.0
    %401 = vmatpush1.msra.mxu0 0.0
    %402 = vmatprep.mubr.f32.mxu0 0.0
    %403 = vmatmul.mubr.f32.gmra.mrb[0].mxu0 %v336
    %v404 = vpop.f32.mrb[0].mxu0
    %v405 = vadd.f32 0.0, %v404
    %v406 = vpop.f32.mrb[0].mxu0
    %407 = vdwg.mxu0
    %v408 = vadd.f32 %v334, %v405
    %v409 = vxor.u32 %v408, 2147483648
    %v410 = vmul.f32 %v409, 1.442695
    %v411 = vpow.pop %v410
    %v412 = vadd.f32 %v411, 1.0
    %v413 = vrcp.pop %v412
    %v414 = vmul.f32 1.0, %v413
    %v415 = vtanh.pop %v408
    %v416 = vmul.f32 %v414, %v313
    %418 = vrot.lane.b32.xlu0 %v415, 32
    %v419 = vpop.permute.xlu0 %418
    %v421 = vmul.f32 %v414, %v419
    %423 = vrot.lane.b32.xlu0 %v421, 32
    %v424 = vpop.permute.xlu0 %423
    %v426 = vadd.f32 %v416, %v424
    %v427 = vtanh.pop %v426
    %429 = vrot.lane.b32.xlu0 %v427, 32
    %v430 = vpop.permute.xlu0 %429
    %v432 = vmul.f32 %v414, %v430
    %434 = vrot.lane.b32.xlu0 %v432, 64
    %v435 = vpop.permute.xlu0 %434
    %437 = vrot.lane.b32.xlu0 %v432, 96
    %v438 = vpop.permute.xlu0 %437
    %v440 = vsel %vm124, %v435, %v438
    %v441 = vmul.f32 %v440, %v101
    %v442 = vrot.slane %v198, 4
    %v444 = vsel %vm219, %v442, %v206
    %v446 = vsel %vm221, %v441, 0
    %448 = vmatprep.subr.mxu0 0.0
    %449 = vmatpush1.msra.mxu0 %v208
    %450 = vmatprep.subr.mxu0 0.0
    %451 = vmatpush1.msra.mxu0 %v209
    %452 = vmatprep.subr.mxu0 0.0
    %453 = vmatpush1.msra.mxu0 %v210
    %454 = vmatprep.subr.mxu0 0.0
    %455 = vmatpush1.msra.mxu0 %v211
    %456 = vmatprep.subr.mxu0 0.0
    %457 = vmatpush1.msra.mxu0 %v212
    %458 = vmatprep.subr.mxu0 0.0
    %459 = vmatpush1.msra.mxu0 %v213
    %460 = vmatprep.subr.mxu0 0.0
    %461 = vmatpush1.msra.mxu0 %v214
    %462 = vmatprep.subr.mxu0 0.0
    %463 = vmatpush1.msra.mxu0 %v215
    %464 = vmatprep.subr.mxu0 0.0
    %465 = vmatpush1.msra.mxu0 0.0
    %466 = vmatprep.subr.mxu0 0.0
    %467 = vmatpush1.msra.mxu0 0.0
    %468 = vmatprep.subr.mxu0 0.0
    %469 = vmatpush1.msra.mxu0 0.0
    %470 = vmatprep.subr.mxu0 0.0
    %471 = vmatpush1.msra.mxu0 0.0
    %472 = vmatprep.subr.mxu0 0.0
    %473 = vmatpush1.msra.mxu0 0.0
    %474 = vmatprep.subr.mxu0 0.0
    %475 = vmatpush1.msra.mxu0 0.0
    %476 = vmatprep.subr.mxu0 0.0
    %477 = vmatpush1.msra.mxu0 0.0
    %478 = vmatprep.subr.mxu0 0.0
    %479 = vmatpush1.msra.mxu0 0.0
    %480 = vmatprep.subr.mxu0 0.0
    %481 = vmatpush1.msra.mxu0 0.0
    %482 = vmatprep.subr.mxu0 0.0
    %483 = vmatpush1.msra.mxu0 0.0
    %484 = vmatprep.subr.mxu0 0.0
    %485 = vmatpush1.msra.mxu0 0.0
    %486 = vmatprep.subr.mxu0 0.0
    %487 = vmatpush1.msra.mxu0 0.0
    %488 = vmatprep.subr.mxu0 0.0
    %489 = vmatpush1.msra.mxu0 0.0
    %490 = vmatprep.subr.mxu0 0.0
    %491 = vmatpush1.msra.mxu0 0.0
    %492 = vmatprep.subr.mxu0 0.0
    %493 = vmatpush1.msra.mxu0 0.0
    %494 = vmatprep.subr.mxu0 0.0
    %495 = vmatpush1.msra.mxu0 0.0
    %496 = vmatprep.subr.mxu0 0.0
    %497 = vmatpush1.msra.mxu0 0.0
    %498 = vmatprep.subr.mxu0 0.0
    %499 = vmatpush1.msra.mxu0 0.0
    %500 = vmatprep.subr.mxu0 0.0
    %501 = vmatpush1.msra.mxu0 0.0
    %502 = vmatprep.subr.mxu0 0.0
    %503 = vmatpush1.msra.mxu0 0.0
    %504 = vmatprep.subr.mxu0 0.0
    %505 = vmatpush1.msra.mxu0 0.0
    %506 = vmatprep.subr.mxu0 0.0
    %507 = vmatpush1.msra.mxu0 0.0
    %508 = vmatprep.subr.mxu0 0.0
    %509 = vmatpush1.msra.mxu0 0.0
    %510 = vmatprep.subr.mxu0 0.0
    %511 = vmatpush1.msra.mxu0 0.0
    %512 = vmatprep.mubr.f32.mxu0 0.0
    %513 = vmatmul.mubr.f32.gmra.mrb[0].mxu0 %v446
    %v514 = vpop.f32.mrb[0].mxu0
    %v515 = vadd.f32 0.0, %v514
    %v516 = vpop.f32.mrb[0].mxu0
    %517 = vdwg.mxu0
    %v518 = vadd.f32 %v444, %v515
    %v519 = vxor.u32 %v518, 2147483648
    %v520 = vmul.f32 %v519, 1.442695
    %v521 = vpow.pop %v520
    %v522 = vadd.f32 %v521, 1.0
    %v523 = vrcp.pop %v522
    %v524 = vmul.f32 1.0, %v523
    %v525 = vtanh.pop %v518
    %v526 = vmul.f32 %v524, %v426
    %528 = vrot.lane.b32.xlu0 %v525, 32
    %v529 = vpop.permute.xlu0 %528
    %v531 = vmul.f32 %v524, %v529
    %533 = vrot.lane.b32.xlu0 %v531, 32
    %v534 = vpop.permute.xlu0 %533
    %v536 = vadd.f32 %v526, %v534
    %v537 = vtanh.pop %v536
    %539 = vrot.lane.b32.xlu0 %v537, 32
    %v540 = vpop.permute.xlu0 %539
    %v542 = vmul.f32 %v524, %v540
    %544 = vrot.lane.b32.xlu0 %v542, 64
    %v545 = vpop.permute.xlu0 %544
    %547 = vrot.lane.b32.xlu0 %v542, 96
    %v548 = vpop.permute.xlu0 %547
    %v550 = vsel %vm124, %v545, %v548
    %v551 = vmul.f32 %v550, %v101
    %v552 = vrot.slane %v198, 6
    %v554 = vrot.slane %v206, 6
    %v556 = vsel %vm219, %v552, %v554
    %v558 = vsel %vm221, %v551, 0
    %560 = vmatprep.subr.mxu0 0.0
    %561 = vmatpush1.msra.mxu0 %v208
    %562 = vmatprep.subr.mxu0 0.0
    %563 = vmatpush1.msra.mxu0 %v209
    %564 = vmatprep.subr.mxu0 0.0
    %565 = vmatpush1.msra.mxu0 %v210
    %566 = vmatprep.subr.mxu0 0.0
    %567 = vmatpush1.msra.mxu0 %v211
    %568 = vmatprep.subr.mxu0 0.0
    %569 = vmatpush1.msra.mxu0 %v212
    %570 = vmatprep.subr.mxu0 0.0
    %571 = vmatpush1.msra.mxu0 %v213
    %572 = vmatprep.subr.mxu0 0.0
    %573 = vmatpush1.msra.mxu0 %v214
    %574 = vmatprep.subr.mxu0 0.0
    %575 = vmatpush1.msra.mxu0 %v215
    %576 = vmatprep.subr.mxu0 0.0
    %577 = vmatpush1.msra.mxu0 0.0
    %578 = vmatprep.subr.mxu0 0.0
    %579 = vmatpush1.msra.mxu0 0.0
    %580 = vmatprep.subr.mxu0 0.0
    %581 = vmatpush1.msra.mxu0 0.0
    %582 = vmatprep.subr.mxu0 0.0
    %583 = vmatpush1.msra.mxu0 0.0
    %584 = vmatprep.subr.mxu0 0.0
    %585 = vmatpush1.msra.mxu0 0.0
    %586 = vmatprep.subr.mxu0 0.0
    %587 = vmatpush1.msra.mxu0 0.0
    %588 = vmatprep.subr.mxu0 0.0
    %589 = vmatpush1.msra.mxu0 0.0
    %590 = vmatprep.subr.mxu0 0.0
    %591 = vmatpush1.msra.mxu0 0.0
    %592 = vmatprep.subr.mxu0 0.0
    %593 = vmatpush1.msra.mxu0 0.0
    %594 = vmatprep.subr.mxu0 0.0
    %595 = vmatpush1.msra.mxu0 0.0
    %596 = vmatprep.subr.mxu0 0.0
    %597 = vmatpush1.msra.mxu0 0.0
    %598 = vmatprep.subr.mxu0 0.0
    %599 = vmatpush1.msra.mxu0 0.0
    %600 = vmatprep.subr.mxu0 0.0
    %601 = vmatpush1.msra.mxu0 0.0
    %602 = vmatprep.subr.mxu0 0.0
    %603 = vmatpush1.msra.mxu0 0.0
    %604 = vmatprep.subr.mxu0 0.0
    %605 = vmatpush1.msra.mxu0 0.0
    %606 = vmatprep.subr.mxu0 0.0
    %607 = vmatpush1.msra.mxu0 0.0
    %608 = vmatprep.subr.mxu0 0.0
    %609 = vmatpush1.msra.mxu0 0.0
    %610 = vmatprep.subr.mxu0 0.0
    %611 = vmatpush1.msra.mxu0 0.0
    %612 = vmatprep.subr.mxu0 0.0
    %613 = vmatpush1.msra.mxu0 0.0
    %614 = vmatprep.subr.mxu0 0.0
    %615 = vmatpush1.msra.mxu0 0.0
    %616 = vmatprep.subr.mxu0 0.0
    %617 = vmatpush1.msra.mxu0 0.0
    %618 = vmatprep.subr.mxu0 0.0
    %619 = vmatpush1.msra.mxu0 0.0
    %620 = vmatprep.subr.mxu0 0.0
    %621 = vmatpush1.msra.mxu0 0.0
    %622 = vmatprep.subr.mxu0 0.0
    %623 = vmatpush1.msra.mxu0 0.0
    %624 = vmatprep.mubr.f32.mxu0 0.0
    %625 = vmatmul.mubr.f32.gmra.mrb[0].mxu0 %v558
    %v626 = vpop.f32.mrb[0].mxu0
    %v627 = vadd.f32 0.0, %v626
    %v628 = vpop.f32.mrb[0].mxu0
    %629 = vdwg.mxu0
    %v630 = vadd.f32 %v556, %v627
    %v631 = vxor.u32 %v630, 2147483648
    %v632 = vmul.f32 %v631, 1.442695
    %v633 = vpow.pop %v632
    %v634 = vadd.f32 %v633, 1.0
    %v635 = vrcp.pop %v634
    %v636 = vmul.f32 1.0, %v635
    %v637 = vtanh.pop %v630
    %v638 = vmul.f32 %v636, %v536
    %640 = vrot.lane.b32.xlu0 %v637, 32
    %v641 = vpop.permute.xlu0 %640
    %v643 = vmul.f32 %v636, %v641
    %645 = vrot.lane.b32.xlu0 %v643, 32
    %v646 = vpop.permute.xlu0 %645
    %v648 = vadd.f32 %v638, %v646
    %v649 = vtanh.pop %v648
    %651 = vrot.lane.b32.xlu0 %v649, 32
    %v652 = vpop.permute.xlu0 %651
    %v654 = vmul.f32 %v636, %v652
    %656 = vrot.lane.b32.xlu0 %v654, 64
    %v657 = vpop.permute.xlu0 %656
    %659 = vrot.lane.b32.xlu0 %v654, 96
    %v660 = vpop.permute.xlu0 %659
    %v662 = vsel %vm124, %v657, %v660
    %v663 = vmul.f32 %v662, %v101
    %v665 = vrot.slane %v200, 4
    %v667 = vsel %vm219, %v204, %v665
    %v669 = vsel %vm221, %v663, 0
    %671 = vmatprep.subr.mxu0 0.0
    %672 = vmatpush1.msra.mxu0 %v208
    %673 = vmatprep.subr.mxu0 0.0
    %674 = vmatpush1.msra.mxu0 %v209
    %675 = vmatprep.subr.mxu0 0.0
    %676 = vmatpush1.msra.mxu0 %v210
    %677 = vmatprep.subr.mxu0 0.0
    %678 = vmatpush1.msra.mxu0 %v211
    %679 = vmatprep.subr.mxu0 0.0
    %680 = vmatpush1.msra.mxu0 %v212
    %681 = vmatprep.subr.mxu0 0.0
    %682 = vmatpush1.msra.mxu0 %v213
    %683 = vmatprep.subr.mxu0 0.0
    %684 = vmatpush1.msra.mxu0 %v214
    %685 = vmatprep.subr.mxu0 0.0
    %686 = vmatpush1.msra.mxu0 %v215
    %687 = vmatprep.subr.mxu0 0.0
    %688 = vmatpush1.msra.mxu0 0.0
    %689 = vmatprep.subr.mxu0 0.0
    %690 = vmatpush1.msra.mxu0 0.0
    %691 = vmatprep.subr.mxu0 0.0
    %692 = vmatpush1.msra.mxu0 0.0
    %693 = vmatprep.subr.mxu0 0.0
    %694 = vmatpush1.msra.mxu0 0.0
    %695 = vmatprep.subr.mxu0 0.0
    %696 = vmatpush1.msra.mxu0 0.0
    %697 = vmatprep.subr.mxu0 0.0
    %698 = vmatpush1.msra.mxu0 0.0
    %699 = vmatprep.subr.mxu0 0.0
    %700 = vmatpush1.msra.mxu0 0.0
    %701 = vmatprep.subr.mxu0 0.0
    %702 = vmatpush1.msra.mxu0 0.0
    %703 = vmatprep.subr.mxu0 0.0
    %704 = vmatpush1.msra.mxu0 0.0
    %705 = vmatprep.subr.mxu0 0.0
    %706 = vmatpush1.msra.mxu0 0.0
    %707 = vmatprep.subr.mxu0 0.0
    %708 = vmatpush1.msra.mxu0 0.0
    %709 = vmatprep.subr.mxu0 0.0
    %710 = vmatpush1.msra.mxu0 0.0
    %711 = vmatprep.subr.mxu0 0.0
    %712 = vmatpush1.msra.mxu0 0.0
    %713 = vmatprep.subr.mxu0 0.0
    %714 = vmatpush1.msra.mxu0 0.0
    %715 = vmatprep.subr.mxu0 0.0
    %716 = vmatpush1.msra.mxu0 0.0
    %717 = vmatprep.subr.mxu0 0.0
    %718 = vmatpush1.msra.mxu0 0.0
    %719 = vmatprep.subr.mxu0 0.0
    %720 = vmatpush1.msra.mxu0 0.0
    %721 = vmatprep.subr.mxu0 0.0
    %722 = vmatpush1.msra.mxu0 0.0
    %723 = vmatprep.subr.mxu0 0.0
    %724 = vmatpush1.msra.mxu0 0.0
    %725 = vmatprep.subr.mxu0 0.0
    %726 = vmatpush1.msra.mxu0 0.0
    %727 = vmatprep.subr.mxu0 0.0
    %728 = vmatpush1.msra.mxu0 0.0
    %729 = vmatprep.subr.mxu0 0.0
    %730 = vmatpush1.msra.mxu0 0.0
    %731 = vmatprep.subr.mxu0 0.0
    %732 = vmatpush1.msra.mxu0 0.0
    %733 = vmatprep.subr.mxu0 0.0
    %734 = vmatpush1.msra.mxu0 0.0
    %735 = vmatprep.mubr.f32.mxu0 0.0
    %736 = vmatmul.mubr.f32.gmra.mrb[0].mxu0 %v669
    %v737 = vpop.f32.mrb[0].mxu0
    %v738 = vadd.f32 0.0, %v737
    %v739 = vpop.f32.mrb[0].mxu0
    %740 = vdwg.mxu0
    %v741 = vadd.f32 %v667, %v738
    %v742 = vxor.u32 %v741, 2147483648
    %v743 = vmul.f32 %v742, 1.442695
    %v744 = vpow.pop %v743
    %v745 = vadd.f32 %v744, 1.0
    %v746 = vrcp.pop %v745
    %v747 = vmul.f32 1.0, %v746
    %v748 = vtanh.pop %v741
    %v749 = vmul.f32 %v747, %v648
    %751 = vrot.lane.b32.xlu0 %v748, 32
    %v752 = vpop.permute.xlu0 %751
    %v754 = vmul.f32 %v747, %v752
    %756 = vrot.lane.b32.xlu0 %v754, 32
    %v757 = vpop.permute.xlu0 %756
    %v759 = vadd.f32 %v749, %v757
    %v760 = vtanh.pop %v759
    %762 = vrot.lane.b32.xlu0 %v760, 32
    %v763 = vpop.permute.xlu0 %762
    %v765 = vmul.f32 %v747, %v763
    %767 = vrot.lane.b32.xlu0 %v765, 64
    %v768 = vpop.permute.xlu0 %767
    %770 = vrot.lane.b32.xlu0 %v765, 96
    %v771 = vpop.permute.xlu0 %770
    %v773 = vsel %vm124, %v768, %v771
    %v774 = vmul.f32 %v773, %v101
    %v776 = vrot.slane %v204, 2
    %v778 = vrot.slane %v200, 2
    %v780 = vsel %vm219, %v776, %v778
    %v782 = vsel %vm221, %v774, 0
    %784 = vmatprep.subr.mxu0 0.0
    %785 = vmatpush1.msra.mxu0 %v208
    %786 = vmatprep.subr.mxu0 0.0
    %787 = vmatpush1.msra.mxu0 %v209
    %788 = vmatprep.subr.mxu0 0.0
    %789 = vmatpush1.msra.mxu0 %v210
    %790 = vmatprep.subr.mxu0 0.0
    %791 = vmatpush1.msra.mxu0 %v211
    %792 = vmatprep.subr.mxu0 0.0
    %793 = vmatpush1.msra.mxu0 %v212
    %794 = vmatprep.subr.mxu0 0.0
    %795 = vmatpush1.msra.mxu0 %v213
    %796 = vmatprep.subr.mxu0 0.0
    %797 = vmatpush1.msra.mxu0 %v214
    %798 = vmatprep.subr.mxu0 0.0
    %799 = vmatpush1.msra.mxu0 %v215
    %800 = vmatprep.subr.mxu0 0.0
    %801 = vmatpush1.msra.mxu0 0.0
    %802 = vmatprep.subr.mxu0 0.0
    %803 = vmatpush1.msra.mxu0 0.0
    %804 = vmatprep.subr.mxu0 0.0
    %805 = vmatpush1.msra.mxu0 0.0
    %806 = vmatprep.subr.mxu0 0.0
    %807 = vmatpush1.msra.mxu0 0.0
    %808 = vmatprep.subr.mxu0 0.0
    %809 = vmatpush1.msra.mxu0 0.0
    %810 = vmatprep.subr.mxu0 0.0
    %811 = vmatpush1.msra.mxu0 0.0
    %812 = vmatprep.subr.mxu0 0.0
    %813 = vmatpush1.msra.mxu0 0.0
    %814 = vmatprep.subr.mxu0 0.0
    %815 = vmatpush1.msra.mxu0 0.0
    %816 = vmatprep.subr.mxu0 0.0
    %817 = vmatpush1.msra.mxu0 0.0
    %818 = vmatprep.subr.mxu0 0.0
    %819 = vmatpush1.msra.mxu0 0.0
    %820 = vmatprep.subr.mxu0 0.0
    %821 = vmatpush1.msra.mxu0 0.0
    %822 = vmatprep.subr.mxu0 0.0
    %823 = vmatpush1.msra.mxu0 0.0
    %824 = vmatprep.subr.mxu0 0.0
    %825 = vmatpush1.msra.mxu0 0.0
    %826 = vmatprep.subr.mxu0 0.0
    %827 = vmatpush1.msra.mxu0 0.0
    %828 = vmatprep.subr.mxu0 0.0
    %829 = vmatpush1.msra.mxu0 0.0
    %830 = vmatprep.subr.mxu0 0.0
    %831 = vmatpush1.msra.mxu0 0.0
    %832 = vmatprep.subr.mxu0 0.0
    %833 = vmatpush1.msra.mxu0 0.0
    %834 = vmatprep.subr.mxu0 0.0
    %835 = vmatpush1.msra.mxu0 0.0
    %836 = vmatprep.subr.mxu0 0.0
    %837 = vmatpush1.msra.mxu0 0.0
    %838 = vmatprep.subr.mxu0 0.0
    %839 = vmatpush1.msra.mxu0 0.0
    %840 = vmatprep.subr.mxu0 0.0
    %841 = vmatpush1.msra.mxu0 0.0
    %842 = vmatprep.subr.mxu0 0.0
    %843 = vmatpush1.msra.mxu0 0.0
    %844 = vmatprep.subr.mxu0 0.0
    %845 = vmatpush1.msra.mxu0 0.0
    %846 = vmatprep.subr.mxu0 0.0
    %847 = vmatpush1.msra.mxu0 0.0
    %848 = vmatprep.mubr.f32.mxu0 0.0
    %849 = vmatmul.mubr.f32.gmra.mrb[0].mxu0 %v782
    %v850 = vpop.f32.mrb[0].mxu0
    %v851 = vadd.f32 0.0, %v850
    %v852 = vpop.f32.mrb[0].mxu0
    %853 = vdwg.mxu0
    %v854 = vadd.f32 %v780, %v851
    %v855 = vxor.u32 %v854, 2147483648
    %v856 = vmul.f32 %v855, 1.442695
    %v857 = vpow.pop %v856
    %v858 = vadd.f32 %v857, 1.0
    %v859 = vrcp.pop %v858
    %v860 = vmul.f32 1.0, %v859
    %v861 = vtanh.pop %v854
    %v862 = vmul.f32 %v860, %v759
    %864 = vrot.lane.b32.xlu0 %v861, 32
    %v865 = vpop.permute.xlu0 %864
    %v867 = vmul.f32 %v860, %v865
    %869 = vrot.lane.b32.xlu0 %v867, 32
    %v870 = vpop.permute.xlu0 %869
    %v872 = vadd.f32 %v862, %v870
    %v873 = vtanh.pop %v872
    %875 = vrot.lane.b32.xlu0 %v873, 32
    %v876 = vpop.permute.xlu0 %875
    %v878 = vmul.f32 %v860, %v876
    %880 = vrot.lane.b32.xlu0 %v878, 64
    %v881 = vpop.permute.xlu0 %880
    %883 = vrot.lane.b32.xlu0 %v878, 96
    %v884 = vpop.permute.xlu0 %883
    %v886 = vsel %vm124, %v881, %v884
    %v887 = vmul.f32 %v886, %v101
    %v888 = vrot.slane %v204, 4
    %v890 = vsel %vm219, %v888, %v200
    %v892 = vsel %vm221, %v887, 0
    %894 = vmatprep.subr.mxu0 0.0
    %895 = vmatpush1.msra.mxu0 %v208
    %896 = vmatprep.subr.mxu0 0.0
    %897 = vmatpush1.msra.mxu0 %v209
    %898 = vmatprep.subr.mxu0 0.0
    %899 = vmatpush1.msra.mxu0 %v210
    %900 = vmatprep.subr.mxu0 0.0
    %901 = vmatpush1.msra.mxu0 %v211
    %902 = vmatprep.subr.mxu0 0.0
    %903 = vmatpush1.msra.mxu0 %v212
    %904 = vmatprep.subr.mxu0 0.0
    %905 = vmatpush1.msra.mxu0 %v213
    %906 = vmatprep.subr.mxu0 0.0
    %907 = vmatpush1.msra.mxu0 %v214
    %908 = vmatprep.subr.mxu0 0.0
    %909 = vmatpush1.msra.mxu0 %v215
    %910 = vmatprep.subr.mxu0 0.0
    %911 = vmatpush1.msra.mxu0 0.0
    %912 = vmatprep.subr.mxu0 0.0
    %913 = vmatpush1.msra.mxu0 0.0
    %914 = vmatprep.subr.mxu0 0.0
    %915 = vmatpush1.msra.mxu0 0.0
    %916 = vmatprep.subr.mxu0 0.0
    %917 = vmatpush1.msra.mxu0 0.0
    %918 = vmatprep.subr.mxu0 0.0
    %919 = vmatpush1.msra.mxu0 0.0
    %920 = vmatprep.subr.mxu0 0.0
    %921 = vmatpush1.msra.mxu0 0.0
    %922 = vmatprep.subr.mxu0 0.0
    %923 = vmatpush1.msra.mxu0 0.0
    %924 = vmatprep.subr.mxu0 0.0
    %925 = vmatpush1.msra.mxu0 0.0
    %926 = vmatprep.subr.mxu0 0.0
    %927 = vmatpush1.msra.mxu0 0.0
    %928 = vmatprep.subr.mxu0 0.0
    %929 = vmatpush1.msra.mxu0 0.0
    %930 = vmatprep.subr.mxu0 0.0
    %931 = vmatpush1.msra.mxu0 0.0
    %932 = vmatprep.subr.mxu0 0.0
    %933 = vmatpush1.msra.mxu0 0.0
    %934 = vmatprep.subr.mxu0 0.0
    %935 = vmatpush1.msra.mxu0 0.0
    %936 = vmatprep.subr.mxu0 0.0
    %937 = vmatpush1.msra.mxu0 0.0
    %938 = vmatprep.subr.mxu0 0.0
    %939 = vmatpush1.msra.mxu0 0.0
    %940 = vmatprep.subr.mxu0 0.0
    %941 = vmatpush1.msra.mxu0 0.0
    %942 = vmatprep.subr.mxu0 0.0
    %943 = vmatpush1.msra.mxu0 0.0
    %944 = vmatprep.subr.mxu0 0.0
    %945 = vmatpush1.msra.mxu0 0.0
    %946 = vmatprep.subr.mxu0 0.0
    %947 = vmatpush1.msra.mxu0 0.0
    %948 = vmatprep.subr.mxu0 0.0
    %949 = vmatpush1.msra.mxu0 0.0
    %950 = vmatprep.subr.mxu0 0.0
    %951 = vmatpush1.msra.mxu0 0.0
    %952 = vmatprep.subr.mxu0 0.0
    %953 = vmatpush1.msra.mxu0 0.0
    %954 = vmatprep.subr.mxu0 0.0
    %955 = vmatpush1.msra.mxu0 0.0
    %956 = vmatprep.subr.mxu0 0.0
    %957 = vmatpush1.msra.mxu0 0.0
    %958 = vmatprep.mubr.f32.mxu0 0.0
    %959 = vmatmul.mubr.f32.gmra.mrb[0].mxu0 %v892
    %v960 = vpop.f32.mrb[0].mxu0
    %v961 = vadd.f32 0.0, %v960
    %v962 = vpop.f32.mrb[0].mxu0
    %963 = vdwg.mxu0
    %v964 = vadd.f32 %v890, %v961
    %v965 = vxor.u32 %v964, 2147483648
    %v966 = vmul.f32 %v965, 1.442695
    %v967 = vpow.pop %v966
    %v968 = vadd.f32 %v967, 1.0
    %v969 = vrcp.pop %v968
    %v970 = vmul.f32 1.0, %v969
    %v971 = vtanh.pop %v964
    %v972 = vmul.f32 %v970, %v872
    %974 = vrot.lane.b32.xlu0 %v971, 32
    %v975 = vpop.permute.xlu0 %974
    %v977 = vmul.f32 %v970, %v975
    %979 = vrot.lane.b32.xlu0 %v977, 32
    %v980 = vpop.permute.xlu0 %979
    %v982 = vadd.f32 %v972, %v980
    %v983 = vtanh.pop %v982
    %985 = vrot.lane.b32.xlu0 %v983, 32
    %v986 = vpop.permute.xlu0 %985
    %v988 = vmul.f32 %v970, %v986
    %990 = vrot.lane.b32.xlu0 %v988, 64
    %v991 = vpop.permute.xlu0 %990
    %993 = vrot.lane.b32.xlu0 %v988, 96
    %v994 = vpop.permute.xlu0 %993
    %v996 = vsel %vm124, %v991, %v994
    %v997 = vmul.f32 %v996, %v101
    %v998 = vrot.slane %v204, 6
    %v1000 = vrot.slane %v200, 6
    %v1002 = vsel %vm219, %v998, %v1000
    %v1004 = vsel %vm221, %v997, 0
    %1006 = vmatprep.subr.mxu0 0.0
    %1007 = vmatpush1.msra.mxu0 %v208
    %1008 = vmatprep.subr.mxu0 0.0
    %1009 = vmatpush1.msra.mxu0 %v209
    %1010 = vmatprep.subr.mxu0 0.0
    %1011 = vmatpush1.msra.mxu0 %v210
    %1012 = vmatprep.subr.mxu0 0.0
    %1013 = vmatpush1.msra.mxu0 %v211
    %1014 = vmatprep.subr.mxu0 0.0
    %1015 = vmatpush1.msra.mxu0 %v212
    %1016 = vmatprep.subr.mxu0 0.0
    %1017 = vmatpush1.msra.mxu0 %v213
    %1018 = vmatprep.subr.mxu0 0.0
    %1019 = vmatpush1.msra.mxu0 %v214
    %1020 = vmatprep.subr.mxu0 0.0
    %1021 = vmatpush1.msra.mxu0 %v215
    %1022 = vmatprep.subr.mxu0 0.0
    %1023 = vmatpush1.msra.mxu0 0.0
    %1024 = vmatprep.subr.mxu0 0.0
    %1025 = vmatpush1.msra.mxu0 0.0
    %1026 = vmatprep.subr.mxu0 0.0
    %1027 = vmatpush1.msra.mxu0 0.0
    %1028 = vmatprep.subr.mxu0 0.0
    %1029 = vmatpush1.msra.mxu0 0.0
    %1030 = vmatprep.subr.mxu0 0.0
    %1031 = vmatpush1.msra.mxu0 0.0
    %1032 = vmatprep.subr.mxu0 0.0
    %1033 = vmatpush1.msra.mxu0 0.0
    %1034 = vmatprep.subr.mxu0 0.0
    %1035 = vmatpush1.msra.mxu0 0.0
    %1036 = vmatprep.subr.mxu0 0.0
    %1037 = vmatpush1.msra.mxu0 0.0
    %1038 = vmatprep.subr.mxu0 0.0
    %1039 = vmatpush1.msra.mxu0 0.0
    %1040 = vmatprep.subr.mxu0 0.0
    %1041 = vmatpush1.msra.mxu0 0.0
    %1042 = vmatprep.subr.mxu0 0.0
    %1043 = vmatpush1.msra.mxu0 0.0
    %1044 = vmatprep.subr.mxu0 0.0
    %1045 = vmatpush1.msra.mxu0 0.0
    %1046 = vmatprep.subr.mxu0 0.0
    %1047 = vmatpush1.msra.mxu0 0.0
    %1048 = vmatprep.subr.mxu0 0.0
    %1049 = vmatpush1.msra.mxu0 0.0
    %1050 = vmatprep.subr.mxu0 0.0
    %1051 = vmatpush1.msra.mxu0 0.0
    %1052 = vmatprep.subr.mxu0 0.0
    %1053 = vmatpush1.msra.mxu0 0.0
    %1054 = vmatprep.subr.mxu0 0.0
    %1055 = vmatpush1.msra.mxu0 0.0
    %1056 = vmatprep.subr.mxu0 0.0
    %1057 = vmatpush1.msra.mxu0 0.0
    %1058 = vmatprep.subr.mxu0 0.0
    %1059 = vmatpush1.msra.mxu0 0.0
    %1060 = vmatprep.subr.mxu0 0.0
    %1061 = vmatpush1.msra.mxu0 0.0
    %1062 = vmatprep.subr.mxu0 0.0
    %1063 = vmatpush1.msra.mxu0 0.0
    %1064 = vmatprep.subr.mxu0 0.0
    %1065 = vmatpush1.msra.mxu0 0.0
    %1066 = vmatprep.subr.mxu0 0.0
    %1067 = vmatpush1.msra.mxu0 0.0
    %1068 = vmatprep.subr.mxu0 0.0
    %1069 = vmatpush1.msra.mxu0 0.0
    %1070 = vmatprep.mubr.f32.mxu0 0.0
    %1071 = vmatmul.mubr.f32.gmra.mrb[0].mxu0 %v1004
    %v1072 = vpop.f32.mrb[0].mxu0
    %v1073 = vadd.f32 0.0, %v1072
    %v1074 = vpop.f32.mrb[0].mxu0
    %1075 = vdwg.mxu0
    %v1076 = vadd.f32 %v1002, %v1073
    %v1077 = vxor.u32 %v1076, 2147483648
    %v1078 = vmul.f32 %v1077, 1.442695
    %v1079 = vpow.pop %v1078
    %v1080 = vadd.f32 %v1079, 1.0
    %v1081 = vrcp.pop %v1080
    %v1082 = vmul.f32 1.0, %v1081
    %v1083 = vtanh.pop %v1076
    %v1084 = vmul.f32 %v1082, %v982
    %1086 = vrot.lane.b32.xlu0 %v1083, 32
    %v1087 = vpop.permute.xlu0 %1086
    %v1089 = vmul.f32 %v1082, %v1087
    %1091 = vrot.lane.b32.xlu0 %v1089, 32
    %v1092 = vpop.permute.xlu0 %1091
    %v1094 = vadd.f32 %v1084, %v1092
    %v1095 = vtanh.pop %v1094
    %1097 = vrot.lane.b32.xlu0 %v1095, 32
    %v1098 = vpop.permute.xlu0 %1097
    %v1100 = vmul.f32 %v1082, %v1098
    %v1102 = vrot.slane %v1100, 2
    %1103 = vrot.lane.b32.xlu0 %v1102, 96
    %v1104 = vpop.permute.xlu0 %1103
    %v1106 = vsel %vm124, %v322, %v1104
    %v1107 = vrot.slane %v988, 2
    %1108 = vrot.lane.b32.xlu0 %v1107, 96
    %v1109 = vpop.permute.xlu0 %1108
    %v1111 = vsel %vm124, %v435, %v1109
    %v1112 = vrot.slane %v878, 2
    %1113 = vrot.lane.b32.xlu0 %v1112, 96
    %v1114 = vpop.permute.xlu0 %1113
    %v1116 = vsel %vm124, %v545, %v1114
    %v1117 = vrot.slane %v765, 2
    %1118 = vrot.lane.b32.xlu0 %v1117, 96
    %v1119 = vpop.permute.xlu0 %1118
    %v1121 = vsel %vm124, %v657, %v1119
    %v1122 = vrot.slane %v654, 2
    %1123 = vrot.lane.b32.xlu0 %v1122, 96
    %v1124 = vpop.permute.xlu0 %1123
    %v1126 = vsel %vm124, %v768, %v1124
    %v1127 = vrot.slane %v542, 2
    %1128 = vrot.lane.b32.xlu0 %v1127, 96
    %v1129 = vpop.permute.xlu0 %1128
    %v1131 = vsel %vm124, %v881, %v1129
    %v1132 = vrot.slane %v432, 2
    %1133 = vrot.lane.b32.xlu0 %v1132, 96
    %v1134 = vpop.permute.xlu0 %1133
    %v1136 = vsel %vm124, %v991, %v1134
    %1137 = vrot.lane.b32.xlu0 %v1100, 64
    %v1138 = vpop.permute.xlu0 %1137
    %v1140 = vrot.slane %v319, 2
    %1141 = vrot.lane.b32.xlu0 %v1140, 96
    %v1142 = vpop.permute.xlu0 %1141
    %v1144 = vsel %vm124, %v1138, %v1142
    %v1146 = vrot.slane %v1111, 6
    %v1149 = vrot.slane %v1116, 4
    %v1152 = vrot.slane %v1121, 2
    %v1155 = vrot.slane %v1131, 6
    %v1158 = vrot.slane %v1136, 4
    %v1161 = vrot.slane %v1144, 2
    %v1163 = vsel %vm219, %v1106, %v1146
    %vm1164 = vcmask 1043456
    %v1165 = vsel %vm1164, %v1163, %v1149
    %vm1166 = vcmask 1045504
    %v1167 = vsel %vm1166, %v1165, %v1152
    %v1168 = vsel %vm219, %v1126, %v1155
    %v1169 = vsel %vm1164, %v1168, %v1158
    %v1170 = vsel %vm1166, %v1169, %v1161
    %v1171 = vld [vmem:[#allocation8] sm:$0xff]
    %v1172 = vld [vmem:[#allocation8 + $0x8] sm:$0xff]
    %v1173 = vld [vmem:[#allocation8 + $0x10] sm:$0xff]
    %v1174 = vld [vmem:[#allocation8 + $0x18] sm:$0xff]
    %v1175 = vld [vmem:[#allocation8 + $0x20] sm:$0xff]
    %v1176 = vld [vmem:[#allocation8 + $0x28] sm:$0xff]
    %v1177 = vld [vmem:[#allocation8 + $0x30] sm:$0xff]
    %v1178 = vld [vmem:[#allocation8 + $0x38] sm:$0xff]
    %v1179 = vld [vmem:[#allocation8 + $0x40] sm:$0xff]
    %v1180 = vld [vmem:[#allocation8 + $0x48] sm:$0xff]
    %v1181 = vld [vmem:[#allocation8 + $0x50] sm:$0xff]
    %v1182 = vld [vmem:[#allocation8 + $0x58] sm:$0xff]
    %v1183 = vld [vmem:[#allocation8 + $0x60] sm:$0xff]
    %v1184 = vld [vmem:[#allocation8 + $0x68] sm:$0xff]
    %v1185 = vld [vmem:[#allocation8 + $0x70] sm:$0xff]
    %v1186 = vld [vmem:[#allocation8 + $0x78] sm:$0xff]
    %v1187 = vld [vmem:[%s6] sm:$0x3]
    %v1189 = vlaneseq
    %v1190 = vshrl.u32 %v1189, 7
    %v1191 = vsub.s32 0, %v1190
    %v1192 = vrot.slane %v1187, %v1191
    %v1193 = vlaneseq
    %v1194 = vshrl.u32 %v1193, 7
    %v1195 = vsub.s32 1, %v1194
    %v1196 = vrot.slane %v1187, %v1195
    %v1200 = vsel %vm221, %v1167, 0
    %v1203 = vsel %vm221, %v1170, 0
    %1205 = vmatprep.subr.mxu0 %v1172
    %1206 = vmatpush1.msra.mxu0 %v1171
    %1207 = vmatprep.subr.mxu0 %v1174
    %1208 = vmatpush1.msra.mxu0 %v1173
    %1209 = vmatprep.subr.mxu0 %v1176
    %1210 = vmatpush1.msra.mxu0 %v1175
    %1211 = vmatprep.subr.mxu0 %v1178
    %1212 = vmatpush1.msra.mxu0 %v1177
    %1213 = vmatprep.subr.mxu0 %v1180
    %1214 = vmatpush1.msra.mxu0 %v1179
    %1215 = vmatprep.subr.mxu0 %v1182
    %1216 = vmatpush1.msra.mxu0 %v1181
    %1217 = vmatprep.subr.mxu0 %v1184
    %1218 = vmatpush1.msra.mxu0 %v1183
    %1219 = vmatprep.subr.mxu0 %v1186
    %1220 = vmatpush1.msra.mxu0 %v1185
    %1221 = vmatprep.subr.mxu0 0.0
    %1222 = vmatpush1.msra.mxu0 0.0
    %1223 = vmatprep.subr.mxu0 0.0
    %1224 = vmatpush1.msra.mxu0 0.0
    %1225 = vmatprep.subr.mxu0 0.0
    %1226 = vmatpush1.msra.mxu0 0.0
    %1227 = vmatprep.subr.mxu0 0.0
    %1228 = vmatpush1.msra.mxu0 0.0
    %1229 = vmatprep.subr.mxu0 0.0
    %1230 = vmatpush1.msra.mxu0 0.0
    %1231 = vmatprep.subr.mxu0 0.0
    %1232 = vmatpush1.msra.mxu0 0.0
    %1233 = vmatprep.subr.mxu0 0.0
    %1234 = vmatpush1.msra.mxu0 0.0
    %1235 = vmatprep.subr.mxu0 0.0
    %1236 = vmatpush1.msra.mxu0 0.0
    %1237 = vmatprep.subr.mxu0 0.0
    %1238 = vmatpush1.msra.mxu0 0.0
    %1239 = vmatprep.subr.mxu0 0.0
    %1240 = vmatpush1.msra.mxu0 0.0
    %1241 = vmatprep.subr.mxu0 0.0
    %1242 = vmatpush1.msra.mxu0 0.0
    %1243 = vmatprep.subr.mxu0 0.0
    %1244 = vmatpush1.msra.mxu0 0.0
    %1245 = vmatprep.subr.mxu0 0.0
    %1246 = vmatpush1.msra.mxu0 0.0
    %1247 = vmatprep.subr.mxu0 0.0
    %1248 = vmatpush1.msra.mxu0 0.0
    %1249 = vmatprep.subr.mxu0 0.0
    %1250 = vmatpush1.msra.mxu0 0.0
    %1251 = vmatprep.subr.mxu0 0.0
    %1252 = vmatpush1.msra.mxu0 0.0
    %1253 = vmatprep.subr.mxu0 0.0
    %1254 = vmatpush1.msra.mxu0 0.0
    %1255 = vmatprep.subr.mxu0 0.0
    %1256 = vmatpush1.msra.mxu0 0.0
    %1257 = vmatprep.subr.mxu0 0.0
    %1258 = vmatpush1.msra.mxu0 0.0
    %1259 = vmatprep.subr.mxu0 0.0
    %1260 = vmatpush1.msra.mxu0 0.0
    %1261 = vmatprep.subr.mxu0 0.0
    %1262 = vmatpush1.msra.mxu0 0.0
    %1263 = vmatprep.subr.mxu0 0.0
    %1264 = vmatpush1.msra.mxu0 0.0
    %1265 = vmatprep.subr.mxu0 0.0
    %1266 = vmatpush1.msra.mxu0 0.0
    %1267 = vmatprep.subr.mxu0 0.0
    %1268 = vmatpush1.msra.mxu0 0.0
    %1269 = vmatprep.mubr.f32.mxu0 0.0
    %1270 = vmatmul.mubr.f32.gmra.mrb[0].mxu0 %v1200
    %v1271 = vpop.f32.mrb[0].mxu0
    %v1272 = vadd.f32 %v1192, %v1271
    %v1273 = vpop.f32.mrb[0].mxu0
    %v1274 = vadd.f32 %v1196, %v1273
    %1275 = vmatprep.mubr.f32.mxu0 0.0
    %1276 = vmatmul.mubr.f32.gmra.mrb[0].mxu0 %v1203
    %v1277 = vpop.f32.mrb[0].mxu0
    %v1278 = vadd.f32 %v1192, %v1277
    %v1279 = vpop.f32.mrb[0].mxu0
    %v1280 = vadd.f32 %v1196, %v1279
    %1281 = vdwg.mxu0
    %v1282 = vld [vmem:[#allocation9] sm:$0xff]
    %v1283 = vld [vmem:[#allocation9 + $0x8] sm:$0xff]
    %v1284 = vld [vmem:[#allocation9 + $0x10] sm:$0xff]
    %v1285 = vld [vmem:[#allocation9 + $0x18] sm:$0xff]
    %v1286 = vld [vmem:[#allocation9 + $0x20] sm:$0xff]
    %v1287 = vld [vmem:[#allocation9 + $0x28] sm:$0xff]
    %v1288 = vld [vmem:[#allocation9 + $0x30] sm:$0xff]
    %v1289 = vld [vmem:[#allocation9 + $0x38] sm:$0xff]
    %v1291 = vrot.slane %v1280, 4
    %v1293 = vsel %vm219, %v1272, %v1291
    %1294 = vmatprep.subr.mxu0 0.0
    %1295 = vmatpush1.msra.mxu0 %v1282
    %1296 = vmatprep.subr.mxu0 0.0
    %1297 = vmatpush1.msra.mxu0 %v1283
    %1298 = vmatprep.subr.mxu0 0.0
    %1299 = vmatpush1.msra.mxu0 %v1284
    %1300 = vmatprep.subr.mxu0 0.0
    %1301 = vmatpush1.msra.mxu0 %v1285
    %1302 = vmatprep.subr.mxu0 0.0
    %1303 = vmatpush1.msra.mxu0 %v1286
    %1304 = vmatprep.subr.mxu0 0.0
    %1305 = vmatpush1.msra.mxu0 %v1287
    %1306 = vmatprep.subr.mxu0 0.0
    %1307 = vmatpush1.msra.mxu0 %v1288
    %1308 = vmatprep.subr.mxu0 0.0
    %1309 = vmatpush1.msra.mxu0 %v1289
    %1310 = vmatprep.subr.mxu0 0.0
    %1311 = vmatpush1.msra.mxu0 0.0
    %1312 = vmatprep.subr.mxu0 0.0
    %1313 = vmatpush1.msra.mxu0 0.0
    %1314 = vmatprep.subr.mxu0 0.0
    %1315 = vmatpush1.msra.mxu0 0.0
    %1316 = vmatprep.subr.mxu0 0.0
    %1317 = vmatpush1.msra.mxu0 0.0
    %1318 = vmatprep.subr.mxu0 0.0
    %1319 = vmatpush1.msra.mxu0 0.0
    %1320 = vmatprep.subr.mxu0 0.0
    %1321 = vmatpush1.msra.mxu0 0.0
    %1322 = vmatprep.subr.mxu0 0.0
    %1323 = vmatpush1.msra.mxu0 0.0
    %1324 = vmatprep.subr.mxu0 0.0
    %1325 = vmatpush1.msra.mxu0 0.0
    %1326 = vmatprep.subr.mxu0 0.0
    %1327 = vmatpush1.msra.mxu0 0.0
    %1328 = vmatprep.subr.mxu0 0.0
    %1329 = vmatpush1.msra.mxu0 0.0
    %1330 = vmatprep.subr.mxu0 0.0
    %1331 = vmatpush1.msra.mxu0 0.0
    %1332 = vmatprep.subr.mxu0 0.0
    %1333 = vmatpush1.msra.mxu0 0.0
    %1334 = vmatprep.subr.mxu0 0.0
    %1335 = vmatpush1.msra.mxu0 0.0
    %1336 = vmatprep.subr.mxu0 0.0
    %1337 = vmatpush1.msra.mxu0 0.0
    %1338 = vmatprep.subr.mxu0 0.0
    %1339 = vmatpush1.msra.mxu0 0.0
    %1340 = vmatprep.subr.mxu0 0.0
    %1341 = vmatpush1.msra.mxu0 0.0
    %1342 = vmatprep.subr.mxu0 0.0
    %1343 = vmatpush1.msra.mxu0 0.0
    %1344 = vmatprep.subr.mxu0 0.0
    %1345 = vmatpush1.msra.mxu0 0.0
    %1346 = vmatprep.subr.mxu0 0.0
    %1347 = vmatpush1.msra.mxu0 0.0
    %1348 = vmatprep.subr.mxu0 0.0
    %1349 = vmatpush1.msra.mxu0 0.0
    %1350 = vmatprep.subr.mxu0 0.0
    %1351 = vmatpush1.msra.mxu0 0.0
    %1352 = vmatprep.subr.mxu0 0.0
    %1353 = vmatpush1.msra.mxu0 0.0
    %1354 = vmatprep.subr.mxu0 0.0
    %1355 = vmatpush1.msra.mxu0 0.0
    %1356 = vmatprep.subr.mxu0 0.0
    %1357 = vmatpush1.msra.mxu0 0.0
    %1358 = vmatprep.mubr.f32.mxu0 0.0
    %1359 = vmatmul.mubr.f32.gmra.mrb[0].mxu0 %v223
    %v1360 = vpop.f32.mrb[0].mxu0
    %v1361 = vadd.f32 0.0, %v1360
    %v1362 = vpop.f32.mrb[0].mxu0
    %1363 = vdwg.mxu0
    %v1364 = vadd.f32 %v1293, %v1361
    %v1365 = vxor.u32 %v1364, 2147483648
    %v1366 = vmul.f32 %v1365, 1.442695
    %v1367 = vpow.pop %v1366
    %v1368 = vadd.f32 %v1367, 1.0
    %v1369 = vrcp.pop %v1368
    %v1370 = vmul.f32 1.0, %v1369
    %v1371 = vtanh.pop %v1364
    %v1372 = vmul.f32 %v1370, 0.0
    %1374 = vrot.lane.b32.xlu0 %v1371, 32
    %v1375 = vpop.permute.xlu0 %1374
    %v1377 = vmul.f32 %v1370, %v1375
    %1379 = vrot.lane.b32.xlu0 %v1377, 32
    %v1380 = vpop.permute.xlu0 %1379
    %v1382 = vadd.f32 %v1372, %v1380
    %v1383 = vtanh.pop %v1382
    %1385 = vrot.lane.b32.xlu0 %v1383, 32
    %v1386 = vpop.permute.xlu0 %1385
    %v1388 = vmul.f32 %v1370, %v1386
    %1390 = vrot.lane.b32.xlu0 %v1388, 64
    %v1391 = vpop.permute.xlu0 %1390
    %1393 = vrot.lane.b32.xlu0 %v1388, 96
    %v1394 = vpop.permute.xlu0 %1393
    %v1396 = vsel %vm124, %v1391, %v1394
    %v1397 = vmul.f32 %v1396, %v101
    %v1399 = vrot.slane %v1272, 2
    %v1401 = vrot.slane %v1280, 2
    %v1403 = vsel %vm219, %v1399, %v1401
    %v1405 = vsel %vm221, %v1397, 0
    %1407 = vmatprep.subr.mxu0 0.0
    %1408 = vmatpush1.msra.mxu0 %v1282
    %1409 = vmatprep.subr.mxu0 0.0
    %1410 = vmatpush1.msra.mxu0 %v1283
    %1411 = vmatprep.subr.mxu0 0.0
    %1412 = vmatpush1.msra.mxu0 %v1284
    %1413 = vmatprep.subr.mxu0 0.0
    %1414 = vmatpush1.msra.mxu0 %v1285
    %1415 = vmatprep.subr.mxu0 0.0
    %1416 = vmatpush1.msra.mxu0 %v1286
    %1417 = vmatprep.subr.mxu0 0.0
    %1418 = vmatpush1.msra.mxu0 %v1287
    %1419 = vmatprep.subr.mxu0 0.0
    %1420 = vmatpush1.msra.mxu0 %v1288
    %1421 = vmatprep.subr.mxu0 0.0
    %1422 = vmatpush1.msra.mxu0 %v1289
    %1423 = vmatprep.subr.mxu0 0.0
    %1424 = vmatpush1.msra.mxu0 0.0
    %1425 = vmatprep.subr.mxu0 0.0
    %1426 = vmatpush1.msra.mxu0 0.0
    %1427 = vmatprep.subr.mxu0 0.0
    %1428 = vmatpush1.msra.mxu0 0.0
    %1429 = vmatprep.subr.mxu0 0.0
    %1430 = vmatpush1.msra.mxu0 0.0
    %1431 = vmatprep.subr.mxu0 0.0
    %1432 = vmatpush1.msra.mxu0 0.0
    %1433 = vmatprep.subr.mxu0 0.0
    %1434 = vmatpush1.msra.mxu0 0.0
    %1435 = vmatprep.subr.mxu0 0.0
    %1436 = vmatpush1.msra.mxu0 0.0
    %1437 = vmatprep.subr.mxu0 0.0
    %1438 = vmatpush1.msra.mxu0 0.0
    %1439 = vmatprep.subr.mxu0 0.0
    %1440 = vmatpush1.msra.mxu0 0.0
    %1441 = vmatprep.subr.mxu0 0.0
    %1442 = vmatpush1.msra.mxu0 0.0
    %1443 = vmatprep.subr.mxu0 0.0
    %1444 = vmatpush1.msra.mxu0 0.0
    %1445 = vmatprep.subr.mxu0 0.0
    %1446 = vmatpush1.msra.mxu0 0.0
    %1447 = vmatprep.subr.mxu0 0.0
    %1448 = vmatpush1.msra.mxu0 0.0
    %1449 = vmatprep.subr.mxu0 0.0
    %1450 = vmatpush1.msra.mxu0 0.0
    %1451 = vmatprep.subr.mxu0 0.0
    %1452 = vmatpush1.msra.mxu0 0.0
    %1453 = vmatprep.subr.mxu0 0.0
    %1454 = vmatpush1.msra.mxu0 0.0
    %1455 = vmatprep.subr.mxu0 0.0
    %1456 = vmatpush1.msra.mxu0 0.0
    %1457 = vmatprep.subr.mxu0 0.0
    %1458 = vmatpush1.msra.mxu0 0.0
    %1459 = vmatprep.subr.mxu0 0.0
    %1460 = vmatpush1.msra.mxu0 0.0
    %1461 = vmatprep.subr.mxu0 0.0
    %1462 = vmatpush1.msra.mxu0 0.0
    %1463 = vmatprep.subr.mxu0 0.0
    %1464 = vmatpush1.msra.mxu0 0.0
    %1465 = vmatprep.subr.mxu0 0.0
    %1466 = vmatpush1.msra.mxu0 0.0
    %1467 = vmatprep.subr.mxu0 0.0
    %1468 = vmatpush1.msra.mxu0 0.0
    %1469 = vmatprep.subr.mxu0 0.0
    %1470 = vmatpush1.msra.mxu0 0.0
    %1471 = vmatprep.mubr.f32.mxu0 0.0
    %1472 = vmatmul.mubr.f32.gmra.mrb[0].mxu0 %v1405
    %v1473 = vpop.f32.mrb[0].mxu0
    %v1474 = vadd.f32 0.0, %v1473
    %v1475 = vpop.f32.mrb[0].mxu0
    %1476 = vdwg.mxu0
    %v1477 = vadd.f32 %v1403, %v1474
    %v1478 = vxor.u32 %v1477, 2147483648
    %v1479 = vmul.f32 %v1478, 1.442695
    %v1480 = vpow.pop %v1479
    %v1481 = vadd.f32 %v1480, 1.0
    %v1482 = vrcp.pop %v1481
    %v1483 = vmul.f32 1.0, %v1482
    %v1484 = vtanh.pop %v1477
    %v1485 = vmul.f32 %v1483, %v1382
    %1487 = vrot.lane.b32.xlu0 %v1484, 32
    %v1488 = vpop.permute.xlu0 %1487
    %v1490 = vmul.f32 %v1483, %v1488
    %1492 = vrot.lane.b32.xlu0 %v1490, 32
    %v1493 = vpop.permute.xlu0 %1492
    %v1495 = vadd.f32 %v1485, %v1493
    %v1496 = vtanh.pop %v1495
    %1498 = vrot.lane.b32.xlu0 %v1496, 32
    %v1499 = vpop.permute.xlu0 %1498
    %v1501 = vmul.f32 %v1483, %v1499
    %1503 = vrot.lane.b32.xlu0 %v1501, 64
    %v1504 = vpop.permute.xlu0 %1503
    %1506 = vrot.lane.b32.xlu0 %v1501, 96
    %v1507 = vpop.permute.xlu0 %1506
    %v1509 = vsel %vm124, %v1504, %v1507
    %v1510 = vmul.f32 %v1509, %v101
    %v1511 = vrot.slane %v1272, 4
    %v1513 = vsel %vm219, %v1511, %v1280
    %v1515 = vsel %vm221, %v1510, 0
    %1517 = vmatprep.subr.mxu0 0.0
    %1518 = vmatpush1.msra.mxu0 %v1282
    %1519 = vmatprep.subr.mxu0 0.0
    %1520 = vmatpush1.msra.mxu0 %v1283
    %1521 = vmatprep.subr.mxu0 0.0
    %1522 = vmatpush1.msra.mxu0 %v1284
    %1523 = vmatprep.subr.mxu0 0.0
    %1524 = vmatpush1.msra.mxu0 %v1285
    %1525 = vmatprep.subr.mxu0 0.0
    %1526 = vmatpush1.msra.mxu0 %v1286
    %1527 = vmatprep.subr.mxu0 0.0
    %1528 = vmatpush1.msra.mxu0 %v1287
    %1529 = vmatprep.subr.mxu0 0.0
    %1530 = vmatpush1.msra.mxu0 %v1288
    %1531 = vmatprep.subr.mxu0 0.0
    %1532 = vmatpush1.msra.mxu0 %v1289
    %1533 = vmatprep.subr.mxu0 0.0
    %1534 = vmatpush1.msra.mxu0 0.0
    %1535 = vmatprep.subr.mxu0 0.0
    %1536 = vmatpush1.msra.mxu0 0.0
    %1537 = vmatprep.subr.mxu0 0.0
    %1538 = vmatpush1.msra.mxu0 0.0
    %1539 = vmatprep.subr.mxu0 0.0
    %1540 = vmatpush1.msra.mxu0 0.0
    %1541 = vmatprep.subr.mxu0 0.0
    %1542 = vmatpush1.msra.mxu0 0.0
    %1543 = vmatprep.subr.mxu0 0.0
    %1544 = vmatpush1.msra.mxu0 0.0
    %1545 = vmatprep.subr.mxu0 0.0
    %1546 = vmatpush1.msra.mxu0 0.0
    %1547 = vmatprep.subr.mxu0 0.0
    %1548 = vmatpush1.msra.mxu0 0.0
    %1549 = vmatprep.subr.mxu0 0.0
    %1550 = vmatpush1.msra.mxu0 0.0
    %1551 = vmatprep.subr.mxu0 0.0
    %1552 = vmatpush1.msra.mxu0 0.0
    %1553 = vmatprep.subr.mxu0 0.0
    %1554 = vmatpush1.msra.mxu0 0.0
    %1555 = vmatprep.subr.mxu0 0.0
    %1556 = vmatpush1.msra.mxu0 0.0
    %1557 = vmatprep.subr.mxu0 0.0
    %1558 = vmatpush1.msra.mxu0 0.0
    %1559 = vmatprep.subr.mxu0 0.0
    %1560 = vmatpush1.msra.mxu0 0.0
    %1561 = vmatprep.subr.mxu0 0.0
    %1562 = vmatpush1.msra.mxu0 0.0
    %1563 = vmatprep.subr.mxu0 0.0
    %1564 = vmatpush1.msra.mxu0 0.0
    %1565 = vmatprep.subr.mxu0 0.0
    %1566 = vmatpush1.msra.mxu0 0.0
    %1567 = vmatprep.subr.mxu0 0.0
    %1568 = vmatpush1.msra.mxu0 0.0
    %1569 = vmatprep.subr.mxu0 0.0
    %1570 = vmatpush1.msra.mxu0 0.0
    %1571 = vmatprep.subr.mxu0 0.0
    %1572 = vmatpush1.msra.mxu0 0.0
    %1573 = vmatprep.subr.mxu0 0.0
    %1574 = vmatpush1.msra.mxu0 0.0
    %1575 = vmatprep.subr.mxu0 0.0
    %1576 = vmatpush1.msra.mxu0 0.0
    %1577 = vmatprep.subr.mxu0 0.0
    %1578 = vmatpush1.msra.mxu0 0.0
    %1579 = vmatprep.subr.mxu0 0.0
    %1580 = vmatpush1.msra.mxu0 0.0
    %1581 = vmatprep.mubr.f32.mxu0 0.0
    %1582 = vmatmul.mubr.f32.gmra.mrb[0].mxu0 %v1515
    %v1583 = vpop.f32.mrb[0].mxu0
    %v1584 = vadd.f32 0.0, %v1583
    %v1585 = vpop.f32.mrb[0].mxu0
    %1586 = vdwg.mxu0
    %v1587 = vadd.f32 %v1513, %v1584
    %v1588 = vxor.u32 %v1587, 2147483648
    %v1589 = vmul.f32 %v1588, 1.442695
    %v1590 = vpow.pop %v1589
    %v1591 = vadd.f32 %v1590, 1.0
    %v1592 = vrcp.pop %v1591
    %v1593 = vmul.f32 1.0, %v1592
    %v1594 = vtanh.pop %v1587
    %v1595 = vmul.f32 %v1593, %v1495
    %1597 = vrot.lane.b32.xlu0 %v1594, 32
    %v1598 = vpop.permute.xlu0 %1597
    %v1600 = vmul.f32 %v1593, %v1598
    %1602 = vrot.lane.b32.xlu0 %v1600, 32
    %v1603 = vpop.permute.xlu0 %1602
    %v1605 = vadd.f32 %v1595, %v1603
    %v1606 = vtanh.pop %v1605
    %1608 = vrot.lane.b32.xlu0 %v1606, 32
    %v1609 = vpop.permute.xlu0 %1608
    %v1611 = vmul.f32 %v1593, %v1609
    %1613 = vrot.lane.b32.xlu0 %v1611, 64
    %v1614 = vpop.permute.xlu0 %1613
    %1616 = vrot.lane.b32.xlu0 %v1611, 96
    %v1617 = vpop.permute.xlu0 %1616
    %v1619 = vsel %vm124, %v1614, %v1617
    %v1620 = vmul.f32 %v1619, %v101
    %v1621 = vrot.slane %v1272, 6
    %v1623 = vrot.slane %v1280, 6
    %v1625 = vsel %vm219, %v1621, %v1623
    %v1627 = vsel %vm221, %v1620, 0
    %1629 = vmatprep.subr.mxu0 0.0
    %1630 = vmatpush1.msra.mxu0 %v1282
    %1631 = vmatprep.subr.mxu0 0.0
    %1632 = vmatpush1.msra.mxu0 %v1283
    %1633 = vmatprep.subr.mxu0 0.0
    %1634 = vmatpush1.msra.mxu0 %v1284
    %1635 = vmatprep.subr.mxu0 0.0
    %1636 = vmatpush1.msra.mxu0 %v1285
    %1637 = vmatprep.subr.mxu0 0.0
    %1638 = vmatpush1.msra.mxu0 %v1286
    %1639 = vmatprep.subr.mxu0 0.0
    %1640 = vmatpush1.msra.mxu0 %v1287
    %1641 = vmatprep.subr.mxu0 0.0
    %1642 = vmatpush1.msra.mxu0 %v1288
    %1643 = vmatprep.subr.mxu0 0.0
    %1644 = vmatpush1.msra.mxu0 %v1289
    %1645 = vmatprep.subr.mxu0 0.0
    %1646 = vmatpush1.msra.mxu0 0.0
    %1647 = vmatprep.subr.mxu0 0.0
    %1648 = vmatpush1.msra.mxu0 0.0
    %1649 = vmatprep.subr.mxu0 0.0
    %1650 = vmatpush1.msra.mxu0 0.0
    %1651 = vmatprep.subr.mxu0 0.0
    %1652 = vmatpush1.msra.mxu0 0.0
    %1653 = vmatprep.subr.mxu0 0.0
    %1654 = vmatpush1.msra.mxu0 0.0
    %1655 = vmatprep.subr.mxu0 0.0
    %1656 = vmatpush1.msra.mxu0 0.0
    %1657 = vmatprep.subr.mxu0 0.0
    %1658 = vmatpush1.msra.mxu0 0.0
    %1659 = vmatprep.subr.mxu0 0.0
    %1660 = vmatpush1.msra.mxu0 0.0
    %1661 = vmatprep.subr.mxu0 0.0
    %1662 = vmatpush1.msra.mxu0 0.0
    %1663 = vmatprep.subr.mxu0 0.0
    %1664 = vmatpush1.msra.mxu0 0.0
    %1665 = vmatprep.subr.mxu0 0.0
    %1666 = vmatpush1.msra.mxu0 0.0
    %1667 = vmatprep.subr.mxu0 0.0
    %1668 = vmatpush1.msra.mxu0 0.0
    %1669 = vmatprep.subr.mxu0 0.0
    %1670 = vmatpush1.msra.mxu0 0.0
    %1671 = vmatprep.subr.mxu0 0.0
    %1672 = vmatpush1.msra.mxu0 0.0
    %1673 = vmatprep.subr.mxu0 0.0
    %1674 = vmatpush1.msra.mxu0 0.0
    %1675 = vmatprep.subr.mxu0 0.0
    %1676 = vmatpush1.msra.mxu0 0.0
    %1677 = vmatprep.subr.mxu0 0.0
    %1678 = vmatpush1.msra.mxu0 0.0
    %1679 = vmatprep.subr.mxu0 0.0
    %1680 = vmatpush1.msra.mxu0 0.0
    %1681 = vmatprep.subr.mxu0 0.0
    %1682 = vmatpush1.msra.mxu0 0.0
    %1683 = vmatprep.subr.mxu0 0.0
    %1684 = vmatpush1.msra.mxu0 0.0
    %1685 = vmatprep.subr.mxu0 0.0
    %1686 = vmatpush1.msra.mxu0 0.0
    %1687 = vmatprep.subr.mxu0 0.0
    %1688 = vmatpush1.msra.mxu0 0.0
    %1689 = vmatprep.subr.mxu0 0.0
    %1690 = vmatpush1.msra.mxu0 0.0
    %1691 = vmatprep.subr.mxu0 0.0
    %1692 = vmatpush1.msra.mxu0 0.0
    %1693 = vmatprep.mubr.f32.mxu0 0.0
    %1694 = vmatmul.mubr.f32.gmra.mrb[0].mxu0 %v1627
    %v1695 = vpop.f32.mrb[0].mxu0
    %v1696 = vadd.f32 0.0, %v1695
    %v1697 = vpop.f32.mrb[0].mxu0
    %1698 = vdwg.mxu0
    %v1699 = vadd.f32 %v1625, %v1696
    %v1700 = vxor.u32 %v1699, 2147483648
    %v1701 = vmul.f32 %v1700, 1.442695
    %v1702 = vpow.pop %v1701
    %v1703 = vadd.f32 %v1702, 1.0
    %v1704 = vrcp.pop %v1703
    %v1705 = vmul.f32 1.0, %v1704
    %v1706 = vtanh.pop %v1699
    %v1707 = vmul.f32 %v1705, %v1605
    %1709 = vrot.lane.b32.xlu0 %v1706, 32
    %v1710 = vpop.permute.xlu0 %1709
    %v1712 = vmul.f32 %v1705, %v1710
    %1714 = vrot.lane.b32.xlu0 %v1712, 32
    %v1715 = vpop.permute.xlu0 %1714
    %v1717 = vadd.f32 %v1707, %v1715
    %v1718 = vtanh.pop %v1717
    %1720 = vrot.lane.b32.xlu0 %v1718, 32
    %v1721 = vpop.permute.xlu0 %1720
    %v1723 = vmul.f32 %v1705, %v1721
    %1725 = vrot.lane.b32.xlu0 %v1723, 64
    %v1726 = vpop.permute.xlu0 %1725
    %1728 = vrot.lane.b32.xlu0 %v1723, 96
    %v1729 = vpop.permute.xlu0 %1728
    %v1731 = vsel %vm124, %v1726, %v1729
    %v1732 = vmul.f32 %v1731, %v101
    %v1734 = vrot.slane %v1274, 4
    %v1736 = vsel %vm219, %v1278, %v1734
    %v1738 = vsel %vm221, %v1732, 0
    %1740 = vmatprep.subr.mxu0 0.0
    %1741 = vmatpush1.msra.mxu0 %v1282
    %1742 = vmatprep.subr.mxu0 0.0
    %1743 = vmatpush1.msra.mxu0 %v1283
    %1744 = vmatprep.subr.mxu0 0.0
    %1745 = vmatpush1.msra.mxu0 %v1284
    %1746 = vmatprep.subr.mxu0 0.0
    %1747 = vmatpush1.msra.mxu0 %v1285
    %1748 = vmatprep.subr.mxu0 0.0
    %1749 = vmatpush1.msra.mxu0 %v1286
    %1750 = vmatprep.subr.mxu0 0.0
    %1751 = vmatpush1.msra.mxu0 %v1287
    %1752 = vmatprep.subr.mxu0 0.0
    %1753 = vmatpush1.msra.mxu0 %v1288
    %1754 = vmatprep.subr.mxu0 0.0
    %1755 = vmatpush1.msra.mxu0 %v1289
    %1756 = vmatprep.subr.mxu0 0.0
    %1757 = vmatpush1.msra.mxu0 0.0
    %1758 = vmatprep.subr.mxu0 0.0
    %1759 = vmatpush1.msra.mxu0 0.0
    %1760 = vmatprep.subr.mxu0 0.0
    %1761 = vmatpush1.msra.mxu0 0.0
    %1762 = vmatprep.subr.mxu0 0.0
    %1763 = vmatpush1.msra.mxu0 0.0
    %1764 = vmatprep.subr.mxu0 0.0
    %1765 = vmatpush1.msra.mxu0 0.0
    %1766 = vmatprep.subr.mxu0 0.0
    %1767 = vmatpush1.msra.mxu0 0.0
    %1768 = vmatprep.subr.mxu0 0.0
    %1769 = vmatpush1.msra.mxu0 0.0
    %1770 = vmatprep.subr.mxu0 0.0
    %1771 = vmatpush1.msra.mxu0 0.0
    %1772 = vmatprep.subr.mxu0 0.0
    %1773 = vmatpush1.msra.mxu0 0.0
    %1774 = vmatprep.subr.mxu0 0.0
    %1775 = vmatpush1.msra.mxu0 0.0
    %1776 = vmatprep.subr.mxu0 0.0
    %1777 = vmatpush1.msra.mxu0 0.0
    %1778 = vmatprep.subr.mxu0 0.0
    %1779 = vmatpush1.msra.mxu0 0.0
    %1780 = vmatprep.subr.mxu0 0.0
    %1781 = vmatpush1.msra.mxu0 0.0
    %1782 = vmatprep.subr.mxu0 0.0
    %1783 = vmatpush1.msra.mxu0 0.0
    %1784 = vmatprep.subr.mxu0 0.0
    %1785 = vmatpush1.msra.mxu0 0.0
    %1786 = vmatprep.subr.mxu0 0.0
    %1787 = vmatpush1.msra.mxu0 0.0
    %1788 = vmatprep.subr.mxu0 0.0
    %1789 = vmatpush1.msra.mxu0 0.0
    %1790 = vmatprep.subr.mxu0 0.0
    %1791 = vmatpush1.msra.mxu0 0.0
    %1792 = vmatprep.subr.mxu0 0.0
    %1793 = vmatpush1.msra.mxu0 0.0
    %1794 = vmatprep.subr.mxu0 0.0
    %1795 = vmatpush1.msra.mxu0 0.0
    %1796 = vmatprep.subr.mxu0 0.0
    %1797 = vmatpush1.msra.mxu0 0.0
    %1798 = vmatprep.subr.mxu0 0.0
    %1799 = vmatpush1.msra.mxu0 0.0
    %1800 = vmatprep.subr.mxu0 0.0
    %1801 = vmatpush1.msra.mxu0 0.0
    %1802 = vmatprep.subr.mxu0 0.0
    %1803 = vmatpush1.msra.mxu0 0.0
    %1804 = vmatprep.mubr.f32.mxu0 0.0
    %1805 = vmatmul.mubr.f32.gmra.mrb[0].mxu0 %v1738
    %v1806 = vpop.f32.mrb[0].mxu0
    %v1807 = vadd.f32 0.0, %v1806
    %v1808 = vpop.f32.mrb[0].mxu0
    %1809 = vdwg.mxu0
    %v1810 = vadd.f32 %v1736, %v1807
    %v1811 = vxor.u32 %v1810, 2147483648
    %v1812 = vmul.f32 %v1811, 1.442695
    %v1813 = vpow.pop %v1812
    %v1814 = vadd.f32 %v1813, 1.0
    %v1815 = vrcp.pop %v1814
    %v1816 = vmul.f32 1.0, %v1815
    %v1817 = vtanh.pop %v1810
    %v1818 = vmul.f32 %v1816, %v1717
    %1820 = vrot.lane.b32.xlu0 %v1817, 32
    %v1821 = vpop.permute.xlu0 %1820
    %v1823 = vmul.f32 %v1816, %v1821
    %1825 = vrot.lane.b32.xlu0 %v1823, 32
    %v1826 = vpop.permute.xlu0 %1825
    %v1828 = vadd.f32 %v1818, %v1826
    %v1829 = vtanh.pop %v1828
    %1831 = vrot.lane.b32.xlu0 %v1829, 32
    %v1832 = vpop.permute.xlu0 %1831
    %v1834 = vmul.f32 %v1816, %v1832
    %1836 = vrot.lane.b32.xlu0 %v1834, 64
    %v1837 = vpop.permute.xlu0 %1836
    %1839 = vrot.lane.b32.xlu0 %v1834, 96
    %v1840 = vpop.permute.xlu0 %1839
    %v1842 = vsel %vm124, %v1837, %v1840
    %v1843 = vmul.f32 %v1842, %v101
    %v1845 = vrot.slane %v1278, 2
    %v1847 = vrot.slane %v1274, 2
    %v1849 = vsel %vm219, %v1845, %v1847
    %v1851 = vsel %vm221, %v1843, 0
    %1853 = vmatprep.subr.mxu0 0.0
    %1854 = vmatpush1.msra.mxu0 %v1282
    %1855 = vmatprep.subr.mxu0 0.0
    %1856 = vmatpush1.msra.mxu0 %v1283
    %1857 = vmatprep.subr.mxu0 0.0
    %1858 = vmatpush1.msra.mxu0 %v1284
    %1859 = vmatprep.subr.mxu0 0.0
    %1860 = vmatpush1.msra.mxu0 %v1285
    %1861 = vmatprep.subr.mxu0 0.0
    %1862 = vmatpush1.msra.mxu0 %v1286
    %1863 = vmatprep.subr.mxu0 0.0
    %1864 = vmatpush1.msra.mxu0 %v1287
    %1865 = vmatprep.subr.mxu0 0.0
    %1866 = vmatpush1.msra.mxu0 %v1288
    %1867 = vmatprep.subr.mxu0 0.0
    %1868 = vmatpush1.msra.mxu0 %v1289
    %1869 = vmatprep.subr.mxu0 0.0
    %1870 = vmatpush1.msra.mxu0 0.0
    %1871 = vmatprep.subr.mxu0 0.0
    %1872 = vmatpush1.msra.mxu0 0.0
    %1873 = vmatprep.subr.mxu0 0.0
    %1874 = vmatpush1.msra.mxu0 0.0
    %1875 = vmatprep.subr.mxu0 0.0
    %1876 = vmatpush1.msra.mxu0 0.0
    %1877 = vmatprep.subr.mxu0 0.0
    %1878 = vmatpush1.msra.mxu0 0.0
    %1879 = vmatprep.subr.mxu0 0.0
    %1880 = vmatpush1.msra.mxu0 0.0
    %1881 = vmatprep.subr.mxu0 0.0
    %1882 = vmatpush1.msra.mxu0 0.0
    %1883 = vmatprep.subr.mxu0 0.0
    %1884 = vmatpush1.msra.mxu0 0.0
    %1885 = vmatprep.subr.mxu0 0.0
    %1886 = vmatpush1.msra.mxu0 0.0
    %1887 = vmatprep.subr.mxu0 0.0
    %1888 = vmatpush1.msra.mxu0 0.0
    %1889 = vmatprep.subr.mxu0 0.0
    %1890 = vmatpush1.msra.mxu0 0.0
    %1891 = vmatprep.subr.mxu0 0.0
    %1892 = vmatpush1.msra.mxu0 0.0
    %1893 = vmatprep.subr.mxu0 0.0
    %1894 = vmatpush1.msra.mxu0 0.0
    %1895 = vmatprep.subr.mxu0 0.0
    %1896 = vmatpush1.msra.mxu0 0.0
    %1897 = vmatprep.subr.mxu0 0.0
    %1898 = vmatpush1.msra.mxu0 0.0
    %1899 = vmatprep.subr.mxu0 0.0
    %1900 = vmatpush1.msra.mxu0 0.0
    %1901 = vmatprep.subr.mxu0 0.0
    %1902 = vmatpush1.msra.mxu0 0.0
    %1903 = vmatprep.subr.mxu0 0.0
    %1904 = vmatpush1.msra.mxu0 0.0
    %1905 = vmatprep.subr.mxu0 0.0
    %1906 = vmatpush1.msra.mxu0 0.0
    %1907 = vmatprep.subr.mxu0 0.0
    %1908 = vmatpush1.msra.mxu0 0.0
    %1909 = vmatprep.subr.mxu0 0.0
    %1910 = vmatpush1.msra.mxu0 0.0
    %1911 = vmatprep.subr.mxu0 0.0
    %1912 = vmatpush1.msra.mxu0 0.0
    %1913 = vmatprep.subr.mxu0 0.0
    %1914 = vmatpush1.msra.mxu0 0.0
    %1915 = vmatprep.subr.mxu0 0.0
    %1916 = vmatpush1.msra.mxu0 0.0
    %1917 = vmatprep.mubr.f32.mxu0 0.0
    %1918 = vmatmul.mubr.f32.gmra.mrb[0].mxu0 %v1851
    %v1919 = vpop.f32.mrb[0].mxu0
    %v1920 = vadd.f32 0.0, %v1919
    %v1921 = vpop.f32.mrb[0].mxu0
    %1922 = vdwg.mxu0
    %v1923 = vadd.f32 %v1849, %v1920
    %v1924 = vxor.u32 %v1923, 2147483648
    %v1925 = vmul.f32 %v1924, 1.442695
    %v1926 = vpow.pop %v1925
    %v1927 = vadd.f32 %v1926, 1.0
    %v1928 = vrcp.pop %v1927
    %v1929 = vmul.f32 1.0, %v1928
    %v1930 = vtanh.pop %v1923
    %v1931 = vmul.f32 %v1929, %v1828
    %1933 = vrot.lane.b32.xlu0 %v1930, 32
    %v1934 = vpop.permute.xlu0 %1933
    %v1936 = vmul.f32 %v1929, %v1934
    %1938 = vrot.lane.b32.xlu0 %v1936, 32
    %v1939 = vpop.permute.xlu0 %1938
    %v1941 = vadd.f32 %v1931, %v1939
    %v1942 = vtanh.pop %v1941
    %1944 = vrot.lane.b32.xlu0 %v1942, 32
    %v1945 = vpop.permute.xlu0 %1944
    %v1947 = vmul.f32 %v1929, %v1945
    %1949 = vrot.lane.b32.xlu0 %v1947, 64
    %v1950 = vpop.permute.xlu0 %1949
    %1952 = vrot.lane.b32.xlu0 %v1947, 96
    %v1953 = vpop.permute.xlu0 %1952
    %v1955 = vsel %vm124, %v1950, %v1953
    %v1956 = vmul.f32 %v1955, %v101
    %v1957 = vrot.slane %v1278, 4
    %v1959 = vsel %vm219, %v1957, %v1274
    %v1961 = vsel %vm221, %v1956, 0
    %1963 = vmatprep.subr.mxu0 0.0
    %1964 = vmatpush1.msra.mxu0 %v1282
    %1965 = vmatprep.subr.mxu0 0.0
    %1966 = vmatpush1.msra.mxu0 %v1283
    %1967 = vmatprep.subr.mxu0 0.0
    %1968 = vmatpush1.msra.mxu0 %v1284
    %1969 = vmatprep.subr.mxu0 0.0
    %1970 = vmatpush1.msra.mxu0 %v1285
    %1971 = vmatprep.subr.mxu0 0.0
    %1972 = vmatpush1.msra.mxu0 %v1286
    %1973 = vmatprep.subr.mxu0 0.0
    %1974 = vmatpush1.msra.mxu0 %v1287
    %1975 = vmatprep.subr.mxu0 0.0
    %1976 = vmatpush1.msra.mxu0 %v1288
    %1977 = vmatprep.subr.mxu0 0.0
    %1978 = vmatpush1.msra.mxu0 %v1289
    %1979 = vmatprep.subr.mxu0 0.0
    %1980 = vmatpush1.msra.mxu0 0.0
    %1981 = vmatprep.subr.mxu0 0.0
    %1982 = vmatpush1.msra.mxu0 0.0
    %1983 = vmatprep.subr.mxu0 0.0
    %1984 = vmatpush1.msra.mxu0 0.0
    %1985 = vmatprep.subr.mxu0 0.0
    %1986 = vmatpush1.msra.mxu0 0.0
    %1987 = vmatprep.subr.mxu0 0.0
    %1988 = vmatpush1.msra.mxu0 0.0
    %1989 = vmatprep.subr.mxu0 0.0
    %1990 = vmatpush1.msra.mxu0 0.0
    %1991 = vmatprep.subr.mxu0 0.0
    %1992 = vmatpush1.msra.mxu0 0.0
    %1993 = vmatprep.subr.mxu0 0.0
    %1994 = vmatpush1.msra.mxu0 0.0
    %1995 = vmatprep.subr.mxu0 0.0
    %1996 = vmatpush1.msra.mxu0 0.0
    %1997 = vmatprep.subr.mxu0 0.0
    %1998 = vmatpush1.msra.mxu0 0.0
    %1999 = vmatprep.subr.mxu0 0.0
    %2000 = vmatpush1.msra.mxu0 0.0
    %2001 = vmatprep.subr.mxu0 0.0
    %2002 = vmatpush1.msra.mxu0 0.0
    %2003 = vmatprep.subr.mxu0 0.0
    %2004 = vmatpush1.msra.mxu0 0.0
    %2005 = vmatprep.subr.mxu0 0.0
    %2006 = vmatpush1.msra.mxu0 0.0
    %2007 = vmatprep.subr.mxu0 0.0
    %2008 = vmatpush1.msra.mxu0 0.0
    %2009 = vmatprep.subr.mxu0 0.0
    %2010 = vmatpush1.msra.mxu0 0.0
    %2011 = vmatprep.subr.mxu0 0.0
    %2012 = vmatpush1.msra.mxu0 0.0
    %2013 = vmatprep.subr.mxu0 0.0
    %2014 = vmatpush1.msra.mxu0 0.0
    %2015 = vmatprep.subr.mxu0 0.0
    %2016 = vmatpush1.msra.mxu0 0.0
    %2017 = vmatprep.subr.mxu0 0.0
    %2018 = vmatpush1.msra.mxu0 0.0
    %2019 = vmatprep.subr.mxu0 0.0
    %2020 = vmatpush1.msra.mxu0 0.0
    %2021 = vmatprep.subr.mxu0 0.0
    %2022 = vmatpush1.msra.mxu0 0.0
    %2023 = vmatprep.subr.mxu0 0.0
    %2024 = vmatpush1.msra.mxu0 0.0
    %2025 = vmatprep.subr.mxu0 0.0
    %2026 = vmatpush1.msra.mxu0 0.0
    %2027 = vmatprep.mubr.f32.mxu0 0.0
    %2028 = vmatmul.mubr.f32.gmra.mrb[0].mxu0 %v1961
    %v2029 = vpop.f32.mrb[0].mxu0
    %v2030 = vadd.f32 0.0, %v2029
    %v2031 = vpop.f32.mrb[0].mxu0
    %2032 = vdwg.mxu0
    %v2033 = vadd.f32 %v1959, %v2030
    %v2034 = vxor.u32 %v2033, 2147483648
    %v2035 = vmul.f32 %v2034, 1.442695
    %v2036 = vpow.pop %v2035
    %v2037 = vadd.f32 %v2036, 1.0
    %v2038 = vrcp.pop %v2037
    %v2039 = vmul.f32 1.0, %v2038
    %v2040 = vtanh.pop %v2033
    %v2041 = vmul.f32 %v2039, %v1941
    %2043 = vrot.lane.b32.xlu0 %v2040, 32
    %v2044 = vpop.permute.xlu0 %2043
    %v2046 = vmul.f32 %v2039, %v2044
    %2048 = vrot.lane.b32.xlu0 %v2046, 32
    %v2049 = vpop.permute.xlu0 %2048
    %v2051 = vadd.f32 %v2041, %v2049
    %v2052 = vtanh.pop %v2051
    %2054 = vrot.lane.b32.xlu0 %v2052, 32
    %v2055 = vpop.permute.xlu0 %2054
    %v2057 = vmul.f32 %v2039, %v2055
    %2059 = vrot.lane.b32.xlu0 %v2057, 64
    %v2060 = vpop.permute.xlu0 %2059
    %2062 = vrot.lane.b32.xlu0 %v2057, 96
    %v2063 = vpop.permute.xlu0 %2062
    %v2065 = vsel %vm124, %v2060, %v2063
    %v2066 = vmul.f32 %v2065, %v101
    %v2067 = vrot.slane %v1278, 6
    %v2069 = vrot.slane %v1274, 6
    %v2071 = vsel %vm219, %v2067, %v2069
    %v2073 = vsel %vm221, %v2066, 0
    %2075 = vmatprep.subr.mxu0 0.0
    %2076 = vmatpush1.msra.mxu0 %v1282
    %2077 = vmatprep.subr.mxu0 0.0
    %2078 = vmatpush1.msra.mxu0 %v1283
    %2079 = vmatprep.subr.mxu0 0.0
    %2080 = vmatpush1.msra.mxu0 %v1284
    %2081 = vmatprep.subr.mxu0 0.0
    %2082 = vmatpush1.msra.mxu0 %v1285
    %2083 = vmatprep.subr.mxu0 0.0
    %2084 = vmatpush1.msra.mxu0 %v1286
    %2085 = vmatprep.subr.mxu0 0.0
    %2086 = vmatpush1.msra.mxu0 %v1287
    %2087 = vmatprep.subr.mxu0 0.0
    %2088 = vmatpush1.msra.mxu0 %v1288
    %2089 = vmatprep.subr.mxu0 0.0
    %2090 = vmatpush1.msra.mxu0 %v1289
    %2091 = vmatprep.subr.mxu0 0.0
    %2092 = vmatpush1.msra.mxu0 0.0
    %2093 = vmatprep.subr.mxu0 0.0
    %2094 = vmatpush1.msra.mxu0 0.0
    %2095 = vmatprep.subr.mxu0 0.0
    %2096 = vmatpush1.msra.mxu0 0.0
    %2097 = vmatprep.subr.mxu0 0.0
    %2098 = vmatpush1.msra.mxu0 0.0
    %2099 = vmatprep.subr.mxu0 0.0
    %2100 = vmatpush1.msra.mxu0 0.0
    %2101 = vmatprep.subr.mxu0 0.0
    %2102 = vmatpush1.msra.mxu0 0.0
    %2103 = vmatprep.subr.mxu0 0.0
    %2104 = vmatpush1.msra.mxu0 0.0
    %2105 = vmatprep.subr.mxu0 0.0
    %2106 = vmatpush1.msra.mxu0 0.0
    %2107 = vmatprep.subr.mxu0 0.0
    %2108 = vmatpush1.msra.mxu0 0.0
    %2109 = vmatprep.subr.mxu0 0.0
    %2110 = vmatpush1.msra.mxu0 0.0
    %2111 = vmatprep.subr.mxu0 0.0
    %2112 = vmatpush1.msra.mxu0 0.0
    %2113 = vmatprep.subr.mxu0 0.0
    %2114 = vmatpush1.msra.mxu0 0.0
    %2115 = vmatprep.subr.mxu0 0.0
    %2116 = vmatpush1.msra.mxu0 0.0
    %2117 = vmatprep.subr.mxu0 0.0
    %2118 = vmatpush1.msra.mxu0 0.0
    %2119 = vmatprep.subr.mxu0 0.0
    %2120 = vmatpush1.msra.mxu0 0.0
    %2121 = vmatprep.subr.mxu0 0.0
    %2122 = vmatpush1.msra.mxu0 0.0
    %2123 = vmatprep.subr.mxu0 0.0
    %2124 = vmatpush1.msra.mxu0 0.0
    %2125 = vmatprep.subr.mxu0 0.0
    %2126 = vmatpush1.msra.mxu0 0.0
    %2127 = vmatprep.subr.mxu0 0.0
    %2128 = vmatpush1.msra.mxu0 0.0
    %2129 = vmatprep.subr.mxu0 0.0
    %2130 = vmatpush1.msra.mxu0 0.0
    %2131 = vmatprep.subr.mxu0 0.0
    %2132 = vmatpush1.msra.mxu0 0.0
    %2133 = vmatprep.subr.mxu0 0.0
    %2134 = vmatpush1.msra.mxu0 0.0
    %2135 = vmatprep.subr.mxu0 0.0
    %2136 = vmatpush1.msra.mxu0 0.0
    %2137 = vmatprep.subr.mxu0 0.0
    %2138 = vmatpush1.msra.mxu0 0.0
    %2139 = vmatprep.mubr.f32.mxu0 0.0
    %2140 = vmatmul.mubr.f32.gmra.mrb[0].mxu0 %v2073
    %v2141 = vpop.f32.mrb[0].mxu0
    %v2142 = vadd.f32 0.0, %v2141
    %v2143 = vpop.f32.mrb[0].mxu0
    %2144 = vdwg.mxu0
    %v2145 = vadd.f32 %v2071, %v2142
    %v2146 = vxor.u32 %v2145, 2147483648
    %v2147 = vmul.f32 %v2146, 1.442695
    %v2148 = vpow.pop %v2147
    %v2149 = vadd.f32 %v2148, 1.0
    %v2150 = vrcp.pop %v2149
    %v2151 = vmul.f32 1.0, %v2150
    %v2152 = vtanh.pop %v2145
    %v2153 = vmul.f32 %v2151, %v2051
    %2155 = vrot.lane.b32.xlu0 %v2152, 32
    %v2156 = vpop.permute.xlu0 %2155
    %v2158 = vmul.f32 %v2151, %v2156
    %2160 = vrot.lane.b32.xlu0 %v2158, 32
    %v2161 = vpop.permute.xlu0 %2160
    %v2163 = vadd.f32 %v2153, %v2161
    %v2164 = vtanh.pop %v2163
    %2166 = vrot.lane.b32.xlu0 %v2164, 32
    %v2167 = vpop.permute.xlu0 %2166
    %v2169 = vmul.f32 %v2151, %v2167
    %v2171 = vrot.slane %v2169, 2
    %2172 = vrot.lane.b32.xlu0 %v2171, 96
    %v2173 = vpop.permute.xlu0 %2172
    %v2175 = vsel %vm124, %v1391, %v2173
    %v2176 = vrot.slane %v2057, 2
    %2177 = vrot.lane.b32.xlu0 %v2176, 96
    %v2178 = vpop.permute.xlu0 %2177
    %v2180 = vsel %vm124, %v1504, %v2178
    %v2181 = vrot.slane %v1947, 2
    %2182 = vrot.lane.b32.xlu0 %v2181, 96
    %v2183 = vpop.permute.xlu0 %2182
    %v2185 = vsel %vm124, %v1614, %v2183
    %v2186 = vrot.slane %v1834, 2
    %2187 = vrot.lane.b32.xlu0 %v2186, 96
    %v2188 = vpop.permute.xlu0 %2187
    %v2190 = vsel %vm124, %v1726, %v2188
    %v2191 = vrot.slane %v1723, 2
    %2192 = vrot.lane.b32.xlu0 %v2191, 96
    %v2193 = vpop.permute.xlu0 %2192
    %v2195 = vsel %vm124, %v1837, %v2193
    %v2196 = vrot.slane %v1611, 2
    %2197 = vrot.lane.b32.xlu0 %v2196, 96
    %v2198 = vpop.permute.xlu0 %2197
    %v2200 = vsel %vm124, %v1950, %v2198
    %v2201 = vrot.slane %v1501, 2
    %2202 = vrot.lane.b32.xlu0 %v2201, 96
    %v2203 = vpop.permute.xlu0 %2202
    %v2205 = vsel %vm124, %v2060, %v2203
    %2206 = vrot.lane.b32.xlu0 %v2169, 64
    %v2207 = vpop.permute.xlu0 %2206
    %v2209 = vrot.slane %v1388, 2
    %2210 = vrot.lane.b32.xlu0 %v2209, 96
    %v2211 = vpop.permute.xlu0 %2210
    %v2213 = vsel %vm124, %v2207, %v2211
    %v2214 = vld [vmem:[%s7] sm:$0x1]
    %v2215 = vld [vmem:[#allocation2] sm:$0x1]
    %v2217 = vlaneseq
    %v2218 = vshrl.u32 %v2217, 7
    %v2219 = vsub.s32 0, %v2218
    %v2220 = vrot.slane %v2214, %v2219
    %v2222 = vmul.f32 %v2175, %v2220
    %vm2223 = vcmask 517120
    %v2224 = vsel %vm2223, %v2222, 0.0
    %2225 = vadd.xlane.f32.xlu0 %v2224
    %v2226 = vpop.xlane.xlu0 %2225
    %v2228 = vlaneseq
    %v2229 = vshrl.u32 %v2228, 7
    %v2230 = vsub.s32 0, %v2229
    %v2231 = vrot.slane %v2215, %v2230
    %v2233 = vadd.f32 %v2226, %v2231
    %v2234 = vmul.f32 %v2180, %v2220
    %v2235 = vsel %vm2223, %v2234, 0.0
    %2236 = vadd.xlane.f32.xlu0 %v2235
    %v2237 = vpop.xlane.xlu0 %2236
    %v2238 = vadd.f32 %v2237, %v2231
    %v2239 = vmul.f32 %v2185, %v2220
    %v2240 = vsel %vm2223, %v2239, 0.0
    %2241 = vadd.xlane.f32.xlu0 %v2240
    %v2242 = vpop.xlane.xlu0 %2241
    %v2243 = vadd.f32 %v2242, %v2231
    %v2244 = vmul.f32 %v2190, %v2220
    %v2245 = vsel %vm2223, %v2244, 0.0
    %2246 = vadd.xlane.f32.xlu0 %v2245
    %v2247 = vpop.xlane.xlu0 %2246
    %v2248 = vadd.f32 %v2247, %v2231
    %v2249 = vmul.f32 %v2195, %v2220
    %v2250 = vsel %vm2223, %v2249, 0.0
    %2251 = vadd.xlane.f32.xlu0 %v2250
    %v2252 = vpop.xlane.xlu0 %2251
    %v2253 = vadd.f32 %v2252, %v2231
    %v2254 = vmul.f32 %v2200, %v2220
    %v2255 = vsel %vm2223, %v2254, 0.0
    %2256 = vadd.xlane.f32.xlu0 %v2255
    %v2257 = vpop.xlane.xlu0 %2256
    %v2258 = vadd.f32 %v2257, %v2231
    %v2259 = vmul.f32 %v2205, %v2220
    %v2260 = vsel %vm2223, %v2259, 0.0
    %2261 = vadd.xlane.f32.xlu0 %v2260
    %v2262 = vpop.xlane.xlu0 %2261
    %v2263 = vadd.f32 %v2262, %v2231
    %v2264 = vmul.f32 %v2213, %v2220
    %v2265 = vsel %vm2223, %v2264, 0.0
    %2266 = vadd.xlane.f32.xlu0 %v2265
    %v2267 = vpop.xlane.xlu0 %2266
    %v2268 = vadd.f32 %v2267, %v2231
    %2270 = vrot.lane.b32.xlu0 %v2238, 1
    %v2271 = vpop.permute.xlu0 %2270
    %2274 = vrot.lane.b32.xlu0 %v2243, 2
    %v2275 = vpop.permute.xlu0 %2274
    %2278 = vrot.lane.b32.xlu0 %v2248, 3
    %v2279 = vpop.permute.xlu0 %2278
    %2282 = vrot.lane.b32.xlu0 %v2253, 4
    %v2283 = vpop.permute.xlu0 %2282
    %2286 = vrot.lane.b32.xlu0 %v2258, 5
    %v2287 = vpop.permute.xlu0 %2286
    %2290 = vrot.lane.b32.xlu0 %v2263, 6
    %v2291 = vpop.permute.xlu0 %2290
    %2294 = vrot.lane.b32.xlu0 %v2268, 7
    %v2295 = vpop.permute.xlu0 %2294
    %vm2297 = vcmask 7168
    %v2298 = vsel %vm2297, %v2233, %v2271
    %vm2299 = vcmask 15360
    %v2300 = vsel %vm2299, %v2298, %v2275
    %vm2301 = vcmask 23552
    %v2302 = vsel %vm2301, %v2300, %v2279
    %vm2303 = vcmask 31744
    %v2304 = vsel %vm2303, %v2302, %v2283
    %vm2305 = vcmask 39936
    %v2306 = vsel %vm2305, %v2304, %v2287
    %vm2307 = vcmask 48128
    %v2308 = vsel %vm2307, %v2306, %v2291
    %vm2309 = vcmask 56320
    %v2310 = vsel %vm2309, %v2308, %v2295
    %vm2311 = vcmask 58368
    %v2312 = vsel %vm2311, %v2310, -inf
    %2313 = vmax.xlane.f32.xlu0 %v2312
    %v2314 = vpop.xlane.xlu0 %2313
    %v2315 = vsub.f32 %v2310, %v2314
    %v2316 = vmul.f32 %v2315, 1.442695
    %v2317 = vpow.pop %v2316
    %v2318 = vsel %vm2311, %v2317, 0.0
    %2319 = vadd.xlane.f32.xlu0 %v2318
    %v2320 = vpop.xlane.xlu0 %2319
    %v2321 = vrcp.pop %v2320
    %v2322 = vmul.f32 %v2317, %v2321
    %2324 = vset.pattern.permute.xlu0 0
    %2325 = vperm.xlu0 %2324, %v2322
    %v2326 = vpop.permute.xlu0 %2325
    %v2328 = vmul.f32 %v2326, %v2175
    %v2329 = vadd.f32 %v2328, 0.0
    %2330 = vset.pattern.permute.xlu0 1
    %2331 = vperm.xlu0 %2330, %v2322
    %v2332 = vpop.permute.xlu0 %2331
    %v2334 = vmul.f32 %v2332, %v2180
    %v2335 = vadd.f32 %v2329, %v2334
    %2336 = vset.pattern.permute.xlu0 2
    %2337 = vperm.xlu0 %2336, %v2322
    %v2338 = vpop.permute.xlu0 %2337
    %v2340 = vmul.f32 %v2338, %v2185
    %v2341 = vadd.f32 %v2335, %v2340
    %2342 = vset.pattern.permute.xlu0 3
    %2343 = vperm.xlu0 %2342, %v2322
    %v2344 = vpop.permute.xlu0 %2343
    %v2346 = vmul.f32 %v2344, %v2190
    %v2347 = vadd.f32 %v2341, %v2346
    %2348 = vset.pattern.permute.xlu0 4
    %2349 = vperm.xlu0 %2348, %v2322
    %v2350 = vpop.permute.xlu0 %2349
    %v2352 = vmul.f32 %v2350, %v2195
    %v2353 = vadd.f32 %v2347, %v2352
    %2354 = vset.pattern.permute.xlu0 5
    %2355 = vperm.xlu0 %2354, %v2322
    %v2356 = vpop.permute.xlu0 %2355
    %v2358 = vmul.f32 %v2356, %v2200
    %v2359 = vadd.f32 %v2353, %v2358
    %2360 = vset.pattern.permute.xlu0 6
    %2361 = vperm.xlu0 %2360, %v2322
    %v2362 = vpop.permute.xlu0 %2361
    %v2364 = vmul.f32 %v2362, %v2205
    %v2365 = vadd.f32 %v2359, %v2364
    %2366 = vset.pattern.permute.xlu0 7
    %2367 = vperm.xlu0 %2366, %v2322
    %v2368 = vpop.permute.xlu0 %2367
    %v2370 = vmul.f32 %v2368, %v2213
    %v2371 = vadd.f32 %v2365, %v2370
    %2373 = vrot.lane.b32.xlu0 %v2371, 64
    %v2374 = vpop.permute.xlu0 %2373
    %v2376 = vsel %vm221, %v2213, %v2374
    %2377 = vst [vmem:[#allocation11] sm:$0x3] %v2376
    // Predicated region
    $region54: #{history_attention_rnn.1} parent=1 // pred_check
      _
    $region55: #{history_attention_rnn.1} parent=1 // pred_check_branch
      %2379 = sbr.rel (0) target = $region57
    $region56: #{history_attention_rnn.1} parent=1 // pred_region
      %s2381 = ssub.s32 32, 32
      %2382 = vsyncadd [#allocation5], %s2381
      %s2384 = sshll.u32 [#allocation11], 4
      %s2385 = int_to_ptr.vmem [resolvable:$true] %s2384
      %2387 = dma.vmem_to_hbm [thread:$0]  %s2385, 32, %s9, [#allocation5]
    $region57: #{history_attention_rnn.1} parent=1 // pred_fallthru
      _
    // Predicated region
    $region58: #{history_attention_rnn.1} parent=1 // pred_check
      _
    $region59: #{history_attention_rnn.1} parent=1 // pred_check_branch
      %2389 = sbr.rel (0) target = $region61
    $region60: #{history_attention_rnn.1} parent=1 // pred_region
      %2390 = dma.done [#allocation5], 32
    $region61: #{history_attention_rnn.1} parent=1 // pred_fallthru
      _
    %2391 = vsyncpa [#allocation4], 1
    %2392 = vsyncpa [#allocation7], 1
    %2393 = vsyncpa [#allocation10], 1
    %2394 = vsyncpa [#allocation5], 1

</llo_original>
